<compile_context>
chip_gen: v5e
topology: v5e:2x2
jax: 0.10.0
libtpu: 0.0.40
codegen_flags: <defaults>
</compile_context>

<pallas_src>
import functools
import math

import jax
import jax.numpy as jnp
from jax import lax
from jax.experimental import pallas as pl
from jax.experimental.pallas import tpu as pltpu

# Contract dim 1 of activations with dim 1 of an (out, in) weight: y = x @ W^T
# (Mosaic lowers this as a transposed-RHS matmul; no wrapper-side transpose.)
_DN = (((1,), (1,)), ((), ()))


def _bytes(shape, dtype):
    return math.prod(shape) * jnp.dtype(dtype).itemsize


def _layernorm(x, a_ref, b_ref, eps):
    mean = jnp.mean(x, axis=-1, keepdims=True)
    var = jnp.mean(jnp.square(x - mean), axis=-1, keepdims=True)
    norm = (x - mean) * lax.rsqrt(var + eps)            # rsqrt -> EUP slot
    return a_ref[...].astype(jnp.float32) * norm + b_ref[...].astype(jnp.float32)


# --------------------------- attention sub-block ---------------------------
def _make_mha_kernel(*, self_attn, mask_mode, h, scale, eps, tq,
                     compute_dtype, approx_recip):
    """Kernel: one (batch, q-tile) step of x + W_o(softmax(QK^T/sqrt(dk)) V)."""

    def kernel(*refs):
        i = 0
        x_ref = refs[i]; i += 1
        xkv_ref = None
        if not self_attn:
            xkv_ref = refs[i]; i += 1
        bias_ref = None
        if mask_mode == "bias":
            bias_ref = refs[i]; i += 1
        ln_a_ref, ln_b_ref, wq_ref, wk_ref, wv_ref, wo_ref, o_ref = refs[i:i + 7]

        x = x_ref[0].astype(jnp.float32)                  # (tq, D) residual
        xn = _layernorm(x, ln_a_ref, ln_b_ref, eps)       # pre-norm query input
        xq_c = xn.astype(compute_dtype)                   # bf16 MXU operand
        xkv_c = xq_c if self_attn else xkv_ref[0].astype(compute_dtype)

        q = lax.dot_general(xq_c, wq_ref[...], _DN, preferred_element_type=jnp.float32)
        k = lax.dot_general(xkv_c, wk_ref[...], _DN, preferred_element_type=jnp.float32)
        v = lax.dot_general(xkv_c, wv_ref[...], _DN, preferred_element_type=jnp.float32)

        D = q.shape[-1]
        Sk = k.shape[0]
        dk = D // h

        # Head-batched layout (h leading) -> single batched score/context matmul
        qh = q.reshape(tq, h, dk).swapaxes(0, 1).astype(compute_dtype)  # (h, tq, dk)
        kh = k.reshape(Sk, h, dk).swapaxes(0, 1).astype(compute_dtype)  # (h, Sk, dk)
        vh = v.reshape(Sk, h, dk).swapaxes(0, 1).astype(compute_dtype)  # (h, Sk, dk)

        s = jnp.einsum('hqd,hkd->hqk', qh, kh,
                       preferred_element_type=jnp.float32) * scale      # (h, tq, Sk)

        # Mask applied once (hoisted out of any per-head work).
        if mask_mode == "causal":
            q0 = pl.program_id(1) * tq
            row = q0 + lax.broadcasted_iota(jnp.int32, (tq, Sk), 0)
            col = lax.broadcasted_iota(jnp.int32, (tq, Sk), 1)
            neg = jnp.where(row >= col, 0.0, -1e30).astype(jnp.float32)
            s = s + neg[None]
        elif mask_mode == "bias":
            s = s + bias_ref[0][None]                     # broadcast over heads

        m = jnp.max(s, axis=-1, keepdims=True)
        p = jnp.exp(s - m)
        l = jnp.sum(p, axis=-1, keepdims=True)
        w = p * pl.reciprocal(l, approx=approx_recip)     # EUP reciprocal

        ctx = jnp.einsum('hqk,hkd->hqd', w.astype(compute_dtype), vh,
                         preferred_element_type=jnp.float32)            # (h, tq, dk)
        ctx = ctx.swapaxes(0, 1).reshape(tq, D)           # concat heads
        y = lax.dot_general(ctx.astype(compute_dtype), wo_ref[...], _DN,
                            preferred_element_type=jnp.float32)         # one full-K W_o

        # TODO(synk): dropout treated as identity (inference mode).
        o_ref[0] = (x + y).astype(o_ref.dtype)

    return kernel


def _mask_to_bias(mask, B, Sq, Sk):
    """torch-style mask (2/3/4-D, 0 == masked) -> compact additive f32 bias."""
    m = jnp.asarray(mask)
    if m.ndim == 4:            # (B, 1, Sq, Sk): head dim is broadcast
        m = m[:, 0]
    if m.ndim == 2:            # (Sq, Sk)
        m = m[None]
    if m.shape[-1] != Sk:
        m = jnp.broadcast_to(m, m.shape[:-1] + (Sk,))
    # matches torch masked_fill(mask == 0, -inf) up to the finite -1e30 stand-in
    return jnp.where(m == 0, -1e30, 0.0).astype(jnp.float32)


def _pick_row_tile(m, max_tile=256):
    """Largest tile <= max_tile that divides m and is a multiple of 8."""
    if m <= max_tile:
        return m
    for t in range(max_tile - max_tile % 8, 7, -8):
        if m % t == 0:
            return t
    return m


def _pick_dff_tile(d_ff, max_tile=2048):
    """Largest d_ff chunk <= max_tile that divides d_ff and is 128-aligned."""
    if d_ff <= max_tile:
        return d_ff
    for t in range(max_tile - max_tile % 128, 127, -128):
        if d_ff % t == 0:
            return t
    return d_ff


def _attention_residual(x, xkv, mask, ln_a, ln_b, wq, wk, wv, wo,
                        *, h, eps, compute_dtype, q_tile_max=256):
    B, Sq, D = x.shape
    self_attn = xkv is None
    Sk = Sq if self_attn else xkv.shape[1]
    mask_mode = ("causal" if isinstance(mask, str)
                 else ("none" if mask is None else "bias"))
    tq = _pick_row_tile(Sq, q_tile_max)
    nq = Sq // tq
    scale = 1.0 / math.sqrt(D // h)
    cd = jnp.dtype(compute_dtype)
    approx = cd == jnp.dtype(jnp.bfloat16)

    bias = _mask_to_bias(mask, B, Sq, Sk) if mask_mode == "bias" else None

    kernel = _make_mha_kernel(self_attn=self_attn, mask_mode=mask_mode, h=h,
                              scale=scale, eps=eps, tq=tq, compute_dtype=cd,
                              approx_recip=approx)

    ln_a2 = ln_a.reshape(1, D).astype(jnp.float32)
    ln_b2 = ln_b.reshape(1, D).astype(jnp.float32)

    def call(single_buffer):
        const = {"pipeline_mode": pl.Buffered(1)} if single_buffer else {}
        ops = [x]
        in_specs = [pl.BlockSpec((1, tq, D), lambda b, qi: (b, qi, 0))]
        if not self_attn:            # dead K/V input dropped for self-attention
            ops.append(xkv)
            in_specs.append(pl.BlockSpec((1, Sk, D), lambda b, qi: (b, 0, 0)))
        if mask_mode == "bias":
            Bm, Sqm, _ = bias.shape
            blk_q = tq if Sqm == Sq else Sqm
            if Bm > 1 and Sqm > 1:
                bias_map = lambda b, qi: (b, qi, 0)
            elif Bm > 1:
                bias_map = lambda b, qi: (b, 0, 0)
            elif Sqm > 1:
                bias_map = lambda b, qi: (0, qi, 0)
            else:
                bias_map = lambda b, qi: (0, 0, 0)
            bias_kw = const if (Bm == 1 and Sqm == 1) else {}
            ops.append(bias)
            in_specs.append(pl.BlockSpec((1, blk_q, Sk), bias_map, **bias_kw))
        ops.extend([ln_a2, ln_b2, wq, wk, wv, wo])
        in_specs += [pl.BlockSpec((1, D), lambda b, qi: (0, 0), **const),
                     pl.BlockSpec((1, D), lambda b, qi: (0, 0), **const)]
        in_specs += [pl.BlockSpec((D, D), lambda b, qi: (0, 0), **const)
                     for _ in range(4)]

        # Scoped VMEM limit sized from the real tile footprint (+ headroom).
        est = 4 * _bytes((tq, D), x.dtype)
        if not self_attn:
            est += 2 * _bytes((Sk, D), xkv.dtype)
        if mask_mode == "bias":
            est += 2 * _bytes(bias.shape[1:], bias.dtype)
        est += 4 * _bytes((D, D), wq.dtype) + 2 * _bytes((1, D), jnp.float32)
        vmem_limit = int(min(max(2 * est + (8 << 20), 32 << 20), 100 << 20))

        return pl.pallas_call(
            kernel,
            out_shape=jax.ShapeDtypeStruct((B, Sq, D), x.dtype),
            grid_spec=pltpu.PrefetchScalarGridSpec(
                num_scalar_prefetch=0,
                grid=(B, nq),
                in_specs=in_specs,
                out_specs=pl.BlockSpec((1, tq, D), lambda b, qi: (b, qi, 0)),
            ),
            compiler_params=pltpu.CompilerParams(
                dimension_semantics=("parallel", "parallel"),
                vmem_limit_bytes=vmem_limit),
        )(*ops)

    try:
        return call(True)
    except Exception:  # pragma: no cover - pl.Buffered(1) unsupported -> default
        return call(False)


# -------------------------- feed-forward sub-block --------------------------
def _ffn_block_kernel(x_ref, ln_a_ref, ln_b_ref, w1_ref, b1_ref, w2_ref, b2_ref,
                      o_ref, acc_ref, *, eps, compute_dtype):
    """(row-tile, d_ff-chunk) step of x + W2 relu(W1 LN(x) + b1) + b2."""
    k = pl.program_id(1)

    @pl.when(k == 0)
    def _():
        acc_ref[...] = jnp.zeros_like(acc_ref)

    x = x_ref[...].astype(jnp.float32)                          # (tm, D)
    xn = _layernorm(x, ln_a_ref, ln_b_ref, eps).astype(compute_dtype)
    hmid = lax.dot_general(xn, w1_ref[...], _DN, preferred_element_type=jnp.float32)
    hmid = jnp.maximum(hmid + b1_ref[...].astype(jnp.float32), 0.0)
    acc_ref[...] += lax.dot_general(hmid.astype(compute_dtype), w2_ref[...], _DN,
                                    preferred_element_type=jnp.float32)

    @pl.when(k == pl.num_programs(1) - 1)
    def _():
        # TODO(synk): dropout treated as identity (inference mode).
        o_ref[...] = (x + acc_ref[...] + b2_ref[...].astype(jnp.float32)
                      ).astype(o_ref.dtype)


def _ffn_residual(x, ln_a, ln_b, w1, b1, w2, b2, *, eps, compute_dtype,
                  row_tile_max=256, dff_tile_max=2048):
    B, S, D = x.shape
    d_ff = w1.shape[0]
    M = B * S
    x2 = x.reshape(M, D)
    tm = _pick_row_tile(M, row_tile_max)
    tf = _pick_dff_tile(d_ff, dff_tile_max)
    nk = d_ff // tf
    kernel = functools.partial(_ffn_block_kernel, eps=eps,
                               compute_dtype=jnp.dtype(compute_dtype))

    ln_a2 = ln_a.reshape(1, D).astype(jnp.float32)
    ln_b2 = ln_b.reshape(1, D).astype(jnp.float32)
    b1_2 = b1.reshape(1, d_ff).astype(jnp.float32)
    b2_2 = b2.reshape(1, D).astype(jnp.float32)

    def call(single_buffer):
        const = {"pipeline_mode": pl.Buffered(1)} if single_buffer else {}
        # d_ff-chunked weights vary along the reduction axis -> double-buffer,
        # unless there is only one chunk (then they are loop-invariant too).
        wconst = const if nk == 1 else {}
        est = (4 * _bytes((tm, D), x.dtype) + _bytes((tm, D), jnp.float32)
               + 2 * (_bytes((tf, D), w1.dtype) + _bytes((D, tf), w2.dtype)
                      + _bytes((1, tf), jnp.float32))
               + 3 * _bytes((1, D), jnp.float32))
        vmem_limit = int(min(max(2 * est + (8 << 20), 32 << 20), 100 << 20))

        return pl.pallas_call(
            kernel,
            out_shape=jax.ShapeDtypeStruct((M, D), x.dtype),
            grid_spec=pltpu.PrefetchScalarGridSpec(
                num_scalar_prefetch=0,
                grid=(M // tm, nk),
                in_specs=[
                    pl.BlockSpec((tm, D), lambda i, k: (i, 0)),          # residual
                    pl.BlockSpec((1, D), lambda i, k: (0, 0), **const),  # ln alpha
                    pl.BlockSpec((1, D), lambda i, k: (0, 0), **const),  # ln bias
                    pl.BlockSpec((tf, D), lambda i, k: (k, 0), **wconst),  # W1 chunk
                    pl.BlockSpec((1, tf), lambda i, k: (0, k), **wconst),  # b1 chunk
                    pl.BlockSpec((D, tf), lambda i, k: (0, k), **wconst),  # W2 chunk
                    pl.BlockSpec((1, D), lambda i, k: (0, 0), **const),  # b2
                ],
                out_specs=pl.BlockSpec((tm, D), lambda i, k: (i, 0)),
                scratch_shapes=[pltpu.VMEM((tm, D), jnp.float32)],
            ),
            compiler_params=pltpu.CompilerParams(
                dimension_semantics=("parallel", "arbitrary"),
                vmem_limit_bytes=vmem_limit),
        )(x2, ln_a2, ln_b2, w1, b1_2, w2, b2_2)

    try:
        out = call(True)
    except Exception:  # pragma: no cover - pl.Buffered(1) unsupported -> default
        out = call(False)
    return out.reshape(B, S, D)


# ------------------------------- decoder block -------------------------------
def decoder_block(x, encoder_output, src_mask, tgt_mask, params, *, h,
                  eps=1e-6, compute_dtype=jnp.bfloat16):
    """Pallas DecoderBlock forward (pre-norm residuals, inference dropout).

    tgt_mask may be the string "causal" (mask generated in-kernel via iota) or
    a torch-style 0/1 mask array; src_mask is a 0/1 mask array (or None).
    compute_dtype controls the MXU operand dtype (accumulation is always f32).
    """
    p = params
    cd = jnp.dtype(compute_dtype)

    def w(name):   # one-time weight cast to the MXU compute dtype
        return p[name].astype(cd)

    x = _attention_residual(x, None, tgt_mask, p['ln0_a'], p['ln0_b'],
                            w('sa_wq'), w('sa_wk'), w('sa_wv'), w('sa_wo'),
                            h=h, eps=eps, compute_dtype=cd)
    x = _attention_residual(x, encoder_output, src_mask, p['ln1_a'], p['ln1_b'],
                            w('ca_wq'), w('ca_wk'), w('ca_wv'), w('ca_wo'),
                            h=h, eps=eps, compute_dtype=cd)
    x = _ffn_residual(x, p['ln2_a'], p['ln2_b'], w('ff_w1'), p['ff_b1'],
                      w('ff_w2'), p['ff_b2'], eps=eps, compute_dtype=cd)
    return x


# ----------------------------- pure-JAX reference -----------------------------
def _ref_layernorm(x, a, b, eps):
    mean = x.mean(-1, keepdims=True)
    var = ((x - mean) ** 2).mean(-1, keepdims=True)
    return a * (x - mean) / jnp.sqrt(var + eps) + b


def _ref_mha(xq, xkv, mask, wq, wk, wv, wo, h):
    B, Sq, D = xq.shape
    Sk = xkv.shape[1]
    dk = D // h
    q = (xq @ wq.T).reshape(B, Sq, h, dk).transpose(0, 2, 1, 3)
    k = (xkv @ wk.T).reshape(B, Sk, h, dk).transpose(0, 2, 1, 3)
    v = (xkv @ wv.T).reshape(B, Sk, h, dk).transpose(0, 2, 1, 3)
    s = (q @ k.transpose(0, 1, 3, 2)) / math.sqrt(dk)
    if mask is not None:
        m = jnp.asarray(mask)
        if m.ndim == 2:
            m = m[None, None]
        elif m.ndim == 3:
            m = m[:, None]
        s = jnp.where(m == 0, -1e30, s)
    w = jax.nn.softmax(s, axis=-1)
    out = (w @ v).transpose(0, 2, 1, 3).reshape(B, Sq, D)
    return out @ wo.T


def decoder_block_ref(x, enc, src_mask, tgt_mask, p, *, h, eps=1e-6):
    ln = _ref_layernorm(x, p['ln0_a'], p['ln0_b'], eps)
    x = x + _ref_mha(ln, ln, tgt_mask,
                     p['sa_wq'], p['sa_wk'], p['sa_wv'], p['sa_wo'], h)
    ln = _ref_layernorm(x, p['ln1_a'], p['ln1_b'], eps)
    x = x + _ref_mha(ln, enc, src_mask,
                     p['ca_wq'], p['ca_wk'], p['ca_wv'], p['ca_wo'], h)
    ln = _ref_layernorm(x, p['ln2_a'], p['ln2_b'], eps)
    x = x + (jnp.maximum(ln @ p['ff_w1'].T + p['ff_b1'], 0.0) @ p['ff_w2'].T
             + p['ff_b2'])
    return x


if __name__ == "__main__":
    batch, seq_tgt, seq_src = 2, 8, 8
    d_model, h, d_ff = 32, 4, 64

    key = jax.random.PRNGKey(0)
    keys = jax.random.split(key, 20)

    def linear_w(k, out_f, in_f):
        bound = 1.0 / math.sqrt(in_f)
        return jax.random.uniform(k, (out_f, in_f), jnp.float32, -bound, bound)

    def linear_b(k, out_f, in_f):
        bound = 1.0 / math.sqrt(in_f)
        return jax.random.uniform(k, (out_f,), jnp.float32, -bound, bound)

    params = {
        'sa_wq': linear_w(keys[0], d_model, d_model),
        'sa_wk': linear_w(keys[1], d_model, d_model),
        'sa_wv': linear_w(keys[2], d_model, d_model),
        'sa_wo': linear_w(keys[3], d_model, d_model),
        'ca_wq': linear_w(keys[4], d_model, d_model),
        'ca_wk': linear_w(keys[5], d_model, d_model),
        'ca_wv': linear_w(keys[6], d_model, d_model),
        'ca_wo': linear_w(keys[7], d_model, d_model),
        'ff_w1': linear_w(keys[8], d_ff, d_model),
        'ff_b1': linear_b(keys[9], d_ff, d_model),
        'ff_w2': linear_w(keys[10], d_model, d_ff),
        'ff_b2': linear_b(keys[11], d_model, d_ff),
        'ln0_a': 1.0 + 0.1 * jax.random.normal(keys[12], (d_model,), jnp.float32),
        'ln0_b': 0.1 * jax.random.normal(keys[13], (d_model,), jnp.float32),
        'ln1_a': 1.0 + 0.1 * jax.random.normal(keys[14], (d_model,), jnp.float32),
        'ln1_b': 0.1 * jax.random.normal(keys[15], (d_model,), jnp.float32),
        'ln2_a': 1.0 + 0.1 * jax.random.normal(keys[16], (d_model,), jnp.float32),
        'ln2_b': 0.1 * jax.random.normal(keys[17], (d_model,), jnp.float32),
    }

    x = jax.random.normal(keys[18], (batch, seq_tgt, d_model), jnp.float32)
    enc = jax.random.normal(keys[19], (batch, seq_src, d_model), jnp.float32)

    # Causal decoder mask (Sq, Sq); padding mask over encoder keys (B, 1, Sk).
    tgt_mask = jnp.tril(jnp.ones((seq_tgt, seq_tgt), jnp.float32))
    src_valid = jnp.array([[1.0] * seq_src,
                           [1.0] * (seq_src - 2) + [0.0, 0.0]], jnp.float32)
    src_mask = src_valid[:, None, :]

    y_ref = decoder_block_ref(x, enc, src_mask, tgt_mask, params, h=h)

    # 1) strict f32 check, causal mask generated in-kernel
    y32 = decoder_block(x, enc, src_mask, "causal", params, h=h,
                        compute_dtype=jnp.float32)
    jax.block_until_ready(y32)
    assert y32.shape == (batch, seq_tgt, d_model)
    assert jnp.allclose(y32, y_ref, atol=1e-3, rtol=1e-3), (
        float(jnp.max(jnp.abs(y32 - y_ref))))

    # 2) strict f32 check with an explicit (Sq, Sk) mask tensor (bias path)
    y32m = decoder_block(x, enc, src_mask, tgt_mask, params, h=h,
                         compute_dtype=jnp.float32)
    jax.block_until_ready(y32m)
    assert jnp.allclose(y32m, y_ref, atol=1e-3, rtol=1e-3), (
        float(jnp.max(jnp.abs(y32m - y_ref))))

    # 3) default production path: bf16 MXU operands, f32 accumulation
    y16 = decoder_block(x, enc, src_mask, "causal", params, h=h)
    jax.block_until_ready(y16)
    assert jnp.allclose(y16, y_ref, atol=1e-1, rtol=1e-1), (
        float(jnp.max(jnp.abs(y16 - y_ref))))

    print("KERNEL_OK")
</pallas_src>

<mosaic_0001>
module attributes {stable_mosaic.version = 11 : i64} {
  func.func @kernel(%arg0: i32, %arg1: i32, %arg2: memref<1x8x32xf32, #tpu.memory_space<vmem>>, %arg3: memref<1x32xf32, #tpu.memory_space<vmem>>, %arg4: memref<1x32xf32, #tpu.memory_space<vmem>>, %arg5: memref<32x32xf32, #tpu.memory_space<vmem>>, %arg6: memref<32x32xf32, #tpu.memory_space<vmem>>, %arg7: memref<32x32xf32, #tpu.memory_space<vmem>>, %arg8: memref<32x32xf32, #tpu.memory_space<vmem>>, %arg9: memref<1x8x32xf32, #tpu.memory_space<vmem>>) attributes {dimension_semantics = [#tpu.dimension_semantics<parallel>, #tpu.dimension_semantics<parallel>], iteration_bounds = array<i64: 2, 1>, scalar_prefetch = 0 : i64, scratch_operands = 0 : i64, tpu.core_type = #tpu.core_type<tc>, window_params = [{transform_indices = @transform_0, window_bounds = array<i64: 1, 8, 32>}, {pipeline_mode = #tpu.pipeline_mode<synchronous>, transform_indices = @transform_1, window_bounds = array<i64: 1, 32>}, {pipeline_mode = #tpu.pipeline_mode<synchronous>, transform_indices = @transform_2, window_bounds = array<i64: 1, 32>}, {pipeline_mode = #tpu.pipeline_mode<synchronous>, transform_indices = @transform_3, window_bounds = array<i64: 32, 32>}, {pipeline_mode = #tpu.pipeline_mode<synchronous>, transform_indices = @transform_4, window_bounds = array<i64: 32, 32>}, {pipeline_mode = #tpu.pipeline_mode<synchronous>, transform_indices = @transform_5, window_bounds = array<i64: 32, 32>}, {pipeline_mode = #tpu.pipeline_mode<synchronous>, transform_indices = @transform_6, window_bounds = array<i64: 32, 32>}, {transform_indices = @transform_7, window_bounds = array<i64: 1, 8, 32>}]} {
    %c0 = arith.constant 0 : index
    %c0_0 = arith.constant 0 : index
    %c0_1 = arith.constant 0 : index
    %0 = vector.load %arg2[%c0, %c0_0, %c0_1] : memref<1x8x32xf32, #tpu.memory_space<vmem>>, vector<1x8x32xf32>
    %1 = vector.shape_cast %0 : vector<1x8x32xf32> to vector<8x32xf32>
    %cst = arith.constant dense<0.000000e+00> : vector<8xf32>
    %2 = vector.multi_reduction <add>, %1, %cst [1] : vector<8x32xf32> to vector<8xf32>
    %3 = vector.shape_cast %2 : vector<8xf32> to vector<8x1xf32>
    %cst_2 = arith.constant 3.200000e+01 : f32
    %4 = vector.broadcast %cst_2 : f32 to vector<8x1xf32>
    %5 = arith.divf %3, %4 : vector<8x1xf32>
    %6 = vector.broadcast %5 : vector<8x1xf32> to vector<8x32xf32>
    %7 = arith.subf %1, %6 : vector<8x32xf32>
    %8 = arith.mulf %7, %7 : vector<8x32xf32>
    %cst_3 = arith.constant dense<0.000000e+00> : vector<8xf32>
    %9 = vector.multi_reduction <add>, %8, %cst_3 [1] : vector<8x32xf32> to vector<8xf32>
    %10 = vector.shape_cast %9 : vector<8xf32> to vector<8x1xf32>
    %cst_4 = arith.constant 3.200000e+01 : f32
    %11 = vector.broadcast %cst_4 : f32 to vector<8x1xf32>
    %12 = arith.divf %10, %11 : vector<8x1xf32>
    %13 = vector.broadcast %5 : vector<8x1xf32> to vector<8x32xf32>
    %14 = arith.subf %1, %13 : vector<8x32xf32>
    %cst_5 = arith.constant 9.99999997E-7 : f32
    %15 = vector.broadcast %cst_5 : f32 to vector<8x1xf32>
    %16 = arith.addf %12, %15 : vector<8x1xf32>
    %17 = math.rsqrt %16 : vector<8x1xf32>
    %18 = vector.broadcast %17 : vector<8x1xf32> to vector<8x32xf32>
    %19 = arith.mulf %14, %18 : vector<8x32xf32>
    %c0_6 = arith.constant 0 : index
    %c0_7 = arith.constant 0 : index
    %20 = vector.load %arg3[%c0_6, %c0_7] : memref<1x32xf32, #tpu.memory_space<vmem>>, vector<1x32xf32>
    %21 = vector.broadcast %20 : vector<1x32xf32> to vector<8x32xf32>
    %22 = arith.mulf %21, %19 : vector<8x32xf32>
    %c0_8 = arith.constant 0 : index
    %c0_9 = arith.constant 0 : index
    %23 = vector.load %arg4[%c0_8, %c0_9] : memref<1x32xf32, #tpu.memory_space<vmem>>, vector<1x32xf32>
    %24 = vector.broadcast %23 : vector<1x32xf32> to vector<8x32xf32>
    %25 = arith.addf %22, %24 : vector<8x32xf32>
    %c0_10 = arith.constant 0 : index
    %c0_11 = arith.constant 0 : index
    %26 = vector.load %arg5[%c0_10, %c0_11] : memref<32x32xf32, #tpu.memory_space<vmem>>, vector<32x32xf32>
    %cst_12 = arith.constant dense<0.000000e+00> : vector<8x32xf32>
    %27 = tpu.matmul %25, %26, %cst_12 {dimension_numbers = #tpu.dot_dimension_numbers<[1], [1], [0], [0], [0, 0, 1, 0], [], []>} : vector<8x32xf32>, vector<32x32xf32>, vector<8x32xf32> -> vector<8x32xf32>
    %c0_13 = arith.constant 0 : index
    %c0_14 = arith.constant 0 : index
    %28 = vector.load %arg6[%c0_13, %c0_14] : memref<32x32xf32, #tpu.memory_space<vmem>>, vector<32x32xf32>
    %cst_15 = arith.constant dense<0.000000e+00> : vector<8x32xf32>
    %29 = tpu.matmul %25, %28, %cst_15 {dimension_numbers = #tpu.dot_dimension_numbers<[1], [1], [0], [0], [0, 0, 1, 0], [], []>} : vector<8x32xf32>, vector<32x32xf32>, vector<8x32xf32> -> vector<8x32xf32>
    %c0_16 = arith.constant 0 : index
    %c0_17 = arith.constant 0 : index
    %30 = vector.load %arg7[%c0_16, %c0_17] : memref<32x32xf32, #tpu.memory_space<vmem>>, vector<32x32xf32>
    %cst_18 = arith.constant dense<0.000000e+00> : vector<8x32xf32>
    %31 = tpu.matmul %25, %30, %cst_18 {dimension_numbers = #tpu.dot_dimension_numbers<[1], [1], [0], [0], [0, 0, 1, 0], [], []>} : vector<8x32xf32>, vector<32x32xf32>, vector<8x32xf32> -> vector<8x32xf32>
    %32 = vector.shape_cast %27 : vector<8x32xf32> to vector<8x4x8xf32>
    %33 = tpu.transpose %32, [1, 0, 2] : vector<8x4x8xf32> -> vector<4x8x8xf32>
    %34 = vector.shape_cast %29 : vector<8x32xf32> to vector<8x4x8xf32>
    %35 = tpu.transpose %34, [1, 0, 2] : vector<8x4x8xf32> -> vector<4x8x8xf32>
    %36 = vector.shape_cast %31 : vector<8x32xf32> to vector<8x4x8xf32>
    %37 = tpu.transpose %36, [1, 0, 2] : vector<8x4x8xf32> -> vector<4x8x8xf32>
    "tpu.trace_start"() <{level = 10 : i32, message = "hqd,hkd->hqk"}> : () -> ()
    %cst_19 = arith.constant dense<0.000000e+00> : vector<4x8x8xf32>
    %38 = tpu.matmul %33, %35, %cst_19 {dimension_numbers = #tpu.dot_dimension_numbers<[2], [2], [1], [1], [0, 0, 0, 1, 1, 1], [0], [0]>} : vector<4x8x8xf32>, vector<4x8x8xf32>, vector<4x8x8xf32> -> vector<4x8x8xf32>
    "tpu.trace_stop"() : () -> ()
    %cst_20 = arith.constant 0.353553385 : f32
    %39 = vector.broadcast %cst_20 : f32 to vector<4x8x8xf32>
    %40 = arith.mulf %38, %39 : vector<4x8x8xf32>
    %c8_i32 = arith.constant 8 : i32
    %41 = arith.muli %arg1, %c8_i32 : i32
    %42 = tpu.iota {dimensions = array<i32: 0>} : vector<8x8xi32>
    %43 = vector.broadcast %41 : i32 to vector<8x8xi32>
    %44 = arith.addi %43, %42 : vector<8x8xi32>
    %45 = tpu.iota {dimensions = array<i32: 1>} : vector<8x8xi32>
    %46 = arith.cmpi sge, %44, %45 : vector<8x8xi32>
    %cst_21 = arith.constant 0.000000e+00 : f32
    %cst_22 = arith.constant -1.000000e+30 : f32
    %47 = vector.broadcast %cst_21 : f32 to vector<8x8xf32>
    %48 = vector.broadcast %cst_22 : f32 to vector<8x8xf32>
    %49 = arith.select %46, %47, %48 : vector<8x8xi1>, vector<8x8xf32>
    %50 = vector.shape_cast %49 : vector<8x8xf32> to vector<1x8x8xf32>
    %51 = vector.broadcast %50 : vector<1x8x8xf32> to vector<4x8x8xf32>
    %52 = arith.addf %40, %51 : vector<4x8x8xf32>
    %cst_23 = arith.constant dense<0xFF800000> : vector<4x8xf32>
    %53 = vector.multi_reduction <maximumf>, %52, %cst_23 [2] : vector<4x8x8xf32> to vector<4x8xf32>
    %54 = vector.shape_cast %53 : vector<4x8xf32> to vector<4x8x1xf32>
    %55 = vector.broadcast %54 : vector<4x8x1xf32> to vector<4x8x8xf32>
    %56 = arith.subf %52, %55 : vector<4x8x8xf32>
    %57 = math.exp %56 : vector<4x8x8xf32>
    %cst_24 = arith.constant dense<0.000000e+00> : vector<4x8xf32>
    %58 = vector.multi_reduction <add>, %57, %cst_24 [2] : vector<4x8x8xf32> to vector<4x8xf32>
    %59 = vector.shape_cast %58 : vector<4x8xf32> to vector<4x8x1xf32>
    %60 = tpu.reciprocal %59 : vector<4x8x1xf32> -> vector<4x8x1xf32>
    %61 = vector.broadcast %60 : vector<4x8x1xf32> to vector<4x8x8xf32>
    %62 = arith.mulf %57, %61 : vector<4x8x8xf32>
    "tpu.trace_start"() <{level = 10 : i32, message = "hqk,hkd->hqd"}> : () -> ()
    %cst_25 = arith.constant dense<0.000000e+00> : vector<4x8x8xf32>
    %63 = tpu.matmul %62, %37, %cst_25 {dimension_numbers = #tpu.dot_dimension_numbers<[2], [1], [1], [2], [0, 0, 0, 1, 1, 2], [0], [0]>} : vector<4x8x8xf32>, vector<4x8x8xf32>, vector<4x8x8xf32> -> vector<4x8x8xf32>
    "tpu.trace_stop"() : () -> ()
    %64 = tpu.transpose %63, [1, 0, 2] : vector<4x8x8xf32> -> vector<8x4x8xf32>
    %65 = vector.shape_cast %64 : vector<8x4x8xf32> to vector<8x32xf32>
    %c0_26 = arith.constant 0 : index
    %c0_27 = arith.constant 0 : index
    %66 = vector.load %arg8[%c0_26, %c0_27] : memref<32x32xf32, #tpu.memory_space<vmem>>, vector<32x32xf32>
    %cst_28 = arith.constant dense<0.000000e+00> : vector<8x32xf32>
    %67 = tpu.matmul %65, %66, %cst_28 {dimension_numbers = #tpu.dot_dimension_numbers<[1], [1], [0], [0], [0, 0, 1, 0], [], []>} : vector<8x32xf32>, vector<32x32xf32>, vector<8x32xf32> -> vector<8x32xf32>
    %68 = arith.addf %1, %67 : vector<8x32xf32>
    %c0_29 = arith.constant 0 : index
    %c0_30 = arith.constant 0 : index
    %c0_31 = arith.constant 0 : index
    %69 = vector.load %arg9[%c0_29, %c0_30, %c0_31] : memref<1x8x32xf32, #tpu.memory_space<vmem>>, vector<1x8x32xf32>
    %70 = vector.shape_cast %69 : vector<1x8x32xf32> to vector<8x32xf32>
    %71 = vector.shape_cast %68 : vector<8x32xf32> to vector<1x8x32xf32>
    tpu.vector_store %arg9[%c0_29, %c0_30, %c0_31], %71 {strides = array<i32>} : memref<1x8x32xf32, #tpu.memory_space<vmem>>, vector<1x8x32xf32>,
    return
  }
  func.func @transform_0(%arg0: i32, %arg1: i32) -> (i32, i32, i32) {
    %c0_i32 = arith.constant 0 : i32
    %c0_i32_0 = arith.constant 0 : i32
    return %arg0, %arg1, %c0_i32 : i32, i32, i32
  }
  func.func @transform_1(%arg0: i32, %arg1: i32) -> (i32, i32) {
    %c0_i32 = arith.constant 0 : i32
    %c0_i32_0 = arith.constant 0 : i32
    %c0_i32_1 = arith.constant 0 : i32
    return %c0_i32, %c0_i32_0 : i32, i32
  }
  func.func @transform_2(%arg0: i32, %arg1: i32) -> (i32, i32) {
    %c0_i32 = arith.constant 0 : i32
    %c0_i32_0 = arith.constant 0 : i32
    %c0_i32_1 = arith.constant 0 : i32
    return %c0_i32, %c0_i32_0 : i32, i32
  }
  func.func @transform_3(%arg0: i32, %arg1: i32) -> (i32, i32) {
    %c0_i32 = arith.constant 0 : i32
    %c0_i32_0 = arith.constant 0 : i32
    %c0_i32_1 = arith.constant 0 : i32
    return %c0_i32, %c0_i32_0 : i32, i32
  }
  func.func @transform_4(%arg0: i32, %arg1: i32) -> (i32, i32) {
    %c0_i32 = arith.constant 0 : i32
    %c0_i32_0 = arith.constant 0 : i32
    %c0_i32_1 = arith.constant 0 : i32
    return %c0_i32, %c0_i32_0 : i32, i32
  }
  func.func @transform_5(%arg0: i32, %arg1: i32) -> (i32, i32) {
    %c0_i32 = arith.constant 0 : i32
    %c0_i32_0 = arith.constant 0 : i32
    %c0_i32_1 = arith.constant 0 : i32
    return %c0_i32, %c0_i32_0 : i32, i32
  }
  func.func @transform_6(%arg0: i32, %arg1: i32) -> (i32, i32) {
    %c0_i32 = arith.constant 0 : i32
    %c0_i32_0 = arith.constant 0 : i32
    %c0_i32_1 = arith.constant 0 : i32
    return %c0_i32, %c0_i32_0 : i32, i32
  }
  func.func @transform_7(%arg0: i32, %arg1: i32) -> (i32, i32, i32) {
    %c0_i32 = arith.constant 0 : i32
    %c0_i32_0 = arith.constant 0 : i32
    return %arg0, %arg1, %c0_i32 : i32, i32, i32
  }
}

module attributes {stable_mosaic.version = 11 : i64} {
  func.func @kernel(%arg0: i32, %arg1: i32, %arg2: memref<1x8x32xf32, #tpu.memory_space<vmem>>, %arg3: memref<1x32xf32, #tpu.memory_space<vmem>>, %arg4: memref<1x32xf32, #tpu.memory_space<vmem>>, %arg5: memref<32x32xf32, #tpu.memory_space<vmem>>, %arg6: memref<32x32xf32, #tpu.memory_space<vmem>>, %arg7: memref<32x32xf32, #tpu.memory_space<vmem>>, %arg8: memref<32x32xf32, #tpu.memory_space<vmem>>, %arg9: memref<1x8x32xf32, #tpu.memory_space<vmem>>) attributes {dimension_semantics = [#tpu.dimension_semantics<parallel>, #tpu.dimension_semantics<parallel>], iteration_bounds = array<i64: 2, 1>, scalar_prefetch = 0 : i64, scratch_operands = 0 : i64, tpu.core_type = #tpu.core_type<tc>, window_params = [{transform_indices = @transform_0, window_bounds = array<i64: 1, 8, 32>}, {pipeline_mode = #tpu.pipeline_mode<synchronous>, transform_indices = @transform_1, window_bounds = array<i64: 1, 32>}, {pipeline_mode = #tpu.pipeline_mode<synchronous>, transform_indices = @transform_2, window_bounds = array<i64: 1, 32>}, {pipeline_mode = #tpu.pipeline_mode<synchronous>, transform_indices = @transform_3, window_bounds = array<i64: 32, 32>}, {pipeline_mode = #tpu.pipeline_mode<synchronous>, transform_indices = @transform_4, window_bounds = array<i64: 32, 32>}, {pipeline_mode = #tpu.pipeline_mode<synchronous>, transform_indices = @transform_5, window_bounds = array<i64: 32, 32>}, {pipeline_mode = #tpu.pipeline_mode<synchronous>, transform_indices = @transform_6, window_bounds = array<i64: 32, 32>}, {transform_indices = @transform_7, window_bounds = array<i64: 1, 8, 32>}]} {
    %c0 = arith.constant 0 : index
    %c0_0 = arith.constant 0 : index
    %c0_1 = arith.constant 0 : index
    %0 = vector.load %arg2[%c0, %c0_0, %c0_1] : memref<1x8x32xf32, #tpu.memory_space<vmem>>, vector<1x8x32xf32>
    %1 = vector.shape_cast %0 : vector<1x8x32xf32> to vector<8x32xf32>
    %cst = arith.constant dense<0.000000e+00> : vector<8xf32>
    %2 = vector.multi_reduction <add>, %1, %cst [1] : vector<8x32xf32> to vector<8xf32>
    %3 = vector.shape_cast %2 : vector<8xf32> to vector<8x1xf32>
    %cst_2 = arith.constant 3.200000e+01 : f32
    %4 = vector.broadcast %cst_2 : f32 to vector<8x1xf32>
    %5 = arith.divf %3, %4 : vector<8x1xf32>
    %6 = vector.broadcast %5 : vector<8x1xf32> to vector<8x32xf32>
    %7 = arith.subf %1, %6 : vector<8x32xf32>
    %8 = arith.mulf %7, %7 : vector<8x32xf32>
    %cst_3 = arith.constant dense<0.000000e+00> : vector<8xf32>
    %9 = vector.multi_reduction <add>, %8, %cst_3 [1] : vector<8x32xf32> to vector<8xf32>
    %10 = vector.shape_cast %9 : vector<8xf32> to vector<8x1xf32>
    %cst_4 = arith.constant 3.200000e+01 : f32
    %11 = vector.broadcast %cst_4 : f32 to vector<8x1xf32>
    %12 = arith.divf %10, %11 : vector<8x1xf32>
    %13 = vector.broadcast %5 : vector<8x1xf32> to vector<8x32xf32>
    %14 = arith.subf %1, %13 : vector<8x32xf32>
    %cst_5 = arith.constant 9.99999997E-7 : f32
    %15 = vector.broadcast %cst_5 : f32 to vector<8x1xf32>
    %16 = arith.addf %12, %15 : vector<8x1xf32>
    %17 = math.rsqrt %16 : vector<8x1xf32>
    %18 = vector.broadcast %17 : vector<8x1xf32> to vector<8x32xf32>
    %19 = arith.mulf %14, %18 : vector<8x32xf32>
    %c0_6 = arith.constant 0 : index
    %c0_7 = arith.constant 0 : index
    %20 = vector.load %arg3[%c0_6, %c0_7] : memref<1x32xf32, #tpu.memory_space<vmem>>, vector<1x32xf32>
    %21 = vector.broadcast %20 : vector<1x32xf32> to vector<8x32xf32>
    %22 = arith.mulf %21, %19 : vector<8x32xf32>
    %c0_8 = arith.constant 0 : index
    %c0_9 = arith.constant 0 : index
    %23 = vector.load %arg4[%c0_8, %c0_9] : memref<1x32xf32, #tpu.memory_space<vmem>>, vector<1x32xf32>
    %24 = vector.broadcast %23 : vector<1x32xf32> to vector<8x32xf32>
    %25 = arith.addf %22, %24 : vector<8x32xf32>
    %c0_10 = arith.constant 0 : index
    %c0_11 = arith.constant 0 : index
    %26 = vector.load %arg5[%c0_10, %c0_11] : memref<32x32xf32, #tpu.memory_space<vmem>>, vector<32x32xf32>
    %cst_12 = arith.constant dense<0.000000e+00> : vector<8x32xf32>
    %27 = tpu.matmul %25, %26, %cst_12 {dimension_numbers = #tpu.dot_dimension_numbers<[1], [1], [0], [0], [0, 0, 1, 0], [], []>} : vector<8x32xf32>, vector<32x32xf32>, vector<8x32xf32> -> vector<8x32xf32>
    %c0_13 = arith.constant 0 : index
    %c0_14 = arith.constant 0 : index
    %28 = vector.load %arg6[%c0_13, %c0_14] : memref<32x32xf32, #tpu.memory_space<vmem>>, vector<32x32xf32>
    %cst_15 = arith.constant dense<0.000000e+00> : vector<8x32xf32>
    %29 = tpu.matmul %25, %28, %cst_15 {dimension_numbers = #tpu.dot_dimension_numbers<[1], [1], [0], [0], [0, 0, 1, 0], [], []>} : vector<8x32xf32>, vector<32x32xf32>, vector<8x32xf32> -> vector<8x32xf32>
    %c0_16 = arith.constant 0 : index
    %c0_17 = arith.constant 0 : index
    %30 = vector.load %arg7[%c0_16, %c0_17] : memref<32x32xf32, #tpu.memory_space<vmem>>, vector<32x32xf32>
    %cst_18 = arith.constant dense<0.000000e+00> : vector<8x32xf32>
    %31 = tpu.matmul %25, %30, %cst_18 {dimension_numbers = #tpu.dot_dimension_numbers<[1], [1], [0], [0], [0, 0, 1, 0], [], []>} : vector<8x32xf32>, vector<32x32xf32>, vector<8x32xf32> -> vector<8x32xf32>
    %32 = vector.shape_cast %27 : vector<8x32xf32> to vector<8x4x8xf32>
    %33 = tpu.transpose %32, [1, 0, 2] : vector<8x4x8xf32> -> vector<4x8x8xf32>
    %34 = vector.shape_cast %29 : vector<8x32xf32> to vector<8x4x8xf32>
    %35 = tpu.transpose %34, [1, 0, 2] : vector<8x4x8xf32> -> vector<4x8x8xf32>
    %36 = vector.shape_cast %31 : vector<8x32xf32> to vector<8x4x8xf32>
    %37 = tpu.transpose %36, [1, 0, 2] : vector<8x4x8xf32> -> vector<4x8x8xf32>
    "tpu.trace_start"() <{level = 10 : i32, message = "hqd,hkd->hqk"}> : () -> ()
    %cst_19 = arith.constant dense<0.000000e+00> : vector<4x8x8xf32>
    %38 = tpu.matmul %33, %35, %cst_19 {dimension_numbers = #tpu.dot_dimension_numbers<[2], [2], [1], [1], [0, 0, 0, 1, 1, 1], [0], [0]>} : vector<4x8x8xf32>, vector<4x8x8xf32>, vector<4x8x8xf32> -> vector<4x8x8xf32>
    "tpu.trace_stop"() : () -> ()
    %cst_20 = arith.constant 0.353553385 : f32
    %39 = vector.broadcast %cst_20 : f32 to vector<4x8x8xf32>
    %40 = arith.mulf %38, %39 : vector<4x8x8xf32>
    %c8_i32 = arith.constant 8 : i32
    %41 = arith.muli %arg1, %c8_i32 : i32
    %42 = tpu.iota {dimensions = array<i32: 0>} : vector<8x8xi32>
    %43 = vector.broadcast %41 : i32 to vector<8x8xi32>
    %44 = arith.addi %43, %42 : vector<8x8xi32>
    %45 = tpu.iota {dimensions = array<i32: 1>} : vector<8x8xi32>
    %46 = arith.cmpi sge, %44, %45 : vector<8x8xi32>
    %cst_21 = arith.constant 0.000000e+00 : f32
    %cst_22 = arith.constant -1.000000e+30 : f32
    %47 = vector.broadcast %cst_21 : f32 to vector<8x8xf32>
    %48 = vector.broadcast %cst_22 : f32 to vector<8x8xf32>
    %49 = arith.select %46, %47, %48 : vector<8x8xi1>, vector<8x8xf32>
    %50 = vector.shape_cast %49 : vector<8x8xf32> to vector<1x8x8xf32>
    %51 = vector.broadcast %50 : vector<1x8x8xf32> to vector<4x8x8xf32>
    %52 = arith.addf %40, %51 : vector<4x8x8xf32>
    %cst_23 = arith.constant dense<0xFF800000> : vector<4x8xf32>
    %53 = vector.multi_reduction <maximumf>, %52, %cst_23 [2] : vector<4x8x8xf32> to vector<4x8xf32>
    %54 = vector.shape_cast %53 : vector<4x8xf32> to vector<4x8x1xf32>
    %55 = vector.broadcast %54 : vector<4x8x1xf32> to vector<4x8x8xf32>
    %56 = arith.subf %52, %55 : vector<4x8x8xf32>
    %57 = math.exp %56 : vector<4x8x8xf32>
    %cst_24 = arith.constant dense<0.000000e+00> : vector<4x8xf32>
    %58 = vector.multi_reduction <add>, %57, %cst_24 [2] : vector<4x8x8xf32> to vector<4x8xf32>
    %59 = vector.shape_cast %58 : vector<4x8xf32> to vector<4x8x1xf32>
    %60 = tpu.reciprocal %59 : vector<4x8x1xf32> -> vector<4x8x1xf32>
    %61 = vector.broadcast %60 : vector<4x8x1xf32> to vector<4x8x8xf32>
    %62 = arith.mulf %57, %61 : vector<4x8x8xf32>
    "tpu.trace_start"() <{level = 10 : i32, message = "hqk,hkd->hqd"}> : () -> ()
    %cst_25 = arith.constant dense<0.000000e+00> : vector<4x8x8xf32>
    %63 = tpu.matmul %62, %37, %cst_25 {dimension_numbers = #tpu.dot_dimension_numbers<[2], [1], [1], [2], [0, 0, 0, 1, 1, 2], [0], [0]>} : vector<4x8x8xf32>, vector<4x8x8xf32>, vector<4x8x8xf32> -> vector<4x8x8xf32>
    "tpu.trace_stop"() : () -> ()
    %64 = tpu.transpose %63, [1, 0, 2] : vector<4x8x8xf32> -> vector<8x4x8xf32>
    %65 = vector.shape_cast %64 : vector<8x4x8xf32> to vector<8x32xf32>
    %c0_26 = arith.constant 0 : index
    %c0_27 = arith.constant 0 : index
    %66 = vector.load %arg8[%c0_26, %c0_27] : memref<32x32xf32, #tpu.memory_space<vmem>>, vector<32x32xf32>
    %cst_28 = arith.constant dense<0.000000e+00> : vector<8x32xf32>
    %67 = tpu.matmul %65, %66, %cst_28 {dimension_numbers = #tpu.dot_dimension_numbers<[1], [1], [0], [0], [0, 0, 1, 0], [], []>} : vector<8x32xf32>, vector<32x32xf32>, vector<8x32xf32> -> vector<8x32xf32>
    %68 = arith.addf %1, %67 : vector<8x32xf32>
    %c0_29 = arith.constant 0 : index
    %c0_30 = arith.constant 0 : index
    %c0_31 = arith.constant 0 : index
    %69 = vector.load %arg9[%c0_29, %c0_30, %c0_31] : memref<1x8x32xf32, #tpu.memory_space<vmem>>, vector<1x8x32xf32>
    %70 = vector.shape_cast %69 : vector<1x8x32xf32> to vector<8x32xf32>
    %71 = vector.shape_cast %68 : vector<8x32xf32> to vector<1x8x32xf32>
    tpu.vector_store %arg9[%c0_29, %c0_30, %c0_31], %71 {strides = array<i32>} : memref<1x8x32xf32, #tpu.memory_space<vmem>>, vector<1x8x32xf32>,
    return
  }
  func.func @transform_0(%arg0: i32, %arg1: i32) -> (i32, i32, i32) {
    %c0_i32 = arith.constant 0 : i32
    %c0_i32_0 = arith.constant 0 : i32
    return %arg0, %arg1, %c0_i32 : i32, i32, i32
  }
  func.func @transform_1(%arg0: i32, %arg1: i32) -> (i32, i32) {
    %c0_i32 = arith.constant 0 : i32
    %c0_i32_0 = arith.constant 0 : i32
    %c0_i32_1 = arith.constant 0 : i32
    return %c0_i32, %c0_i32_0 : i32, i32
  }
  func.func @transform_2(%arg0: i32, %arg1: i32) -> (i32, i32) {
    %c0_i32 = arith.constant 0 : i32
    %c0_i32_0 = arith.constant 0 : i32
    %c0_i32_1 = arith.constant 0 : i32
    return %c0_i32, %c0_i32_0 : i32, i32
  }
  func.func @transform_3(%arg0: i32, %arg1: i32) -> (i32, i32) {
    %c0_i32 = arith.constant 0 : i32
    %c0_i32_0 = arith.constant 0 : i32
    %c0_i32_1 = arith.constant 0 : i32
    return %c0_i32, %c0_i32_0 : i32, i32
  }
  func.func @transform_4(%arg0: i32, %arg1: i32) -> (i32, i32) {
    %c0_i32 = arith.constant 0 : i32
    %c0_i32_0 = arith.constant 0 : i32
    %c0_i32_1 = arith.constant 0 : i32
    return %c0_i32, %c0_i32_0 : i32, i32
  }
  func.func @transform_5(%arg0: i32, %arg1: i32) -> (i32, i32) {
    %c0_i32 = arith.constant 0 : i32
    %c0_i32_0 = arith.constant 0 : i32
    %c0_i32_1 = arith.constant 0 : i32
    return %c0_i32, %c0_i32_0 : i32, i32
  }
  func.func @transform_6(%arg0: i32, %arg1: i32) -> (i32, i32) {
    %c0_i32 = arith.constant 0 : i32
    %c0_i32_0 = arith.constant 0 : i32
    %c0_i32_1 = arith.constant 0 : i32
    return %c0_i32, %c0_i32_0 : i32, i32
  }
  func.func @transform_7(%arg0: i32, %arg1: i32) -> (i32, i32, i32) {
    %c0_i32 = arith.constant 0 : i32
    %c0_i32_0 = arith.constant 0 : i32
    return %arg0, %arg1, %c0_i32 : i32, i32, i32
  }
}

</mosaic_0001>

<llo_original>
// kernel: tpu_custom_call.1
$region0: #{tpu_custom_call.1}
  #allocation0 [shape = 'u32[]', space=smem, size = 0x4, offset = 0x4, fixed_abs, tag = 'smem constant byte address 0x4 - core index']
  #allocation1 [shape = 'u32[72,128]{1,0:T(1,128)}', space=vmem, size = 0x9000, scoped, tag = 'internal scratch']
  %s0 = inlined_call_operand.hbm [shape: f32[2,8,32], index: 0, kind: input, shape index: {}]
  %s1 = inlined_call_operand.hbm [shape: f32[1,32], index: 1, kind: input, shape index: {}]
  %s2 = inlined_call_operand.vmem [shape: f32[1,32], index: 2, kind: input, shape index: {}]
  %s3 = inlined_call_operand.hbm [shape: f32[32,32], index: 3, kind: input, shape index: {}]
  %s4 = inlined_call_operand.hbm [shape: f32[32,32], index: 4, kind: input, shape index: {}]
  %s5 = inlined_call_operand.hbm [shape: f32[32,32], index: 5, kind: input, shape index: {}]
  %s6 = inlined_call_operand.hbm [shape: f32[32,32], index: 6, kind: input, shape index: {}]
  %s7 = inlined_call_operand.hbm [shape: f32[2,8,32], index: 7, kind: output, shape index: {}]
  %s8 = sld [smem:[#allocation0]]
  $region85: #{tpu_custom_call.1} parent=0
    _
  %s10 = ssub.s32 1, %s8
  %s11 = scalar_select 0, %s10, %s8
  $region1: #{tpu_custom_call.1} parent=0
    #allocation2 [shape = 'u8[8192]{0}', space=vmem, size = 0x2000, scoped, tag = 'input window, operand 0']
    #allocation3 [shape = 's32[2]{0}', space=sflag, size = 0x8, scoped, tag = 'scoped memory for tpu_custom_call.1']
    #allocation4 [shape = 's32[2]{0}', space=sflag, size = 0x8, scoped, tag = 'scoped memory for tpu_custom_call.1']
    #allocation5 [shape = 'u8[512]{0}', space=vmem, size = 0x400, scoped, tag = 'input window, operand 1, single buffered']
    #allocation6 [shape = 's32[1]{0}', space=sflag, size = 0x4, scoped, tag = 'scoped memory for tpu_custom_call.1']
    #allocation7 [shape = 'u8[16384]{0}', space=vmem, size = 0x4000, scoped, tag = 'input window, operand 3, single buffered']
    #allocation8 [shape = 'u8[16384]{0}', space=vmem, size = 0x4000, scoped, tag = 'input window, operand 4, single buffered']
    #allocation9 [shape = 's32[1]{0}', space=sflag, size = 0x4, scoped, tag = 'scoped memory for tpu_custom_call.1']
    #allocation10 [shape = 'u8[16384]{0}', space=vmem, size = 0x4000, scoped, tag = 'input window, operand 5, single buffered']
    #allocation11 [shape = 'u8[16384]{0}', space=vmem, size = 0x4000, scoped, tag = 'input window, operand 6, single buffered']
    #allocation12 [shape = 's32[1]{0}', space=sflag, size = 0x4, scoped, tag = 'scoped memory for tpu_custom_call.1']
    #allocation13 [shape = 'u8[8192]{0}', space=vmem, size = 0x2000, scoped, tag = 'output window, operand 0']
    %12 = vsyncpa [#allocation3], 0
    %s13 = scalar_lea.sflag [#allocation3], 1
    %14 = vsyncpa %s13, 0
    %15 = vsyncpa [#allocation6], 0
    %16 = vsyncpa [#allocation9], 0
    %17 = vsyncpa [#allocation12], 0
    %18 = vsyncpa [#allocation4], 0
    %s19 = scalar_lea.sflag [#allocation4], 1
    %20 = vsyncpa %s19, 0
    loop: start=0, step=1, limit=4
    $region2: #{tpu_custom_call.1} parent=1 // loop_pre_header
      _
    $region3: #{tpu_custom_call.1} parent=1 // loop_header
      %s22 = sphi 0, %s26
      %p23 = scmp.ge.s32.totalorder %s22, 4
      %s29 = sphi 0, %s41
      %s30 = sphi 0, %s37
      %s31 = sphi 0, %s29
      %s32 = sphi 0, %s30
      %s33 = sphi 0, %s31
      %s34 = sphi 0, %s32
      %s46 = sphi 0, %s48
      %s49 = sphi 0, %s46
      %s50 = sphi 0, %s49
      %s66 = sphi 0, %s50
      %s70 = sphi 0, %s70
      %s72 = sphi 0, %s70
      %s73 = sphi 0, %s72
      %s87 = sphi 0, %s73
      %s91 = sphi 0, %s91
      %s93 = sphi 0, %s91
      %s94 = sphi 0, %s93
      %s108 = sphi 0, %s94
      %s112 = sphi 0, %s112
      %s114 = sphi 0, %s112
      %s115 = sphi 0, %s114
      %s129 = sphi 0, %s115
      %s133 = sphi 0, %s133
      %s135 = sphi 0, %s133
      %s136 = sphi 0, %s135
      %s150 = sphi 0, %s136
      %s154 = sphi 0, %s154
      %s156 = sphi 0, %s154
      %s157 = sphi 0, %s156
      %s171 = sphi 0, %s157
      %s175 = sphi 0, %s175
      %s177 = sphi 0, %s175
      %s178 = sphi 0, %s177
      %s192 = sphi 0, %s178
      %s200 = sphi 0, %s202
      %s203 = sphi 0, %s200
      %s204 = sphi 0, %s203
      %s220 = sphi 0, %s204
    $region4: #{tpu_custom_call.1} parent=1 // loop_header_branch
      %25 = sbr.rel (%p23) target = $region8
    $region5: #{tpu_custom_call.1} parent=1 // loop_body
      %s27 = ssub.s32 %s22, 1
      %s28 = ssub.s32 %s22, 2
      %s35 = sadd.s32 1, %s30
      %p36 = scmp.ge.s32.totalorder %s35, 1
      %s37 = scalar_select %p36, 0, %s35
      %s38 = sadd.s32 1, %s29
      %s39 = scalar_select %p36, %s38, %s29
      %p40 = scmp.ge.s32.totalorder %s39, 2
      %s41 = scalar_select %p40, 0, %s39
      %s42 = ssub.s32 %s29, %s41
      %s43 = ssub.s32 %s30, %s37
      %s44 = sor.u32 %s42, %s43
      %p45 = scmp.eq.s32.totalorder %s44, 0
      %s47 = sadd.s32 %s46, 1
      %s48 = scalar_select %p45, %s46, %s47
      %p51 = pneg %p45
      %p52 = scmp.eq.s32.totalorder %s22, 1
      %p53 = por %p51, %p52
      %p54 = scmp.ne.s32.totalorder %s46, %s49
      %p55 = scmp.eq.s32.totalorder %s22, 0
      %p56 = por %p54, %p55
      %p57 = scmp.ne.s32.totalorder %s46, %s49
      %p58 = scmp.eq.s32.totalorder %s27, 1
      %p59 = por %p57, %p58
      %p60 = scmp.ne.s32.totalorder %s49, %s50
      %p61 = scmp.eq.s32.totalorder %s27, 0
      %p62 = por %p60, %p61
      %p63 = scmp.ne.s32.totalorder %s49, %s50
      %p64 = scmp.eq.s32.totalorder %s28, 1
      %p65 = por %p63, %p64
      %p67 = scmp.ne.s32.totalorder %s50, %s66
      %p68 = scmp.eq.s32.totalorder %s28, 0
      %p69 = por %p67, %p68
      %s71 = sadd.s32 %s70, 1
      %p74 = scmp.eq.s32.totalorder %s22, 1
      %p75 = scmp.ne.s32.totalorder %s70, %s72
      %p76 = scmp.eq.s32.totalorder %s22, 0
      %p77 = por %p75, %p76
      %p78 = scmp.ne.s32.totalorder %s70, %s72
      %p79 = scmp.eq.s32.totalorder %s27, 1
      %p80 = por %p78, %p79
      %p81 = scmp.ne.s32.totalorder %s72, %s73
      %p82 = scmp.eq.s32.totalorder %s27, 0
      %p83 = por %p81, %p82
      %p84 = scmp.ne.s32.totalorder %s72, %s73
      %p85 = scmp.eq.s32.totalorder %s28, 1
      %p86 = por %p84, %p85
      %p88 = scmp.ne.s32.totalorder %s73, %s87
      %p89 = scmp.eq.s32.totalorder %s28, 0
      %p90 = por %p88, %p89
      %s92 = sadd.s32 %s91, 1
      %p95 = scmp.eq.s32.totalorder %s22, 1
      %p96 = scmp.ne.s32.totalorder %s91, %s93
      %p97 = scmp.eq.s32.totalorder %s22, 0
      %p98 = por %p96, %p97
      %p99 = scmp.ne.s32.totalorder %s91, %s93
      %p100 = scmp.eq.s32.totalorder %s27, 1
      %p101 = por %p99, %p100
      %p102 = scmp.ne.s32.totalorder %s93, %s94
      %p103 = scmp.eq.s32.totalorder %s27, 0
      %p104 = por %p102, %p103
      %p105 = scmp.ne.s32.totalorder %s93, %s94
      %p106 = scmp.eq.s32.totalorder %s28, 1
      %p107 = por %p105, %p106
      %p109 = scmp.ne.s32.totalorder %s94, %s108
      %p110 = scmp.eq.s32.totalorder %s28, 0
      %p111 = por %p109, %p110
      %s113 = sadd.s32 %s112, 1
      %p116 = scmp.eq.s32.totalorder %s22, 1
      %p117 = scmp.ne.s32.totalorder %s112, %s114
      %p118 = scmp.eq.s32.totalorder %s22, 0
      %p119 = por %p117, %p118
      %p120 = scmp.ne.s32.totalorder %s112, %s114
      %p121 = scmp.eq.s32.totalorder %s27, 1
      %p122 = por %p120, %p121
      %p123 = scmp.ne.s32.totalorder %s114, %s115
      %p124 = scmp.eq.s32.totalorder %s27, 0
      %p125 = por %p123, %p124
      %p126 = scmp.ne.s32.totalorder %s114, %s115
      %p127 = scmp.eq.s32.totalorder %s28, 1
      %p128 = por %p126, %p127
      %p130 = scmp.ne.s32.totalorder %s115, %s129
      %p131 = scmp.eq.s32.totalorder %s28, 0
      %p132 = por %p130, %p131
      %s134 = sadd.s32 %s133, 1
      %p137 = scmp.eq.s32.totalorder %s22, 1
      %p138 = scmp.ne.s32.totalorder %s133, %s135
      %p139 = scmp.eq.s32.totalorder %s22, 0
      %p140 = por %p138, %p139
      %p141 = scmp.ne.s32.totalorder %s133, %s135
      %p142 = scmp.eq.s32.totalorder %s27, 1
      %p143 = por %p141, %p142
      %p144 = scmp.ne.s32.totalorder %s135, %s136
      %p145 = scmp.eq.s32.totalorder %s27, 0
      %p146 = por %p144, %p145
      %p147 = scmp.ne.s32.totalorder %s135, %s136
      %p148 = scmp.eq.s32.totalorder %s28, 1
      %p149 = por %p147, %p148
      %p151 = scmp.ne.s32.totalorder %s136, %s150
      %p152 = scmp.eq.s32.totalorder %s28, 0
      %p153 = por %p151, %p152
      %s155 = sadd.s32 %s154, 1
      %p158 = scmp.eq.s32.totalorder %s22, 1
      %p159 = scmp.ne.s32.totalorder %s154, %s156
      %p160 = scmp.eq.s32.totalorder %s22, 0
      %p161 = por %p159, %p160
      %p162 = scmp.ne.s32.totalorder %s154, %s156
      %p163 = scmp.eq.s32.totalorder %s27, 1
      %p164 = por %p162, %p163
      %p165 = scmp.ne.s32.totalorder %s156, %s157
      %p166 = scmp.eq.s32.totalorder %s27, 0
      %p167 = por %p165, %p166
      %p168 = scmp.ne.s32.totalorder %s156, %s157
      %p169 = scmp.eq.s32.totalorder %s28, 1
      %p170 = por %p168, %p169
      %p172 = scmp.ne.s32.totalorder %s157, %s171
      %p173 = scmp.eq.s32.totalorder %s28, 0
      %p174 = por %p172, %p173
      %s176 = sadd.s32 %s175, 1
      %p179 = scmp.eq.s32.totalorder %s22, 1
      %p180 = scmp.ne.s32.totalorder %s175, %s177
      %p181 = scmp.eq.s32.totalorder %s22, 0
      %p182 = por %p180, %p181
      %p183 = scmp.ne.s32.totalorder %s175, %s177
      %p184 = scmp.eq.s32.totalorder %s27, 1
      %p185 = por %p183, %p184
      %p186 = scmp.ne.s32.totalorder %s177, %s178
      %p187 = scmp.eq.s32.totalorder %s27, 0
      %p188 = por %p186, %p187
      %p189 = scmp.ne.s32.totalorder %s177, %s178
      %p190 = scmp.eq.s32.totalorder %s28, 1
      %p191 = por %p189, %p190
      %p193 = scmp.ne.s32.totalorder %s178, %s192
      %p194 = scmp.eq.s32.totalorder %s28, 0
      %p195 = por %p193, %p194
      %s196 = ssub.s32 %s29, %s41
      %s197 = ssub.s32 %s30, %s37
      %s198 = sor.u32 %s196, %s197
      %p199 = scmp.eq.s32.totalorder %s198, 0
      %s201 = sadd.s32 %s200, 1
      %s202 = scalar_select %p199, %s200, %s201
      %p205 = pneg %p199
      %p206 = scmp.eq.s32.totalorder %s22, 1
      %p207 = por %p205, %p206
      %p208 = scmp.ne.s32.totalorder %s200, %s203
      %p209 = scmp.eq.s32.totalorder %s22, 0
      %p210 = por %p208, %p209
      %p211 = scmp.ne.s32.totalorder %s200, %s203
      %p212 = scmp.eq.s32.totalorder %s27, 1
      %p213 = por %p211, %p212
      %p214 = scmp.ne.s32.totalorder %s203, %s204
      %p215 = scmp.eq.s32.totalorder %s27, 0
      %p216 = por %p214, %p215
      %p217 = scmp.ne.s32.totalorder %s203, %s204
      %p218 = scmp.eq.s32.totalorder %s28, 1
      %p219 = por %p217, %p218
      %p221 = scmp.ne.s32.totalorder %s204, %s220
      %p222 = scmp.eq.s32.totalorder %s28, 0
      %p223 = por %p221, %p222
      %p224 = scmp.le.s32.totalorder 1, %s22
      %p225 = scmp.lt.s32.totalorder %s22, 3
      %p226 = pnand %p224, %p225
      %p227 = pneg %p226
      // Predicated region
      $region9: #{tpu_custom_call.1} parent=5 // pred_check
        _
      $region10: #{tpu_custom_call.1} parent=5 // pred_check_branch
        %229 = sbr.rel (%p226) target = $region12
      $region11: #{tpu_custom_call.1} parent=5 // pred_region
        %s230 = ssub.s32 %s22, 1
        // Predicated region
        $region13: #{tpu_custom_call.1} parent=11 // pred_check
          %p231 = pneg %p83
        $region14: #{tpu_custom_call.1} parent=11 // pred_check_branch
          %233 = sbr.rel (%p231) target = $region16
        $region15: #{tpu_custom_call.1} parent=11 // pred_region
          %235 = vsyncadd [#allocation6], 0
          %s237 = sshll.u32 %s1, 4
          %s238 = int_to_ptr.hbm [resolvable:$true] %s237
          %s239 = sshll.u32 [#allocation5], 4
          %s240 = int_to_ptr.vmem [resolvable:$true] %s239
          %242 = dma.hbm_to_vmem [thread:$0]  %s238, 16, %s240, [#allocation6]
        $region16: #{tpu_custom_call.1} parent=11 // pred_fallthru
          _
        // Predicated region
        $region17: #{tpu_custom_call.1} parent=11 // pred_check
          %p243 = pneg %p104
        $region18: #{tpu_custom_call.1} parent=11 // pred_check_branch
          %245 = sbr.rel (%p243) target = $region20
        $region19: #{tpu_custom_call.1} parent=11 // pred_region
          _
        $region20: #{tpu_custom_call.1} parent=11 // pred_fallthru
          _
        // Predicated region
        $region21: #{tpu_custom_call.1} parent=11 // pred_check
          %p246 = pneg %p125
        $region22: #{tpu_custom_call.1} parent=11 // pred_check_branch
          %248 = sbr.rel (%p246) target = $region24
        $region23: #{tpu_custom_call.1} parent=11 // pred_region
          %250 = vsyncadd [#allocation6], 0
          %s251 = sshll.u32 %s3, 4
          %s252 = int_to_ptr.hbm [resolvable:$true] %s251
          %s253 = sshll.u32 [#allocation7], 4
          %s254 = int_to_ptr.vmem [resolvable:$true] %s253
          %259 = dma.hbm_to_vmem [thread:$0]  %s252, 512, %s254, [#allocation6], 128, 128, 8
        $region24: #{tpu_custom_call.1} parent=11 // pred_fallthru
          _
        // Predicated region
        $region25: #{tpu_custom_call.1} parent=11 // pred_check
          %p260 = pneg %p146
        $region26: #{tpu_custom_call.1} parent=11 // pred_check_branch
          %262 = sbr.rel (%p260) target = $region28
        $region27: #{tpu_custom_call.1} parent=11 // pred_region
          %264 = vsyncadd [#allocation9], 0
          %s265 = sshll.u32 %s4, 4
          %s266 = int_to_ptr.hbm [resolvable:$true] %s265
          %s267 = sshll.u32 [#allocation8], 4
          %s268 = int_to_ptr.vmem [resolvable:$true] %s267
          %273 = dma.hbm_to_vmem [thread:$0]  %s266, 512, %s268, [#allocation9], 128, 128, 8
        $region28: #{tpu_custom_call.1} parent=11 // pred_fallthru
          _
        // Predicated region
        $region29: #{tpu_custom_call.1} parent=11 // pred_check
          %p274 = pneg %p167
        $region30: #{tpu_custom_call.1} parent=11 // pred_check_branch
          %276 = sbr.rel (%p274) target = $region32
        $region31: #{tpu_custom_call.1} parent=11 // pred_region
          %278 = vsyncadd [#allocation9], 0
          %s279 = sshll.u32 %s5, 4
          %s280 = int_to_ptr.hbm [resolvable:$true] %s279
          %s281 = sshll.u32 [#allocation10], 4
          %s282 = int_to_ptr.vmem [resolvable:$true] %s281
          %287 = dma.hbm_to_vmem [thread:$0]  %s280, 512, %s282, [#allocation9], 128, 128, 8
        $region32: #{tpu_custom_call.1} parent=11 // pred_fallthru
          _
        // Predicated region
        $region33: #{tpu_custom_call.1} parent=11 // pred_check
          %p288 = pneg %p188
        $region34: #{tpu_custom_call.1} parent=11 // pred_check_branch
          %290 = sbr.rel (%p288) target = $region36
        $region35: #{tpu_custom_call.1} parent=11 // pred_region
          %292 = vsyncadd [#allocation12], 0
          %s293 = sshll.u32 %s6, 4
          %s294 = int_to_ptr.hbm [resolvable:$true] %s293
          %s295 = sshll.u32 [#allocation11], 4
          %s296 = int_to_ptr.vmem [resolvable:$true] %s295
          %301 = dma.hbm_to_vmem [thread:$0]  %s294, 512, %s296, [#allocation12], 128, 128, 8
        $region36: #{tpu_custom_call.1} parent=11 // pred_fallthru
          _
      $region12: #{tpu_custom_call.1} parent=5 // pred_fallthru
        _
      %p302 = scmp.lt.s32.totalorder %s22, 2
      // Predicated region
      $region37: #{tpu_custom_call.1} parent=5 // pred_check
        %p303 = pneg %p302
      $region38: #{tpu_custom_call.1} parent=5 // pred_check_branch
        %305 = sbr.rel (%p303) target = $region40
      $region39: #{tpu_custom_call.1} parent=5 // pred_region
        // Predicated region
        $region41: #{tpu_custom_call.1} parent=39 // pred_check
          %p306 = pneg %p56
        $region42: #{tpu_custom_call.1} parent=39 // pred_check_branch
          %308 = sbr.rel (%p306) target = $region44
        $region43: #{tpu_custom_call.1} parent=39 // pred_region
          %s309 = sand.u32 %s46, 1
          %s310 = scalar_lea.sflag [#allocation3], %s309
          %s311 = sand.u32 %s46, 1
          %s312 = smul.addr %s311, 8
          %s313 = scalar_lea.vmem [#allocation2], %s312
          %315 = vsyncadd %s310, 0
          %s316 = sadd.s32 %s30, %s29
          %s317 = smul.addr %s316, 8
          %s318 = scalar_lea.hbm %s0, %s317
          %s320 = sshll.u32 %s318, 4
          %s321 = int_to_ptr.hbm [resolvable:$true] %s320
          %s322 = sshll.u32 %s313, 4
          %s323 = int_to_ptr.vmem [resolvable:$true] %s322
          %325 = dma.hbm_to_vmem [thread:$0]  %s321, 128, %s323, %s310
        $region44: #{tpu_custom_call.1} parent=39 // pred_fallthru
          _
      $region40: #{tpu_custom_call.1} parent=5 // pred_fallthru
        _
      %p326 = scmp.le.s32.totalorder 1, %s22
      %p327 = scmp.lt.s32.totalorder %s22, 3
      %p328 = pnand %p326, %p327
      %p329 = pneg %p328
      // Predicated region
      $region45: #{tpu_custom_call.1} parent=5 // pred_check
        _
      $region46: #{tpu_custom_call.1} parent=5 // pred_check_branch
        %331 = sbr.rel (%p328) target = $region48
      $region47: #{tpu_custom_call.1} parent=5 // pred_region
        %s332 = ssub.s32 %s22, 1
        %s333 = sand.u32 %s49, 1
        %s334 = scalar_lea.sflag [#allocation3], %s333
        %s335 = sand.u32 %s49, 1
        %s336 = smul.addr %s335, 8
        %s337 = scalar_lea.vmem [#allocation2], %s336
        // Predicated region
        $region49: #{tpu_custom_call.1} parent=47 // pred_check
          %p338 = pneg %p62
        $region50: #{tpu_custom_call.1} parent=47 // pred_check_branch
          %340 = sbr.rel (%p338) target = $region52
        $region51: #{tpu_custom_call.1} parent=47 // pred_region
          %342 = dma.done %s334, 128
        $region52: #{tpu_custom_call.1} parent=47 // pred_fallthru
          _
        // Predicated region
        $region53: #{tpu_custom_call.1} parent=47 // pred_check
          %p343 = pneg %p83
        $region54: #{tpu_custom_call.1} parent=47 // pred_check_branch
          %345 = sbr.rel (%p343) target = $region56
        $region55: #{tpu_custom_call.1} parent=47 // pred_region
          %347 = dma.done [#allocation6], 16
        $region56: #{tpu_custom_call.1} parent=47 // pred_fallthru
          _
        // Predicated region
        $region57: #{tpu_custom_call.1} parent=47 // pred_check
          %p348 = pneg %p125
        $region58: #{tpu_custom_call.1} parent=47 // pred_check_branch
          %350 = sbr.rel (%p348) target = $region60
        $region59: #{tpu_custom_call.1} parent=47 // pred_region
          %352 = dma.done [#allocation6], 512
        $region60: #{tpu_custom_call.1} parent=47 // pred_fallthru
          _
        // Predicated region
        $region61: #{tpu_custom_call.1} parent=47 // pred_check
          %p353 = pneg %p146
        $region62: #{tpu_custom_call.1} parent=47 // pred_check_branch
          %355 = sbr.rel (%p353) target = $region64
        $region63: #{tpu_custom_call.1} parent=47 // pred_region
          %357 = dma.done [#allocation9], 512
        $region64: #{tpu_custom_call.1} parent=47 // pred_fallthru
          _
        // Predicated region
        $region65: #{tpu_custom_call.1} parent=47 // pred_check
          %p358 = pneg %p167
        $region66: #{tpu_custom_call.1} parent=47 // pred_check_branch
          %360 = sbr.rel (%p358) target = $region68
        $region67: #{tpu_custom_call.1} parent=47 // pred_region
          %362 = dma.done [#allocation9], 512
        $region68: #{tpu_custom_call.1} parent=47 // pred_fallthru
          _
        // Predicated region
        $region69: #{tpu_custom_call.1} parent=47 // pred_check
          %p363 = pneg %p188
        $region70: #{tpu_custom_call.1} parent=47 // pred_check_branch
          %365 = sbr.rel (%p363) target = $region72
        $region71: #{tpu_custom_call.1} parent=47 // pred_region
          %367 = dma.done [#allocation12], 512
        $region72: #{tpu_custom_call.1} parent=47 // pred_fallthru
          _
        %s368 = sand.u32 %s49, 1
        %s369 = scalar_lea.sflag [#allocation3], %s368
        %s370 = sand.u32 %s49, 1
        %s371 = smul.addr %s370, 8
        %s372 = scalar_lea.vmem [#allocation2], %s371
        %p373 = pneg %p62
        %p374 = pneg %p59
        %p375 = pneg %p83
        %p376 = pneg %p80
        %p377 = pneg %p104
        %p378 = pneg %p101
        %p379 = pneg %p125
        %p380 = pneg %p122
        %p381 = pneg %p146
        %p382 = pneg %p143
        %p383 = pneg %p167
        %p384 = pneg %p164
        %p385 = pneg %p188
        %p386 = pneg %p185
        %p387 = pneg %p216
        %p388 = pneg %p213
        %s389 = sand.u32 %s203, 1
        %s390 = scalar_lea.sflag [#allocation4], %s389
        %s391 = sand.u32 %s203, 1
        %s392 = smul.addr %s391, 8
        %s393 = scalar_lea.vmem [#allocation13], %s392
        %v394 = vld [vmem:[%s337] sm:$0xff]
        %vm395 = vcmask 261120
        %v396 = vsel %vm395, %v394, 0.0
        %397 = vadd.xlane.f32.xlu0 %v396
        %v398 = vpop.xlane.xlu0 %397
        %v399 = vrcp.pop 32.0
        %v400 = vmul.f32 32.0, %v399
        %v401 = vsub.f32 1.0, %v400
        %v402 = vmul.f32 %v399, %v401
        %v403 = vadd.f32 %v399, %v402
        %vm404 = vweird.f32 %v399
        %v405 = vsel %vm404, %v399, %v403
        %v406 = vmul.f32 %v398, %v405
        %v407 = vsub.f32 %v394, %v406
        %v408 = vmul.f32 %v407, %v407
        %v409 = vsel %vm395, %v408, 0.0
        %410 = vadd.xlane.f32.xlu0 %v409
        %v411 = vpop.xlane.xlu0 %410
        %v412 = vmul.f32 %v411, %v405
        %v413 = vadd.f32 %v412, 1e-06
        %v414 = vrsqrt.pop %v413
        %v415 = vmul.f32 %v414, %v413
        %v416 = vmul.f32 %v415, %v414
        %v417 = vmul.f32 0.5, %v416
        %v418 = vsub.f32 1.5, %v417
        %v419 = vmul.f32 %v414, %v418
        %vm420 = vweird.f32 %v413
        %vm421 = vweird.f32 %v414
        %vm422 = vmor %vm420, %vm421
        %v423 = vsel %vm422, %v414, %v419
        %v424 = vmul.f32 %v407, %v423
        %v425 = vld [vmem:[#allocation5] sm:$0x1]
        %v427 = vperm.slane %v425, 0
        %v429 = vmul.f32 %v427, %v424
        %v430 = vld [vmem:[%s2] sm:$0x1]
        %v432 = vperm.slane %v430, 0
        %v434 = vadd.f32 %v429, %v432
        %v435 = vld [vmem:[#allocation7] sm:$0xff]
        %v436 = vld [vmem:[#allocation7 + $0x8] sm:$0xff]
        %v437 = vld [vmem:[#allocation7 + $0x10] sm:$0xff]
        %v438 = vld [vmem:[#allocation7 + $0x18] sm:$0xff]
        %v440 = vsel %vm395, %v434, 0
        %v443 = vsel %vm395, %v435, 0
        %v446 = vsel %vm395, %v436, 0
        %v449 = vsel %vm395, %v437, 0
        %v452 = vsel %vm395, %v438, 0
        %454 = vmatpush.xpose.msra.mxu0 0.0
        %455 = vmatpush.xpose.msra.mxu0 0.0
        %456 = vmatpush.xpose.msra.mxu0 0.0
        %457 = vmatpush.xpose.msra.mxu0 0.0
        %458 = vmatpush.xpose.msra.mxu0 0.0
        %459 = vmatpush.xpose.msra.mxu0 0.0
        %460 = vmatpush.xpose.msra.mxu0 0.0
        %461 = vmatpush.xpose.msra.mxu0 0.0
        %462 = vmatpush.xpose.msra.mxu0 0.0
        %463 = vmatpush.xpose.msra.mxu0 0.0
        %464 = vmatpush.xpose.msra.mxu0 0.0
        %465 = vmatpush.xpose.msra.mxu0 0.0
        %466 = vmatpush.xpose.msra.mxu0 %v452
        %467 = vmatpush.xpose.msra.mxu0 %v449
        %468 = vmatpush.xpose.msra.mxu0 %v446
        %469 = vmatpush.xpose.msra.mxu0 %v443
        %470 = vmatmul.f32.gmra.mxu0 %v440
        %v471 = vpop.f32.mrf.mxu0
        %v472 = vadd.f32 0.0, %v471
        %473 = vdwg.mxu0
        %v474 = vld [vmem:[#allocation8] sm:$0xff]
        %v475 = vld [vmem:[#allocation8 + $0x8] sm:$0xff]
        %v476 = vld [vmem:[#allocation8 + $0x10] sm:$0xff]
        %v477 = vld [vmem:[#allocation8 + $0x18] sm:$0xff]
        %v479 = vsel %vm395, %v474, 0
        %v482 = vsel %vm395, %v475, 0
        %v485 = vsel %vm395, %v476, 0
        %v488 = vsel %vm395, %v477, 0
        %490 = vmatpush.xpose.msra.mxu0 0.0
        %491 = vmatpush.xpose.msra.mxu0 0.0
        %492 = vmatpush.xpose.msra.mxu0 0.0
        %493 = vmatpush.xpose.msra.mxu0 0.0
        %494 = vmatpush.xpose.msra.mxu0 0.0
        %495 = vmatpush.xpose.msra.mxu0 0.0
        %496 = vmatpush.xpose.msra.mxu0 0.0
        %497 = vmatpush.xpose.msra.mxu0 0.0
        %498 = vmatpush.xpose.msra.mxu0 0.0
        %499 = vmatpush.xpose.msra.mxu0 0.0
        %500 = vmatpush.xpose.msra.mxu0 0.0
        %501 = vmatpush.xpose.msra.mxu0 0.0
        %502 = vmatpush.xpose.msra.mxu0 %v488
        %503 = vmatpush.xpose.msra.mxu0 %v485
        %504 = vmatpush.xpose.msra.mxu0 %v482
        %505 = vmatpush.xpose.msra.mxu0 %v479
        %506 = vmatmul.f32.gmra.mxu0 %v440
        %v507 = vpop.f32.mrf.mxu0
        %v508 = vadd.f32 0.0, %v507
        %509 = vdwg.mxu0
        %v510 = vld [vmem:[#allocation10] sm:$0xff]
        %v511 = vld [vmem:[#allocation10 + $0x8] sm:$0xff]
        %v512 = vld [vmem:[#allocation10 + $0x10] sm:$0xff]
        %v513 = vld [vmem:[#allocation10 + $0x18] sm:$0xff]
        %v515 = vsel %vm395, %v510, 0
        %v518 = vsel %vm395, %v511, 0
        %v521 = vsel %vm395, %v512, 0
        %v524 = vsel %vm395, %v513, 0
        %526 = vmatpush.xpose.msra.mxu0 0.0
        %527 = vmatpush.xpose.msra.mxu0 0.0
        %528 = vmatpush.xpose.msra.mxu0 0.0
        %529 = vmatpush.xpose.msra.mxu0 0.0
        %530 = vmatpush.xpose.msra.mxu0 0.0
        %531 = vmatpush.xpose.msra.mxu0 0.0
        %532 = vmatpush.xpose.msra.mxu0 0.0
        %533 = vmatpush.xpose.msra.mxu0 0.0
        %534 = vmatpush.xpose.msra.mxu0 0.0
        %535 = vmatpush.xpose.msra.mxu0 0.0
        %536 = vmatpush.xpose.msra.mxu0 0.0
        %537 = vmatpush.xpose.msra.mxu0 0.0
        %538 = vmatpush.xpose.msra.mxu0 %v524
        %539 = vmatpush.xpose.msra.mxu0 %v521
        %540 = vmatpush.xpose.msra.mxu0 %v518
        %541 = vmatpush.xpose.msra.mxu0 %v515
        %542 = vmatmul.f32.gmra.mxu0 %v440
        %v543 = vpop.f32.mrf.mxu0
        %v544 = vadd.f32 0.0, %v543
        %545 = vdwg.mxu0
        %547 = vrot.lane.b32.xlu0 %v472, 120
        %v548 = vpop.permute.xlu0 %547
        %550 = vrot.lane.b32.xlu0 %v472, 112
        %v551 = vpop.permute.xlu0 %550
        %553 = vrot.lane.b32.xlu0 %v472, 104
        %v554 = vpop.permute.xlu0 %553
        %v556 = vrot.slane %v551, 4
        %vm557 = vcmask 1047556
        %v558 = vsel %vm557, %v556, %v472
        %v559 = vrot.slane %v472, 4
        %v560 = vsel %vm557, %v551, %v559
        %v562 = vunpack.c.l.s4 1983009808
        %v563 = vunpack.c.0.s8 %v562
        %v564 = vperm.slane %v558, %v563
        %v566 = vunpack.c.l.s4 1983009808
        %v567 = vunpack.c.0.s8 %v566
        %v568 = vperm.slane %v560, %v567
        %v569 = vrot.slane %v554, 4
        %v570 = vsel %vm557, %v569, %v548
        %v571 = vrot.slane %v548, 4
        %v572 = vsel %vm557, %v554, %v571
        %v574 = vunpack.c.l.s4 1983009808
        %v575 = vunpack.c.0.s8 %v574
        %v576 = vperm.slane %v570, %v575
        %v578 = vunpack.c.l.s4 1983009808
        %v579 = vunpack.c.0.s8 %v578
        %v580 = vperm.slane %v572, %v579
        %v581 = vrot.slane %v576, 4
        %v582 = vsel %vm557, %v581, %v564
        %v583 = vrot.slane %v564, 4
        %v584 = vsel %vm557, %v576, %v583
        %v586 = vunpack.c.l.s4 1934713408
        %v587 = vunpack.c.0.s8 %v586
        %v588 = vperm.slane %v582, %v587
        %v590 = vunpack.c.l.s4 1934713408
        %v591 = vunpack.c.0.s8 %v590
        %v592 = vperm.slane %v584, %v591
        %v593 = vrot.slane %v580, 4
        %v594 = vsel %vm557, %v593, %v568
        %v595 = vrot.slane %v568, 4
        %v596 = vsel %vm557, %v580, %v595
        %v598 = vunpack.c.l.s4 1934713408
        %v599 = vunpack.c.0.s8 %v598
        %v600 = vperm.slane %v594, %v599
        %v602 = vunpack.c.l.s4 1934713408
        %v603 = vunpack.c.0.s8 %v602
        %v604 = vperm.slane %v596, %v603
        %v605 = vrot.slane %v588, 4
        %v606 = vsel %vm557, 0.0, %v605
        %v607 = vrot.slane %v592, 4
        %v608 = vsel %vm557, 0.0, %v607
        %v609 = vrot.slane %v600, 4
        %v610 = vsel %vm557, 0.0, %v609
        %v611 = vrot.slane %v604, 4
        %v612 = vsel %vm557, 0.0, %v611
        %v613 = vsel %vm557, %v607, %v588
        %v615 = vunpack.c.l.s4 1983009808
        %v616 = vunpack.c.0.s8 %v615
        %v617 = vperm.slane %v613, %v616
        %v618 = vrot.slane %v608, 4
        %v619 = vsel %vm557, %v618, %v606
        %v621 = vunpack.c.l.s4 1983009808
        %v622 = vunpack.c.0.s8 %v621
        %v623 = vperm.slane %v619, %v622
        %v624 = vsel %vm557, %v611, %v600
        %v626 = vunpack.c.l.s4 1983009808
        %v627 = vunpack.c.0.s8 %v626
        %v628 = vperm.slane %v624, %v627
        %v629 = vrot.slane %v612, 4
        %v630 = vsel %vm557, %v629, %v610
        %v632 = vunpack.c.l.s4 1983009808
        %v633 = vunpack.c.0.s8 %v632
        %v634 = vperm.slane %v630, %v633
        %v635 = vrot.slane %v623, 4
        %v636 = vsel %vm557, %v635, %v617
        %v637 = vrot.slane %v617, 4
        %v638 = vsel %vm557, %v623, %v637
        %v640 = vunpack.c.l.s4 1934713408
        %v641 = vunpack.c.0.s8 %v640
        %v642 = vperm.slane %v636, %v641
        %v644 = vunpack.c.l.s4 1934713408
        %v645 = vunpack.c.0.s8 %v644
        %v646 = vperm.slane %v638, %v645
        %v647 = vrot.slane %v634, 4
        %v648 = vsel %vm557, %v647, %v628
        %v649 = vrot.slane %v628, 4
        %v650 = vsel %vm557, %v634, %v649
        %v652 = vunpack.c.l.s4 1934713408
        %v653 = vunpack.c.0.s8 %v652
        %v654 = vperm.slane %v648, %v653
        %v656 = vunpack.c.l.s4 1934713408
        %v657 = vunpack.c.0.s8 %v656
        %v658 = vperm.slane %v650, %v657
        %v659 = vrot.slane %v654, 4
        %v660 = vsel %vm557, %v659, %v642
        %v661 = vrot.slane %v642, 4
        %v662 = vsel %vm557, %v654, %v661
        %v663 = vrot.slane %v658, 4
        %v664 = vsel %vm557, %v663, %v646
        %v665 = vrot.slane %v646, 4
        %v666 = vsel %vm557, %v658, %v665
        %668 = vrot.lane.b32.xlu0 %v508, 120
        %v669 = vpop.permute.xlu0 %668
        %671 = vrot.lane.b32.xlu0 %v508, 112
        %v672 = vpop.permute.xlu0 %671
        %674 = vrot.lane.b32.xlu0 %v508, 104
        %v675 = vpop.permute.xlu0 %674
        %v677 = vrot.slane %v672, 4
        %v678 = vsel %vm557, %v677, %v508
        %v679 = vrot.slane %v508, 4
        %v680 = vsel %vm557, %v672, %v679
        %v682 = vunpack.c.l.s4 1983009808
        %v683 = vunpack.c.0.s8 %v682
        %v684 = vperm.slane %v678, %v683
        %v686 = vunpack.c.l.s4 1983009808
        %v687 = vunpack.c.0.s8 %v686
        %v688 = vperm.slane %v680, %v687
        %v689 = vrot.slane %v675, 4
        %v690 = vsel %vm557, %v689, %v669
        %v691 = vrot.slane %v669, 4
        %v692 = vsel %vm557, %v675, %v691
        %v694 = vunpack.c.l.s4 1983009808
        %v695 = vunpack.c.0.s8 %v694
        %v696 = vperm.slane %v690, %v695
        %v698 = vunpack.c.l.s4 1983009808
        %v699 = vunpack.c.0.s8 %v698
        %v700 = vperm.slane %v692, %v699
        %v701 = vrot.slane %v696, 4
        %v702 = vsel %vm557, %v701, %v684
        %v703 = vrot.slane %v684, 4
        %v704 = vsel %vm557, %v696, %v703
        %v706 = vunpack.c.l.s4 1934713408
        %v707 = vunpack.c.0.s8 %v706
        %v708 = vperm.slane %v702, %v707
        %v710 = vunpack.c.l.s4 1934713408
        %v711 = vunpack.c.0.s8 %v710
        %v712 = vperm.slane %v704, %v711
        %v713 = vrot.slane %v700, 4
        %v714 = vsel %vm557, %v713, %v688
        %v715 = vrot.slane %v688, 4
        %v716 = vsel %vm557, %v700, %v715
        %v718 = vunpack.c.l.s4 1934713408
        %v719 = vunpack.c.0.s8 %v718
        %v720 = vperm.slane %v714, %v719
        %v722 = vunpack.c.l.s4 1934713408
        %v723 = vunpack.c.0.s8 %v722
        %v724 = vperm.slane %v716, %v723
        %v725 = vrot.slane %v708, 4
        %v726 = vsel %vm557, 0.0, %v725
        %v727 = vrot.slane %v712, 4
        %v728 = vsel %vm557, 0.0, %v727
        %v729 = vrot.slane %v720, 4
        %v730 = vsel %vm557, 0.0, %v729
        %v731 = vrot.slane %v724, 4
        %v732 = vsel %vm557, 0.0, %v731
        %v733 = vsel %vm557, %v727, %v708
        %v735 = vunpack.c.l.s4 1983009808
        %v736 = vunpack.c.0.s8 %v735
        %v737 = vperm.slane %v733, %v736
        %v738 = vrot.slane %v728, 4
        %v739 = vsel %vm557, %v738, %v726
        %v741 = vunpack.c.l.s4 1983009808
        %v742 = vunpack.c.0.s8 %v741
        %v743 = vperm.slane %v739, %v742
        %v744 = vsel %vm557, %v731, %v720
        %v746 = vunpack.c.l.s4 1983009808
        %v747 = vunpack.c.0.s8 %v746
        %v748 = vperm.slane %v744, %v747
        %v749 = vrot.slane %v732, 4
        %v750 = vsel %vm557, %v749, %v730
        %v752 = vunpack.c.l.s4 1983009808
        %v753 = vunpack.c.0.s8 %v752
        %v754 = vperm.slane %v750, %v753
        %v755 = vrot.slane %v743, 4
        %v756 = vsel %vm557, %v755, %v737
        %v757 = vrot.slane %v737, 4
        %v758 = vsel %vm557, %v743, %v757
        %v760 = vunpack.c.l.s4 1934713408
        %v761 = vunpack.c.0.s8 %v760
        %v762 = vperm.slane %v756, %v761
        %v764 = vunpack.c.l.s4 1934713408
        %v765 = vunpack.c.0.s8 %v764
        %v766 = vperm.slane %v758, %v765
        %v767 = vrot.slane %v754, 4
        %v768 = vsel %vm557, %v767, %v748
        %v769 = vrot.slane %v748, 4
        %v770 = vsel %vm557, %v754, %v769
        %v772 = vunpack.c.l.s4 1934713408
        %v773 = vunpack.c.0.s8 %v772
        %v774 = vperm.slane %v768, %v773
        %v776 = vunpack.c.l.s4 1934713408
        %v777 = vunpack.c.0.s8 %v776
        %v778 = vperm.slane %v770, %v777
        %v779 = vrot.slane %v774, 4
        %v780 = vsel %vm557, %v779, %v762
        %v781 = vrot.slane %v762, 4
        %v782 = vsel %vm557, %v774, %v781
        %v783 = vrot.slane %v778, 4
        %v784 = vsel %vm557, %v783, %v766
        %v785 = vrot.slane %v766, 4
        %v786 = vsel %vm557, %v778, %v785
        %788 = vrot.lane.b32.xlu0 %v544, 120
        %v789 = vpop.permute.xlu0 %788
        %791 = vrot.lane.b32.xlu0 %v544, 112
        %v792 = vpop.permute.xlu0 %791
        %794 = vrot.lane.b32.xlu0 %v544, 104
        %v795 = vpop.permute.xlu0 %794
        %v797 = vrot.slane %v792, 4
        %v798 = vsel %vm557, %v797, %v544
        %v799 = vrot.slane %v544, 4
        %v800 = vsel %vm557, %v792, %v799
        %v802 = vunpack.c.l.s4 1983009808
        %v803 = vunpack.c.0.s8 %v802
        %v804 = vperm.slane %v798, %v803
        %v806 = vunpack.c.l.s4 1983009808
        %v807 = vunpack.c.0.s8 %v806
        %v808 = vperm.slane %v800, %v807
        %v809 = vrot.slane %v795, 4
        %v810 = vsel %vm557, %v809, %v789
        %v811 = vrot.slane %v789, 4
        %v812 = vsel %vm557, %v795, %v811
        %v814 = vunpack.c.l.s4 1983009808
        %v815 = vunpack.c.0.s8 %v814
        %v816 = vperm.slane %v810, %v815
        %v818 = vunpack.c.l.s4 1983009808
        %v819 = vunpack.c.0.s8 %v818
        %v820 = vperm.slane %v812, %v819
        %v821 = vrot.slane %v816, 4
        %v822 = vsel %vm557, %v821, %v804
        %v823 = vrot.slane %v804, 4
        %v824 = vsel %vm557, %v816, %v823
        %v826 = vunpack.c.l.s4 1934713408
        %v827 = vunpack.c.0.s8 %v826
        %v828 = vperm.slane %v822, %v827
        %v830 = vunpack.c.l.s4 1934713408
        %v831 = vunpack.c.0.s8 %v830
        %v832 = vperm.slane %v824, %v831
        %v833 = vrot.slane %v820, 4
        %v834 = vsel %vm557, %v833, %v808
        %v835 = vrot.slane %v808, 4
        %v836 = vsel %vm557, %v820, %v835
        %v838 = vunpack.c.l.s4 1934713408
        %v839 = vunpack.c.0.s8 %v838
        %v840 = vperm.slane %v834, %v839
        %v842 = vunpack.c.l.s4 1934713408
        %v843 = vunpack.c.0.s8 %v842
        %v844 = vperm.slane %v836, %v843
        %v845 = vrot.slane %v828, 4
        %v846 = vsel %vm557, 0.0, %v845
        %v847 = vrot.slane %v832, 4
        %v848 = vsel %vm557, 0.0, %v847
        %v849 = vrot.slane %v840, 4
        %v850 = vsel %vm557, 0.0, %v849
        %v851 = vrot.slane %v844, 4
        %v852 = vsel %vm557, 0.0, %v851
        %v853 = vsel %vm557, %v847, %v828
        %v855 = vunpack.c.l.s4 1983009808
        %v856 = vunpack.c.0.s8 %v855
        %v857 = vperm.slane %v853, %v856
        %v858 = vrot.slane %v848, 4
        %v859 = vsel %vm557, %v858, %v846
        %v861 = vunpack.c.l.s4 1983009808
        %v862 = vunpack.c.0.s8 %v861
        %v863 = vperm.slane %v859, %v862
        %v864 = vsel %vm557, %v851, %v840
        %v866 = vunpack.c.l.s4 1983009808
        %v867 = vunpack.c.0.s8 %v866
        %v868 = vperm.slane %v864, %v867
        %v869 = vrot.slane %v852, 4
        %v870 = vsel %vm557, %v869, %v850
        %v872 = vunpack.c.l.s4 1983009808
        %v873 = vunpack.c.0.s8 %v872
        %v874 = vperm.slane %v870, %v873
        %v875 = vrot.slane %v863, 4
        %v876 = vsel %vm557, %v875, %v857
        %v877 = vrot.slane %v857, 4
        %v878 = vsel %vm557, %v863, %v877
        %v880 = vunpack.c.l.s4 1934713408
        %v881 = vunpack.c.0.s8 %v880
        %v882 = vperm.slane %v876, %v881
        %v884 = vunpack.c.l.s4 1934713408
        %v885 = vunpack.c.0.s8 %v884
        %v886 = vperm.slane %v878, %v885
        %v887 = vrot.slane %v874, 4
        %v888 = vsel %vm557, %v887, %v868
        %v889 = vrot.slane %v868, 4
        %v890 = vsel %vm557, %v874, %v889
        %v892 = vunpack.c.l.s4 1934713408
        %v893 = vunpack.c.0.s8 %v892
        %v894 = vperm.slane %v888, %v893
        %v896 = vunpack.c.l.s4 1934713408
        %v897 = vunpack.c.0.s8 %v896
        %v898 = vperm.slane %v890, %v897
        %v899 = vrot.slane %v894, 4
        %v900 = vsel %vm557, %v899, %v882
        %v901 = vrot.slane %v882, 4
        %v902 = vsel %vm557, %v894, %v901
        %v903 = vrot.slane %v898, 4
        %v904 = vsel %vm557, %v903, %v886
        %v905 = vrot.slane %v886, 4
        %v906 = vsel %vm557, %v898, %v905
        %vm907 = vcmask 64512
        %v909 = vsel %vm907, %v660, 0
        %v912 = vsel %vm907, %v780, 0
        %914 = vmatpush.xpose.msra.mxu0 0.0
        %915 = vmatpush.xpose.msra.mxu0 0.0
        %916 = vmatpush.xpose.msra.mxu0 0.0
        %917 = vmatpush.xpose.msra.mxu0 0.0
        %918 = vmatpush.xpose.msra.mxu0 0.0
        %919 = vmatpush.xpose.msra.mxu0 0.0
        %920 = vmatpush.xpose.msra.mxu0 0.0
        %921 = vmatpush.xpose.msra.mxu0 0.0
        %922 = vmatpush.xpose.msra.mxu0 0.0
        %923 = vmatpush.xpose.msra.mxu0 0.0
        %924 = vmatpush.xpose.msra.mxu0 0.0
        %925 = vmatpush.xpose.msra.mxu0 0.0
        %926 = vmatpush.xpose.msra.mxu0 0.0
        %927 = vmatpush.xpose.msra.mxu0 0.0
        %928 = vmatpush.xpose.msra.mxu0 0.0
        %929 = vmatpush.xpose.msra.mxu0 %v912
        %930 = vmatmul.f32.gmra.mxu0 %v909
        %v931 = vpop.f32.mrf.mxu0
        %v932 = vadd.f32 0.0, %v931
        %933 = vdwg.mxu0
        %v935 = vsel %vm907, %v662, 0
        %v938 = vsel %vm907, %v782, 0
        %940 = vmatpush.xpose.msra.mxu0 0.0
        %941 = vmatpush.xpose.msra.mxu0 0.0
        %942 = vmatpush.xpose.msra.mxu0 0.0
        %943 = vmatpush.xpose.msra.mxu0 0.0
        %944 = vmatpush.xpose.msra.mxu0 0.0
        %945 = vmatpush.xpose.msra.mxu0 0.0
        %946 = vmatpush.xpose.msra.mxu0 0.0
        %947 = vmatpush.xpose.msra.mxu0 0.0
        %948 = vmatpush.xpose.msra.mxu0 0.0
        %949 = vmatpush.xpose.msra.mxu0 0.0
        %950 = vmatpush.xpose.msra.mxu0 0.0
        %951 = vmatpush.xpose.msra.mxu0 0.0
        %952 = vmatpush.xpose.msra.mxu0 0.0
        %953 = vmatpush.xpose.msra.mxu0 0.0
        %954 = vmatpush.xpose.msra.mxu0 0.0
        %955 = vmatpush.xpose.msra.mxu0 %v938
        %956 = vmatmul.f32.gmra.mxu0 %v935
        %v957 = vpop.f32.mrf.mxu0
        %v958 = vadd.f32 0.0, %v957
        %959 = vdwg.mxu0
        %v961 = vsel %vm907, %v664, 0
        %v964 = vsel %vm907, %v784, 0
        %966 = vmatpush.xpose.msra.mxu0 0.0
        %967 = vmatpush.xpose.msra.mxu0 0.0
        %968 = vmatpush.xpose.msra.mxu0 0.0
        %969 = vmatpush.xpose.msra.mxu0 0.0
        %970 = vmatpush.xpose.msra.mxu0 0.0
        %971 = vmatpush.xpose.msra.mxu0 0.0
        %972 = vmatpush.xpose.msra.mxu0 0.0
        %973 = vmatpush.xpose.msra.mxu0 0.0
        %974 = vmatpush.xpose.msra.mxu0 0.0
        %975 = vmatpush.xpose.msra.mxu0 0.0
        %976 = vmatpush.xpose.msra.mxu0 0.0
        %977 = vmatpush.xpose.msra.mxu0 0.0
        %978 = vmatpush.xpose.msra.mxu0 0.0
        %979 = vmatpush.xpose.msra.mxu0 0.0
        %980 = vmatpush.xpose.msra.mxu0 0.0
        %981 = vmatpush.xpose.msra.mxu0 %v964
        %982 = vmatmul.f32.gmra.mxu0 %v961
        %v983 = vpop.f32.mrf.mxu0
        %v984 = vadd.f32 0.0, %v983
        %985 = vdwg.mxu0
        %v987 = vsel %vm907, %v666, 0
        %v990 = vsel %vm907, %v786, 0
        %992 = vmatpush.xpose.msra.mxu0 0.0
        %993 = vmatpush.xpose.msra.mxu0 0.0
        %994 = vmatpush.xpose.msra.mxu0 0.0
        %995 = vmatpush.xpose.msra.mxu0 0.0
        %996 = vmatpush.xpose.msra.mxu0 0.0
        %997 = vmatpush.xpose.msra.mxu0 0.0
        %998 = vmatpush.xpose.msra.mxu0 0.0
        %999 = vmatpush.xpose.msra.mxu0 0.0
        %1000 = vmatpush.xpose.msra.mxu0 0.0
        %1001 = vmatpush.xpose.msra.mxu0 0.0
        %1002 = vmatpush.xpose.msra.mxu0 0.0
        %1003 = vmatpush.xpose.msra.mxu0 0.0
        %1004 = vmatpush.xpose.msra.mxu0 0.0
        %1005 = vmatpush.xpose.msra.mxu0 0.0
        %1006 = vmatpush.xpose.msra.mxu0 0.0
        %1007 = vmatpush.xpose.msra.mxu0 %v990
        %1008 = vmatmul.f32.gmra.mxu0 %v987
        %v1009 = vpop.f32.mrf.mxu0
        %v1010 = vadd.f32 0.0, %v1009
        %1011 = vdwg.mxu0
        %v1012 = vmul.f32 %v932, 0.35355338
        %v1013 = vmul.f32 %v958, 0.35355338
        %v1014 = vmul.f32 %v984, 0.35355338
        %v1015 = vmul.f32 %v1010, 0.35355338
        %s1016 = smul.u32 %s32, 8
        %v1017 = vlaneseq
        %v1018 = vshrl.u32 %v1017, 7
        %v1019 = vstv %s1016
        %v1020 = vadd.s32 %v1019, %v1018
        %v1021 = vlaneseq
        %v1022 = vand.u32 %v1021, 127
        %vm1023 = vcmp.ge.s32.totalorder %v1020, %v1022
        %v1024 = vsel %vm1023, 0.0, -1e+30
        %v1025 = vadd.f32 %v1012, %v1024
        %v1026 = vadd.f32 %v1013, %v1024
        %v1027 = vadd.f32 %v1014, %v1024
        %v1028 = vadd.f32 %v1015, %v1024
        %v1029 = vsel %vm907, %v1025, -inf
        %1030 = vmax.xlane.f32.xlu0 %v1029
        %v1031 = vpop.xlane.xlu0 %1030
        %v1032 = vsel %vm907, %v1026, -inf
        %1033 = vmax.xlane.f32.xlu0 %v1032
        %v1034 = vpop.xlane.xlu0 %1033
        %v1035 = vsel %vm907, %v1027, -inf
        %1036 = vmax.xlane.f32.xlu0 %v1035
        %v1037 = vpop.xlane.xlu0 %1036
        %v1038 = vsel %vm907, %v1028, -inf
        %1039 = vmax.xlane.f32.xlu0 %v1038
        %v1040 = vpop.xlane.xlu0 %1039
        %v1041 = vsub.f32 %v1025, %v1031
        %v1042 = vsub.f32 %v1026, %v1034
        %v1043 = vsub.f32 %v1027, %v1037
        %v1044 = vsub.f32 %v1028, %v1040
        %v1045 = vmul.f32 %v1041, 1.442695
        %v1046 = vpow.pop %v1045
        %v1047 = vmul.f32 %v1042, 1.442695
        %v1048 = vpow.pop %v1047
        %v1049 = vmul.f32 %v1043, 1.442695
        %v1050 = vpow.pop %v1049
        %v1051 = vmul.f32 %v1044, 1.442695
        %v1052 = vpow.pop %v1051
        %v1053 = vsel %vm907, %v1046, 0.0
        %1054 = vadd.xlane.f32.xlu0 %v1053
        %v1055 = vpop.xlane.xlu0 %1054
        %v1056 = vsel %vm907, %v1048, 0.0
        %1057 = vadd.xlane.f32.xlu0 %v1056
        %v1058 = vpop.xlane.xlu0 %1057
        %v1059 = vsel %vm907, %v1050, 0.0
        %1060 = vadd.xlane.f32.xlu0 %v1059
        %v1061 = vpop.xlane.xlu0 %1060
        %v1062 = vsel %vm907, %v1052, 0.0
        %1063 = vadd.xlane.f32.xlu0 %v1062
        %v1064 = vpop.xlane.xlu0 %1063
        %v1065 = vrcp.pop %v1055
        %v1066 = vmul.f32 %v1055, %v1065
        %v1067 = vsub.f32 1.0, %v1066
        %v1068 = vmul.f32 %v1065, %v1067
        %v1069 = vadd.f32 %v1065, %v1068
        %vm1070 = vweird.f32 %v1055
        %vm1071 = vweird.f32 %v1065
        %vm1072 = vmor %vm1070, %vm1071
        %v1073 = vsel %vm1072, %v1065, %v1069
        %v1074 = vand.u32 2147483647, %v1055
        %vm1075 = vcmp.eq.f32.partialorder %v1074, 8.507059e+37
        %v1076 = vand.u32 %v1055, 2147483648
        %v1077 = vor.u32 1.1754944e-38, %v1076
        %v1078 = vsel %vm1075, %v1077, %v1073
        %v1079 = vrcp.pop %v1058
        %v1080 = vmul.f32 %v1058, %v1079
        %v1081 = vsub.f32 1.0, %v1080
        %v1082 = vmul.f32 %v1079, %v1081
        %v1083 = vadd.f32 %v1079, %v1082
        %vm1084 = vweird.f32 %v1058
        %vm1085 = vweird.f32 %v1079
        %vm1086 = vmor %vm1084, %vm1085
        %v1087 = vsel %vm1086, %v1079, %v1083
        %v1088 = vand.u32 2147483647, %v1058
        %vm1089 = vcmp.eq.f32.partialorder %v1088, 8.507059e+37
        %v1090 = vand.u32 %v1058, 2147483648
        %v1091 = vor.u32 1.1754944e-38, %v1090
        %v1092 = vsel %vm1089, %v1091, %v1087
        %v1093 = vrcp.pop %v1061
        %v1094 = vmul.f32 %v1061, %v1093
        %v1095 = vsub.f32 1.0, %v1094
        %v1096 = vmul.f32 %v1093, %v1095
        %v1097 = vadd.f32 %v1093, %v1096
        %vm1098 = vweird.f32 %v1061
        %vm1099 = vweird.f32 %v1093
        %vm1100 = vmor %vm1098, %vm1099
        %v1101 = vsel %vm1100, %v1093, %v1097
        %v1102 = vand.u32 2147483647, %v1061
        %vm1103 = vcmp.eq.f32.partialorder %v1102, 8.507059e+37
        %v1104 = vand.u32 %v1061, 2147483648
        %v1105 = vor.u32 1.1754944e-38, %v1104
        %v1106 = vsel %vm1103, %v1105, %v1101
        %v1107 = vrcp.pop %v1064
        %v1108 = vmul.f32 %v1064, %v1107
        %v1109 = vsub.f32 1.0, %v1108
        %v1110 = vmul.f32 %v1107, %v1109
        %v1111 = vadd.f32 %v1107, %v1110
        %vm1112 = vweird.f32 %v1064
        %vm1113 = vweird.f32 %v1107
        %vm1114 = vmor %vm1112, %vm1113
        %v1115 = vsel %vm1114, %v1107, %v1111
        %v1116 = vand.u32 2147483647, %v1064
        %vm1117 = vcmp.eq.f32.partialorder %v1116, 8.507059e+37
        %v1118 = vand.u32 %v1064, 2147483648
        %v1119 = vor.u32 1.1754944e-38, %v1118
        %v1120 = vsel %vm1117, %v1119, %v1115
        %v1121 = vmul.f32 %v1046, %v1078
        %v1122 = vmul.f32 %v1048, %v1092
        %v1123 = vmul.f32 %v1050, %v1106
        %v1124 = vmul.f32 %v1052, %v1120
        %v1126 = vsel %vm907, %v1121, 0
        %1128 = vmatpush.msra.mxu0 0.0
        %1129 = vmatpush.msra.mxu0 0.0
        %1130 = vmatpush.msra.mxu0 0.0
        %1131 = vmatpush.msra.mxu0 0.0
        %1132 = vmatpush.msra.mxu0 0.0
        %1133 = vmatpush.msra.mxu0 0.0
        %1134 = vmatpush.msra.mxu0 0.0
        %1135 = vmatpush.msra.mxu0 0.0
        %1136 = vmatpush.msra.mxu0 0.0
        %1137 = vmatpush.msra.mxu0 0.0
        %1138 = vmatpush.msra.mxu0 0.0
        %1139 = vmatpush.msra.mxu0 0.0
        %1140 = vmatpush.msra.mxu0 0.0
        %1141 = vmatpush.msra.mxu0 0.0
        %1142 = vmatpush.msra.mxu0 0.0
        %1143 = vmatpush.msra.mxu0 %v900
        %1144 = vmatmul.f32.gmra.mxu0 %v1126
        %v1145 = vpop.f32.mrf.mxu0
        %v1146 = vadd.f32 0.0, %v1145
        %1147 = vdwg.mxu0
        %v1149 = vsel %vm907, %v1122, 0
        %1151 = vmatpush.msra.mxu0 0.0
        %1152 = vmatpush.msra.mxu0 0.0
        %1153 = vmatpush.msra.mxu0 0.0
        %1154 = vmatpush.msra.mxu0 0.0
        %1155 = vmatpush.msra.mxu0 0.0
        %1156 = vmatpush.msra.mxu0 0.0
        %1157 = vmatpush.msra.mxu0 0.0
        %1158 = vmatpush.msra.mxu0 0.0
        %1159 = vmatpush.msra.mxu0 0.0
        %1160 = vmatpush.msra.mxu0 0.0
        %1161 = vmatpush.msra.mxu0 0.0
        %1162 = vmatpush.msra.mxu0 0.0
        %1163 = vmatpush.msra.mxu0 0.0
        %1164 = vmatpush.msra.mxu0 0.0
        %1165 = vmatpush.msra.mxu0 0.0
        %1166 = vmatpush.msra.mxu0 %v902
        %1167 = vmatmul.f32.gmra.mxu0 %v1149
        %v1168 = vpop.f32.mrf.mxu0
        %v1169 = vadd.f32 0.0, %v1168
        %1170 = vdwg.mxu0
        %v1172 = vsel %vm907, %v1123, 0
        %1174 = vmatpush.msra.mxu0 0.0
        %1175 = vmatpush.msra.mxu0 0.0
        %1176 = vmatpush.msra.mxu0 0.0
        %1177 = vmatpush.msra.mxu0 0.0
        %1178 = vmatpush.msra.mxu0 0.0
        %1179 = vmatpush.msra.mxu0 0.0
        %1180 = vmatpush.msra.mxu0 0.0
        %1181 = vmatpush.msra.mxu0 0.0
        %1182 = vmatpush.msra.mxu0 0.0
        %1183 = vmatpush.msra.mxu0 0.0
        %1184 = vmatpush.msra.mxu0 0.0
        %1185 = vmatpush.msra.mxu0 0.0
        %1186 = vmatpush.msra.mxu0 0.0
        %1187 = vmatpush.msra.mxu0 0.0
        %1188 = vmatpush.msra.mxu0 0.0
        %1189 = vmatpush.msra.mxu0 %v904
        %1190 = vmatmul.f32.gmra.mxu0 %v1172
        %v1191 = vpop.f32.mrf.mxu0
        %v1192 = vadd.f32 0.0, %v1191
        %1193 = vdwg.mxu0
        %v1195 = vsel %vm907, %v1124, 0
        %1197 = vmatpush.msra.mxu0 0.0
        %1198 = vmatpush.msra.mxu0 0.0
        %1199 = vmatpush.msra.mxu0 0.0
        %1200 = vmatpush.msra.mxu0 0.0
        %1201 = vmatpush.msra.mxu0 0.0
        %1202 = vmatpush.msra.mxu0 0.0
        %1203 = vmatpush.msra.mxu0 0.0
        %1204 = vmatpush.msra.mxu0 0.0
        %1205 = vmatpush.msra.mxu0 0.0
        %1206 = vmatpush.msra.mxu0 0.0
        %1207 = vmatpush.msra.mxu0 0.0
        %1208 = vmatpush.msra.mxu0 0.0
        %1209 = vmatpush.msra.mxu0 0.0
        %1210 = vmatpush.msra.mxu0 0.0
        %1211 = vmatpush.msra.mxu0 0.0
        %1212 = vmatpush.msra.mxu0 %v906
        %1213 = vmatmul.f32.gmra.mxu0 %v1195
        %v1214 = vpop.f32.mrf.mxu0
        %v1215 = vadd.f32 0.0, %v1214
        %1216 = vdwg.mxu0
        %v1217 = vrot.slane %v1192, 4
        %v1218 = vsel %vm557, %v1217, %v1146
        %v1219 = vrot.slane %v1146, 4
        %v1220 = vsel %vm557, %v1192, %v1219
        %v1222 = vunpack.c.l.s4 1983009808
        %v1223 = vunpack.c.0.s8 %v1222
        %v1224 = vperm.slane %v1218, %v1223
        %v1226 = vunpack.c.l.s4 1983009808
        %v1227 = vunpack.c.0.s8 %v1226
        %v1228 = vperm.slane %v1220, %v1227
        %v1229 = vrot.slane %v1215, 4
        %v1230 = vsel %vm557, %v1229, %v1169
        %v1231 = vrot.slane %v1169, 4
        %v1232 = vsel %vm557, %v1215, %v1231
        %v1234 = vunpack.c.l.s4 1983009808
        %v1235 = vunpack.c.0.s8 %v1234
        %v1236 = vperm.slane %v1230, %v1235
        %v1238 = vunpack.c.l.s4 1983009808
        %v1239 = vunpack.c.0.s8 %v1238
        %v1240 = vperm.slane %v1232, %v1239
        %v1241 = vrot.slane %v1236, 4
        %v1242 = vsel %vm557, %v1241, %v1224
        %v1243 = vrot.slane %v1224, 4
        %v1244 = vsel %vm557, %v1236, %v1243
        %v1246 = vunpack.c.l.s4 1934713408
        %v1247 = vunpack.c.0.s8 %v1246
        %v1248 = vperm.slane %v1242, %v1247
        %v1250 = vunpack.c.l.s4 1934713408
        %v1251 = vunpack.c.0.s8 %v1250
        %v1252 = vperm.slane %v1244, %v1251
        %v1253 = vrot.slane %v1240, 4
        %v1254 = vsel %vm557, %v1253, %v1228
        %v1255 = vrot.slane %v1228, 4
        %v1256 = vsel %vm557, %v1240, %v1255
        %v1258 = vunpack.c.l.s4 1934713408
        %v1259 = vunpack.c.0.s8 %v1258
        %v1260 = vperm.slane %v1254, %v1259
        %v1262 = vunpack.c.l.s4 1934713408
        %v1263 = vunpack.c.0.s8 %v1262
        %v1264 = vperm.slane %v1256, %v1263
        %v1265 = vrot.slane %v1248, 4
        %v1266 = vsel %vm557, 0.0, %v1265
        %v1267 = vrot.slane %v1252, 4
        %v1268 = vsel %vm557, 0.0, %v1267
        %v1269 = vrot.slane %v1260, 4
        %v1270 = vsel %vm557, 0.0, %v1269
        %v1271 = vrot.slane %v1264, 4
        %v1272 = vsel %vm557, 0.0, %v1271
        %v1273 = vsel %vm557, %v1267, %v1248
        %v1275 = vunpack.c.l.s4 1983009808
        %v1276 = vunpack.c.0.s8 %v1275
        %v1277 = vperm.slane %v1273, %v1276
        %v1278 = vrot.slane %v1268, 4
        %v1279 = vsel %vm557, %v1278, %v1266
        %v1281 = vunpack.c.l.s4 1983009808
        %v1282 = vunpack.c.0.s8 %v1281
        %v1283 = vperm.slane %v1279, %v1282
        %v1284 = vsel %vm557, %v1271, %v1260
        %v1286 = vunpack.c.l.s4 1983009808
        %v1287 = vunpack.c.0.s8 %v1286
        %v1288 = vperm.slane %v1284, %v1287
        %v1289 = vrot.slane %v1272, 4
        %v1290 = vsel %vm557, %v1289, %v1270
        %v1292 = vunpack.c.l.s4 1983009808
        %v1293 = vunpack.c.0.s8 %v1292
        %v1294 = vperm.slane %v1290, %v1293
        %v1295 = vrot.slane %v1283, 4
        %v1296 = vsel %vm557, %v1295, %v1277
        %v1297 = vrot.slane %v1277, 4
        %v1298 = vsel %vm557, %v1283, %v1297
        %v1300 = vunpack.c.l.s4 1934713408
        %v1301 = vunpack.c.0.s8 %v1300
        %v1302 = vperm.slane %v1296, %v1301
        %v1304 = vunpack.c.l.s4 1934713408
        %v1305 = vunpack.c.0.s8 %v1304
        %v1306 = vperm.slane %v1298, %v1305
        %v1307 = vrot.slane %v1294, 4
        %v1308 = vsel %vm557, %v1307, %v1288
        %v1309 = vrot.slane %v1288, 4
        %v1310 = vsel %vm557, %v1294, %v1309
        %v1312 = vunpack.c.l.s4 1934713408
        %v1313 = vunpack.c.0.s8 %v1312
        %v1314 = vperm.slane %v1308, %v1313
        %v1316 = vunpack.c.l.s4 1934713408
        %v1317 = vunpack.c.0.s8 %v1316
        %v1318 = vperm.slane %v1310, %v1317
        %v1319 = vrot.slane %v1314, 4
        %v1320 = vsel %vm557, %v1319, %v1302
        %v1321 = vrot.slane %v1302, 4
        %v1322 = vsel %vm557, %v1314, %v1321
        %v1323 = vrot.slane %v1318, 4
        %v1324 = vsel %vm557, %v1323, %v1306
        %v1325 = vrot.slane %v1306, 4
        %v1326 = vsel %vm557, %v1318, %v1325
        %1328 = vrot.lane.b32.xlu0 %v1322, 8
        %v1329 = vpop.permute.xlu0 %1328
        %1332 = vrot.lane.b32.xlu0 %v1324, 16
        %v1333 = vpop.permute.xlu0 %1332
        %1336 = vrot.lane.b32.xlu0 %v1326, 24
        %v1337 = vpop.permute.xlu0 %1336
        %v1339 = vsel %vm907, %v1320, %v1329
        %vm1340 = vcmask 130048
        %v1341 = vsel %vm1340, %v1339, %v1333
        %vm1342 = vcmask 195584
        %v1343 = vsel %vm1342, %v1341, %v1337
        %v1344 = vld [vmem:[#allocation11] sm:$0xff]
        %v1345 = vld [vmem:[#allocation11 + $0x8] sm:$0xff]
        %v1346 = vld [vmem:[#allocation11 + $0x10] sm:$0xff]
        %v1347 = vld [vmem:[#allocation11 + $0x18] sm:$0xff]
        %v1349 = vsel %vm395, %v1343, 0
        %v1352 = vsel %vm395, %v1344, 0
        %v1355 = vsel %vm395, %v1345, 0
        %v1358 = vsel %vm395, %v1346, 0
        %v1361 = vsel %vm395, %v1347, 0
        %1363 = vmatpush.xpose.msra.mxu0 0.0
        %1364 = vmatpush.xpose.msra.mxu0 0.0
        %1365 = vmatpush.xpose.msra.mxu0 0.0
        %1366 = vmatpush.xpose.msra.mxu0 0.0
        %1367 = vmatpush.xpose.msra.mxu0 0.0
        %1368 = vmatpush.xpose.msra.mxu0 0.0
        %1369 = vmatpush.xpose.msra.mxu0 0.0
        %1370 = vmatpush.xpose.msra.mxu0 0.0
        %1371 = vmatpush.xpose.msra.mxu0 0.0
        %1372 = vmatpush.xpose.msra.mxu0 0.0
        %1373 = vmatpush.xpose.msra.mxu0 0.0
        %1374 = vmatpush.xpose.msra.mxu0 0.0
        %1375 = vmatpush.xpose.msra.mxu0 %v1361
        %1376 = vmatpush.xpose.msra.mxu0 %v1358
        %1377 = vmatpush.xpose.msra.mxu0 %v1355
        %1378 = vmatpush.xpose.msra.mxu0 %v1352
        %1379 = vmatmul.f32.gmra.mxu0 %v1349
        %v1380 = vpop.f32.mrf.mxu0
        %v1381 = vadd.f32 0.0, %v1380
        %1382 = vdwg.mxu0
        %v1383 = vadd.f32 %v394, %v1381
        %1384 = vst.msk [vmem:[%s393] sm:$0xff] %vm395, %v1383
        %s1385 = sand.u32 %s203, 1
        %s1386 = scalar_lea.sflag [#allocation4], %s1385
        %s1387 = sand.u32 %s203, 1
        %s1388 = smul.addr %s1387, 8
        %s1389 = scalar_lea.vmem [#allocation13], %s1388
        // Predicated region
        $region73: #{tpu_custom_call.1} parent=47 // pred_check
          %p1390 = pneg %p213
        $region74: #{tpu_custom_call.1} parent=47 // pred_check_branch
          %1392 = sbr.rel (%p1390) target = $region76
        $region75: #{tpu_custom_call.1} parent=47 // pred_region
          %1394 = vsyncadd %s1386, 0
          %s1395 = sadd.s32 %s32, %s31
          %s1396 = smul.addr %s1395, 8
          %s1397 = scalar_lea.hbm %s7, %s1396
          %s1399 = sshll.u32 %s1389, 4
          %s1400 = int_to_ptr.vmem [resolvable:$true] %s1399
          %s1401 = sshll.u32 %s1397, 4
          %s1402 = int_to_ptr.hbm [resolvable:$true] %s1401
          %1404 = dma.vmem_to_hbm [thread:$0]  %s1400, 128, %s1402, %s1386
        $region76: #{tpu_custom_call.1} parent=47 // pred_fallthru
          _
      $region48: #{tpu_custom_call.1} parent=5 // pred_fallthru
        _
      %p1405 = scmp.le.s32.totalorder 2, %s22
      // Predicated region
      $region77: #{tpu_custom_call.1} parent=5 // pred_check
        %p1406 = pneg %p1405
      $region78: #{tpu_custom_call.1} parent=5 // pred_check_branch
        %1408 = sbr.rel (%p1406) target = $region80
      $region79: #{tpu_custom_call.1} parent=5 // pred_region
        %s1409 = ssub.s32 %s22, 2
        // Predicated region
        $region81: #{tpu_custom_call.1} parent=79 // pred_check
          %p1410 = pneg %p219
        $region82: #{tpu_custom_call.1} parent=79 // pred_check_branch
          %1412 = sbr.rel (%p1410) target = $region84
        $region83: #{tpu_custom_call.1} parent=79 // pred_region
          %s1413 = sand.u32 %s204, 1
          %s1414 = scalar_lea.sflag [#allocation4], %s1413
          %s1415 = sand.u32 %s204, 1
          %s1416 = smul.addr %s1415, 8
          %s1417 = scalar_lea.vmem [#allocation13], %s1416
          %1419 = dma.done %s1414, 128
        $region84: #{tpu_custom_call.1} parent=79 // pred_fallthru
          _
      $region80: #{tpu_custom_call.1} parent=5 // pred_fallthru
        _
    $region6: #{tpu_custom_call.1} parent=1 // loop_footer
      %s26 = sadd.s32 1, %s22
    $region7: #{tpu_custom_call.1} parent=1 // loop_footer_branch
      %21 = sbr.rel target = $region3
    $region8: #{tpu_custom_call.1} parent=1 // loop_exit
      _
    %1420 = vsyncpa [#allocation3], 1
    %s1421 = scalar_lea.sflag [#allocation3], 1
    %1422 = vsyncpa %s1421, 1
    %1423 = vsyncpa [#allocation6], 1
    %1424 = vsyncpa [#allocation9], 1
    %1425 = vsyncpa [#allocation12], 1
    %1426 = vsyncpa [#allocation4], 1
    %s1427 = scalar_lea.sflag [#allocation4], 1
    %1428 = vsyncpa %s1427, 1

// kernel: tpu_custom_call.1
$region0: #{tpu_custom_call.1}
  #allocation0 [shape = 'u32[]', space=smem, size = 0x4, offset = 0x4, fixed_abs, tag = 'smem constant byte address 0x4 - core index']
  #allocation1 [shape = 'u32[72,128]{1,0:T(1,128)}', space=vmem, size = 0x9000, scoped, tag = 'internal scratch']
  %s0 = inlined_call_operand.hbm [shape: f32[2,8,32], index: 0, kind: input, shape index: {}]
  %s1 = inlined_call_operand.hbm [shape: f32[1,32], index: 1, kind: input, shape index: {}]
  %s2 = inlined_call_operand.vmem [shape: f32[1,32], index: 2, kind: input, shape index: {}]
  %s3 = inlined_call_operand.hbm [shape: f32[32,32], index: 3, kind: input, shape index: {}]
  %s4 = inlined_call_operand.hbm [shape: f32[32,32], index: 4, kind: input, shape index: {}]
  %s5 = inlined_call_operand.hbm [shape: f32[32,32], index: 5, kind: input, shape index: {}]
  %s6 = inlined_call_operand.hbm [shape: f32[32,32], index: 6, kind: input, shape index: {}]
  %s7 = inlined_call_operand.hbm [shape: f32[2,8,32], index: 7, kind: output, shape index: {}]
  %s8 = sld [smem:[#allocation0]]
  $region85: #{tpu_custom_call.1} parent=0
    _
  %s10 = ssub.s32 1, %s8
  %s11 = scalar_select 0, %s10, %s8
  $region1: #{tpu_custom_call.1} parent=0
    #allocation2 [shape = 'u8[8192]{0}', space=vmem, size = 0x2000, scoped, tag = 'input window, operand 0']
    #allocation3 [shape = 's32[2]{0}', space=sflag, size = 0x8, scoped, tag = 'scoped memory for tpu_custom_call.1']
    #allocation4 [shape = 's32[2]{0}', space=sflag, size = 0x8, scoped, tag = 'scoped memory for tpu_custom_call.1']
    #allocation5 [shape = 'u8[512]{0}', space=vmem, size = 0x400, scoped, tag = 'input window, operand 1, single buffered']
    #allocation6 [shape = 's32[1]{0}', space=sflag, size = 0x4, scoped, tag = 'scoped memory for tpu_custom_call.1']
    #allocation7 [shape = 'u8[16384]{0}', space=vmem, size = 0x4000, scoped, tag = 'input window, operand 3, single buffered']
    #allocation8 [shape = 'u8[16384]{0}', space=vmem, size = 0x4000, scoped, tag = 'input window, operand 4, single buffered']
    #allocation9 [shape = 's32[1]{0}', space=sflag, size = 0x4, scoped, tag = 'scoped memory for tpu_custom_call.1']
    #allocation10 [shape = 'u8[16384]{0}', space=vmem, size = 0x4000, scoped, tag = 'input window, operand 5, single buffered']
    #allocation11 [shape = 'u8[16384]{0}', space=vmem, size = 0x4000, scoped, tag = 'input window, operand 6, single buffered']
    #allocation12 [shape = 's32[1]{0}', space=sflag, size = 0x4, scoped, tag = 'scoped memory for tpu_custom_call.1']
    #allocation13 [shape = 'u8[8192]{0}', space=vmem, size = 0x2000, scoped, tag = 'output window, operand 0']
    %12 = vsyncpa [#allocation3], 0
    %s13 = scalar_lea.sflag [#allocation3], 1
    %14 = vsyncpa %s13, 0
    %15 = vsyncpa [#allocation6], 0
    %16 = vsyncpa [#allocation9], 0
    %17 = vsyncpa [#allocation12], 0
    %18 = vsyncpa [#allocation4], 0
    %s19 = scalar_lea.sflag [#allocation4], 1
    %20 = vsyncpa %s19, 0
    loop: start=0, step=1, limit=4
    $region2: #{tpu_custom_call.1} parent=1 // loop_pre_header
      _
    $region3: #{tpu_custom_call.1} parent=1 // loop_header
      %s22 = sphi 0, %s26
      %p23 = scmp.ge.s32.totalorder %s22, 4
      %s29 = sphi 0, %s41
      %s30 = sphi 0, %s37
      %s31 = sphi 0, %s29
      %s32 = sphi 0, %s30
      %s33 = sphi 0, %s31
      %s34 = sphi 0, %s32
      %s46 = sphi 0, %s48
      %s49 = sphi 0, %s46
      %s50 = sphi 0, %s49
      %s66 = sphi 0, %s50
      %s70 = sphi 0, %s70
      %s72 = sphi 0, %s70
      %s73 = sphi 0, %s72
      %s87 = sphi 0, %s73
      %s91 = sphi 0, %s91
      %s93 = sphi 0, %s91
      %s94 = sphi 0, %s93
      %s108 = sphi 0, %s94
      %s112 = sphi 0, %s112
      %s114 = sphi 0, %s112
      %s115 = sphi 0, %s114
      %s129 = sphi 0, %s115
      %s133 = sphi 0, %s133
      %s135 = sphi 0, %s133
      %s136 = sphi 0, %s135
      %s150 = sphi 0, %s136
      %s154 = sphi 0, %s154
      %s156 = sphi 0, %s154
      %s157 = sphi 0, %s156
      %s171 = sphi 0, %s157
      %s175 = sphi 0, %s175
      %s177 = sphi 0, %s175
      %s178 = sphi 0, %s177
      %s192 = sphi 0, %s178
      %s200 = sphi 0, %s202
      %s203 = sphi 0, %s200
      %s204 = sphi 0, %s203
      %s220 = sphi 0, %s204
    $region4: #{tpu_custom_call.1} parent=1 // loop_header_branch
      %25 = sbr.rel (%p23) target = $region8
    $region5: #{tpu_custom_call.1} parent=1 // loop_body
      %s27 = ssub.s32 %s22, 1
      %s28 = ssub.s32 %s22, 2
      %s35 = sadd.s32 1, %s30
      %p36 = scmp.ge.s32.totalorder %s35, 1
      %s37 = scalar_select %p36, 0, %s35
      %s38 = sadd.s32 1, %s29
      %s39 = scalar_select %p36, %s38, %s29
      %p40 = scmp.ge.s32.totalorder %s39, 2
      %s41 = scalar_select %p40, 0, %s39
      %s42 = ssub.s32 %s29, %s41
      %s43 = ssub.s32 %s30, %s37
      %s44 = sor.u32 %s42, %s43
      %p45 = scmp.eq.s32.totalorder %s44, 0
      %s47 = sadd.s32 %s46, 1
      %s48 = scalar_select %p45, %s46, %s47
      %p51 = pneg %p45
      %p52 = scmp.eq.s32.totalorder %s22, 1
      %p53 = por %p51, %p52
      %p54 = scmp.ne.s32.totalorder %s46, %s49
      %p55 = scmp.eq.s32.totalorder %s22, 0
      %p56 = por %p54, %p55
      %p57 = scmp.ne.s32.totalorder %s46, %s49
      %p58 = scmp.eq.s32.totalorder %s27, 1
      %p59 = por %p57, %p58
      %p60 = scmp.ne.s32.totalorder %s49, %s50
      %p61 = scmp.eq.s32.totalorder %s27, 0
      %p62 = por %p60, %p61
      %p63 = scmp.ne.s32.totalorder %s49, %s50
      %p64 = scmp.eq.s32.totalorder %s28, 1
      %p65 = por %p63, %p64
      %p67 = scmp.ne.s32.totalorder %s50, %s66
      %p68 = scmp.eq.s32.totalorder %s28, 0
      %p69 = por %p67, %p68
      %s71 = sadd.s32 %s70, 1
      %p74 = scmp.eq.s32.totalorder %s22, 1
      %p75 = scmp.ne.s32.totalorder %s70, %s72
      %p76 = scmp.eq.s32.totalorder %s22, 0
      %p77 = por %p75, %p76
      %p78 = scmp.ne.s32.totalorder %s70, %s72
      %p79 = scmp.eq.s32.totalorder %s27, 1
      %p80 = por %p78, %p79
      %p81 = scmp.ne.s32.totalorder %s72, %s73
      %p82 = scmp.eq.s32.totalorder %s27, 0
      %p83 = por %p81, %p82
      %p84 = scmp.ne.s32.totalorder %s72, %s73
      %p85 = scmp.eq.s32.totalorder %s28, 1
      %p86 = por %p84, %p85
      %p88 = scmp.ne.s32.totalorder %s73, %s87
      %p89 = scmp.eq.s32.totalorder %s28, 0
      %p90 = por %p88, %p89
      %s92 = sadd.s32 %s91, 1
      %p95 = scmp.eq.s32.totalorder %s22, 1
      %p96 = scmp.ne.s32.totalorder %s91, %s93
      %p97 = scmp.eq.s32.totalorder %s22, 0
      %p98 = por %p96, %p97
      %p99 = scmp.ne.s32.totalorder %s91, %s93
      %p100 = scmp.eq.s32.totalorder %s27, 1
      %p101 = por %p99, %p100
      %p102 = scmp.ne.s32.totalorder %s93, %s94
      %p103 = scmp.eq.s32.totalorder %s27, 0
      %p104 = por %p102, %p103
      %p105 = scmp.ne.s32.totalorder %s93, %s94
      %p106 = scmp.eq.s32.totalorder %s28, 1
      %p107 = por %p105, %p106
      %p109 = scmp.ne.s32.totalorder %s94, %s108
      %p110 = scmp.eq.s32.totalorder %s28, 0
      %p111 = por %p109, %p110
      %s113 = sadd.s32 %s112, 1
      %p116 = scmp.eq.s32.totalorder %s22, 1
      %p117 = scmp.ne.s32.totalorder %s112, %s114
      %p118 = scmp.eq.s32.totalorder %s22, 0
      %p119 = por %p117, %p118
      %p120 = scmp.ne.s32.totalorder %s112, %s114
      %p121 = scmp.eq.s32.totalorder %s27, 1
      %p122 = por %p120, %p121
      %p123 = scmp.ne.s32.totalorder %s114, %s115
      %p124 = scmp.eq.s32.totalorder %s27, 0
      %p125 = por %p123, %p124
      %p126 = scmp.ne.s32.totalorder %s114, %s115
      %p127 = scmp.eq.s32.totalorder %s28, 1
      %p128 = por %p126, %p127
      %p130 = scmp.ne.s32.totalorder %s115, %s129
      %p131 = scmp.eq.s32.totalorder %s28, 0
      %p132 = por %p130, %p131
      %s134 = sadd.s32 %s133, 1
      %p137 = scmp.eq.s32.totalorder %s22, 1
      %p138 = scmp.ne.s32.totalorder %s133, %s135
      %p139 = scmp.eq.s32.totalorder %s22, 0
      %p140 = por %p138, %p139
      %p141 = scmp.ne.s32.totalorder %s133, %s135
      %p142 = scmp.eq.s32.totalorder %s27, 1
      %p143 = por %p141, %p142
      %p144 = scmp.ne.s32.totalorder %s135, %s136
      %p145 = scmp.eq.s32.totalorder %s27, 0
      %p146 = por %p144, %p145
      %p147 = scmp.ne.s32.totalorder %s135, %s136
      %p148 = scmp.eq.s32.totalorder %s28, 1
      %p149 = por %p147, %p148
      %p151 = scmp.ne.s32.totalorder %s136, %s150
      %p152 = scmp.eq.s32.totalorder %s28, 0
      %p153 = por %p151, %p152
      %s155 = sadd.s32 %s154, 1
      %p158 = scmp.eq.s32.totalorder %s22, 1
      %p159 = scmp.ne.s32.totalorder %s154, %s156
      %p160 = scmp.eq.s32.totalorder %s22, 0
      %p161 = por %p159, %p160
      %p162 = scmp.ne.s32.totalorder %s154, %s156
      %p163 = scmp.eq.s32.totalorder %s27, 1
      %p164 = por %p162, %p163
      %p165 = scmp.ne.s32.totalorder %s156, %s157
      %p166 = scmp.eq.s32.totalorder %s27, 0
      %p167 = por %p165, %p166
      %p168 = scmp.ne.s32.totalorder %s156, %s157
      %p169 = scmp.eq.s32.totalorder %s28, 1
      %p170 = por %p168, %p169
      %p172 = scmp.ne.s32.totalorder %s157, %s171
      %p173 = scmp.eq.s32.totalorder %s28, 0
      %p174 = por %p172, %p173
      %s176 = sadd.s32 %s175, 1
      %p179 = scmp.eq.s32.totalorder %s22, 1
      %p180 = scmp.ne.s32.totalorder %s175, %s177
      %p181 = scmp.eq.s32.totalorder %s22, 0
      %p182 = por %p180, %p181
      %p183 = scmp.ne.s32.totalorder %s175, %s177
      %p184 = scmp.eq.s32.totalorder %s27, 1
      %p185 = por %p183, %p184
      %p186 = scmp.ne.s32.totalorder %s177, %s178
      %p187 = scmp.eq.s32.totalorder %s27, 0
      %p188 = por %p186, %p187
      %p189 = scmp.ne.s32.totalorder %s177, %s178
      %p190 = scmp.eq.s32.totalorder %s28, 1
      %p191 = por %p189, %p190
      %p193 = scmp.ne.s32.totalorder %s178, %s192
      %p194 = scmp.eq.s32.totalorder %s28, 0
      %p195 = por %p193, %p194
      %s196 = ssub.s32 %s29, %s41
      %s197 = ssub.s32 %s30, %s37
      %s198 = sor.u32 %s196, %s197
      %p199 = scmp.eq.s32.totalorder %s198, 0
      %s201 = sadd.s32 %s200, 1
      %s202 = scalar_select %p199, %s200, %s201
      %p205 = pneg %p199
      %p206 = scmp.eq.s32.totalorder %s22, 1
      %p207 = por %p205, %p206
      %p208 = scmp.ne.s32.totalorder %s200, %s203
      %p209 = scmp.eq.s32.totalorder %s22, 0
      %p210 = por %p208, %p209
      %p211 = scmp.ne.s32.totalorder %s200, %s203
      %p212 = scmp.eq.s32.totalorder %s27, 1
      %p213 = por %p211, %p212
      %p214 = scmp.ne.s32.totalorder %s203, %s204
      %p215 = scmp.eq.s32.totalorder %s27, 0
      %p216 = por %p214, %p215
      %p217 = scmp.ne.s32.totalorder %s203, %s204
      %p218 = scmp.eq.s32.totalorder %s28, 1
      %p219 = por %p217, %p218
      %p221 = scmp.ne.s32.totalorder %s204, %s220
      %p222 = scmp.eq.s32.totalorder %s28, 0
      %p223 = por %p221, %p222
      %p224 = scmp.le.s32.totalorder 1, %s22
      %p225 = scmp.lt.s32.totalorder %s22, 3
      %p226 = pnand %p224, %p225
      %p227 = pneg %p226
      // Predicated region
      $region9: #{tpu_custom_call.1} parent=5 // pred_check
        _
      $region10: #{tpu_custom_call.1} parent=5 // pred_check_branch
        %229 = sbr.rel (%p226) target = $region12
      $region11: #{tpu_custom_call.1} parent=5 // pred_region
        %s230 = ssub.s32 %s22, 1
        // Predicated region
        $region13: #{tpu_custom_call.1} parent=11 // pred_check
          %p231 = pneg %p83
        $region14: #{tpu_custom_call.1} parent=11 // pred_check_branch
          %233 = sbr.rel (%p231) target = $region16
        $region15: #{tpu_custom_call.1} parent=11 // pred_region
          %235 = vsyncadd [#allocation6], 0
          %s237 = sshll.u32 %s1, 4
          %s238 = int_to_ptr.hbm [resolvable:$true] %s237
          %s239 = sshll.u32 [#allocation5], 4
          %s240 = int_to_ptr.vmem [resolvable:$true] %s239
          %242 = dma.hbm_to_vmem [thread:$0]  %s238, 16, %s240, [#allocation6]
        $region16: #{tpu_custom_call.1} parent=11 // pred_fallthru
          _
        // Predicated region
        $region17: #{tpu_custom_call.1} parent=11 // pred_check
          %p243 = pneg %p104
        $region18: #{tpu_custom_call.1} parent=11 // pred_check_branch
          %245 = sbr.rel (%p243) target = $region20
        $region19: #{tpu_custom_call.1} parent=11 // pred_region
          _
        $region20: #{tpu_custom_call.1} parent=11 // pred_fallthru
          _
        // Predicated region
        $region21: #{tpu_custom_call.1} parent=11 // pred_check
          %p246 = pneg %p125
        $region22: #{tpu_custom_call.1} parent=11 // pred_check_branch
          %248 = sbr.rel (%p246) target = $region24
        $region23: #{tpu_custom_call.1} parent=11 // pred_region
          %250 = vsyncadd [#allocation6], 0
          %s251 = sshll.u32 %s3, 4
          %s252 = int_to_ptr.hbm [resolvable:$true] %s251
          %s253 = sshll.u32 [#allocation7], 4
          %s254 = int_to_ptr.vmem [resolvable:$true] %s253
          %259 = dma.hbm_to_vmem [thread:$0]  %s252, 512, %s254, [#allocation6], 128, 128, 8
        $region24: #{tpu_custom_call.1} parent=11 // pred_fallthru
          _
        // Predicated region
        $region25: #{tpu_custom_call.1} parent=11 // pred_check
          %p260 = pneg %p146
        $region26: #{tpu_custom_call.1} parent=11 // pred_check_branch
          %262 = sbr.rel (%p260) target = $region28
        $region27: #{tpu_custom_call.1} parent=11 // pred_region
          %264 = vsyncadd [#allocation9], 0
          %s265 = sshll.u32 %s4, 4
          %s266 = int_to_ptr.hbm [resolvable:$true] %s265
          %s267 = sshll.u32 [#allocation8], 4
          %s268 = int_to_ptr.vmem [resolvable:$true] %s267
          %273 = dma.hbm_to_vmem [thread:$0]  %s266, 512, %s268, [#allocation9], 128, 128, 8
        $region28: #{tpu_custom_call.1} parent=11 // pred_fallthru
          _
        // Predicated region
        $region29: #{tpu_custom_call.1} parent=11 // pred_check
          %p274 = pneg %p167
        $region30: #{tpu_custom_call.1} parent=11 // pred_check_branch
          %276 = sbr.rel (%p274) target = $region32
        $region31: #{tpu_custom_call.1} parent=11 // pred_region
          %278 = vsyncadd [#allocation9], 0
          %s279 = sshll.u32 %s5, 4
          %s280 = int_to_ptr.hbm [resolvable:$true] %s279
          %s281 = sshll.u32 [#allocation10], 4
          %s282 = int_to_ptr.vmem [resolvable:$true] %s281
          %287 = dma.hbm_to_vmem [thread:$0]  %s280, 512, %s282, [#allocation9], 128, 128, 8
        $region32: #{tpu_custom_call.1} parent=11 // pred_fallthru
          _
        // Predicated region
        $region33: #{tpu_custom_call.1} parent=11 // pred_check
          %p288 = pneg %p188
        $region34: #{tpu_custom_call.1} parent=11 // pred_check_branch
          %290 = sbr.rel (%p288) target = $region36
        $region35: #{tpu_custom_call.1} parent=11 // pred_region
          %292 = vsyncadd [#allocation12], 0
          %s293 = sshll.u32 %s6, 4
          %s294 = int_to_ptr.hbm [resolvable:$true] %s293
          %s295 = sshll.u32 [#allocation11], 4
          %s296 = int_to_ptr.vmem [resolvable:$true] %s295
          %301 = dma.hbm_to_vmem [thread:$0]  %s294, 512, %s296, [#allocation12], 128, 128, 8
        $region36: #{tpu_custom_call.1} parent=11 // pred_fallthru
          _
      $region12: #{tpu_custom_call.1} parent=5 // pred_fallthru
        _
      %p302 = scmp.lt.s32.totalorder %s22, 2
      // Predicated region
      $region37: #{tpu_custom_call.1} parent=5 // pred_check
        %p303 = pneg %p302
      $region38: #{tpu_custom_call.1} parent=5 // pred_check_branch
        %305 = sbr.rel (%p303) target = $region40
      $region39: #{tpu_custom_call.1} parent=5 // pred_region
        // Predicated region
        $region41: #{tpu_custom_call.1} parent=39 // pred_check
          %p306 = pneg %p56
        $region42: #{tpu_custom_call.1} parent=39 // pred_check_branch
          %308 = sbr.rel (%p306) target = $region44
        $region43: #{tpu_custom_call.1} parent=39 // pred_region
          %s309 = sand.u32 %s46, 1
          %s310 = scalar_lea.sflag [#allocation3], %s309
          %s311 = sand.u32 %s46, 1
          %s312 = smul.addr %s311, 8
          %s313 = scalar_lea.vmem [#allocation2], %s312
          %315 = vsyncadd %s310, 0
          %s316 = sadd.s32 %s30, %s29
          %s317 = smul.addr %s316, 8
          %s318 = scalar_lea.hbm %s0, %s317
          %s320 = sshll.u32 %s318, 4
          %s321 = int_to_ptr.hbm [resolvable:$true] %s320
          %s322 = sshll.u32 %s313, 4
          %s323 = int_to_ptr.vmem [resolvable:$true] %s322
          %325 = dma.hbm_to_vmem [thread:$0]  %s321, 128, %s323, %s310
        $region44: #{tpu_custom_call.1} parent=39 // pred_fallthru
          _
      $region40: #{tpu_custom_call.1} parent=5 // pred_fallthru
        _
      %p326 = scmp.le.s32.totalorder 1, %s22
      %p327 = scmp.lt.s32.totalorder %s22, 3
      %p328 = pnand %p326, %p327
      %p329 = pneg %p328
      // Predicated region
      $region45: #{tpu_custom_call.1} parent=5 // pred_check
        _
      $region46: #{tpu_custom_call.1} parent=5 // pred_check_branch
        %331 = sbr.rel (%p328) target = $region48
      $region47: #{tpu_custom_call.1} parent=5 // pred_region
        %s332 = ssub.s32 %s22, 1
        %s333 = sand.u32 %s49, 1
        %s334 = scalar_lea.sflag [#allocation3], %s333
        %s335 = sand.u32 %s49, 1
        %s336 = smul.addr %s335, 8
        %s337 = scalar_lea.vmem [#allocation2], %s336
        // Predicated region
        $region49: #{tpu_custom_call.1} parent=47 // pred_check
          %p338 = pneg %p62
        $region50: #{tpu_custom_call.1} parent=47 // pred_check_branch
          %340 = sbr.rel (%p338) target = $region52
        $region51: #{tpu_custom_call.1} parent=47 // pred_region
          %342 = dma.done %s334, 128
        $region52: #{tpu_custom_call.1} parent=47 // pred_fallthru
          _
        // Predicated region
        $region53: #{tpu_custom_call.1} parent=47 // pred_check
          %p343 = pneg %p83
        $region54: #{tpu_custom_call.1} parent=47 // pred_check_branch
          %345 = sbr.rel (%p343) target = $region56
        $region55: #{tpu_custom_call.1} parent=47 // pred_region
          %347 = dma.done [#allocation6], 16
        $region56: #{tpu_custom_call.1} parent=47 // pred_fallthru
          _
        // Predicated region
        $region57: #{tpu_custom_call.1} parent=47 // pred_check
          %p348 = pneg %p125
        $region58: #{tpu_custom_call.1} parent=47 // pred_check_branch
          %350 = sbr.rel (%p348) target = $region60
        $region59: #{tpu_custom_call.1} parent=47 // pred_region
          %352 = dma.done [#allocation6], 512
        $region60: #{tpu_custom_call.1} parent=47 // pred_fallthru
          _
        // Predicated region
        $region61: #{tpu_custom_call.1} parent=47 // pred_check
          %p353 = pneg %p146
        $region62: #{tpu_custom_call.1} parent=47 // pred_check_branch
          %355 = sbr.rel (%p353) target = $region64
        $region63: #{tpu_custom_call.1} parent=47 // pred_region
          %357 = dma.done [#allocation9], 512
        $region64: #{tpu_custom_call.1} parent=47 // pred_fallthru
          _
        // Predicated region
        $region65: #{tpu_custom_call.1} parent=47 // pred_check
          %p358 = pneg %p167
        $region66: #{tpu_custom_call.1} parent=47 // pred_check_branch
          %360 = sbr.rel (%p358) target = $region68
        $region67: #{tpu_custom_call.1} parent=47 // pred_region
          %362 = dma.done [#allocation9], 512
        $region68: #{tpu_custom_call.1} parent=47 // pred_fallthru
          _
        // Predicated region
        $region69: #{tpu_custom_call.1} parent=47 // pred_check
          %p363 = pneg %p188
        $region70: #{tpu_custom_call.1} parent=47 // pred_check_branch
          %365 = sbr.rel (%p363) target = $region72
        $region71: #{tpu_custom_call.1} parent=47 // pred_region
          %367 = dma.done [#allocation12], 512
        $region72: #{tpu_custom_call.1} parent=47 // pred_fallthru
          _
        %s368 = sand.u32 %s49, 1
        %s369 = scalar_lea.sflag [#allocation3], %s368
        %s370 = sand.u32 %s49, 1
        %s371 = smul.addr %s370, 8
        %s372 = scalar_lea.vmem [#allocation2], %s371
        %p373 = pneg %p62
        %p374 = pneg %p59
        %p375 = pneg %p83
        %p376 = pneg %p80
        %p377 = pneg %p104
        %p378 = pneg %p101
        %p379 = pneg %p125
        %p380 = pneg %p122
        %p381 = pneg %p146
        %p382 = pneg %p143
        %p383 = pneg %p167
        %p384 = pneg %p164
        %p385 = pneg %p188
        %p386 = pneg %p185
        %p387 = pneg %p216
        %p388 = pneg %p213
        %s389 = sand.u32 %s203, 1
        %s390 = scalar_lea.sflag [#allocation4], %s389
        %s391 = sand.u32 %s203, 1
        %s392 = smul.addr %s391, 8
        %s393 = scalar_lea.vmem [#allocation13], %s392
        %v394 = vld [vmem:[%s337] sm:$0xff]
        %vm395 = vcmask 261120
        %v396 = vsel %vm395, %v394, 0.0
        %397 = vadd.xlane.f32.xlu0 %v396
        %v398 = vpop.xlane.xlu0 %397
        %v399 = vrcp.pop 32.0
        %v400 = vmul.f32 32.0, %v399
        %v401 = vsub.f32 1.0, %v400
        %v402 = vmul.f32 %v399, %v401
        %v403 = vadd.f32 %v399, %v402
        %vm404 = vweird.f32 %v399
        %v405 = vsel %vm404, %v399, %v403
        %v406 = vmul.f32 %v398, %v405
        %v407 = vsub.f32 %v394, %v406
        %v408 = vmul.f32 %v407, %v407
        %v409 = vsel %vm395, %v408, 0.0
        %410 = vadd.xlane.f32.xlu0 %v409
        %v411 = vpop.xlane.xlu0 %410
        %v412 = vmul.f32 %v411, %v405
        %v413 = vadd.f32 %v412, 1e-06
        %v414 = vrsqrt.pop %v413
        %v415 = vmul.f32 %v414, %v413
        %v416 = vmul.f32 %v415, %v414
        %v417 = vmul.f32 0.5, %v416
        %v418 = vsub.f32 1.5, %v417
        %v419 = vmul.f32 %v414, %v418
        %vm420 = vweird.f32 %v413
        %vm421 = vweird.f32 %v414
        %vm422 = vmor %vm420, %vm421
        %v423 = vsel %vm422, %v414, %v419
        %v424 = vmul.f32 %v407, %v423
        %v425 = vld [vmem:[#allocation5] sm:$0x1]
        %v427 = vperm.slane %v425, 0
        %v429 = vmul.f32 %v427, %v424
        %v430 = vld [vmem:[%s2] sm:$0x1]
        %v432 = vperm.slane %v430, 0
        %v434 = vadd.f32 %v429, %v432
        %v435 = vld [vmem:[#allocation7] sm:$0xff]
        %v436 = vld [vmem:[#allocation7 + $0x8] sm:$0xff]
        %v437 = vld [vmem:[#allocation7 + $0x10] sm:$0xff]
        %v438 = vld [vmem:[#allocation7 + $0x18] sm:$0xff]
        %v440 = vsel %vm395, %v434, 0
        %v443 = vsel %vm395, %v435, 0
        %v446 = vsel %vm395, %v436, 0
        %v449 = vsel %vm395, %v437, 0
        %v452 = vsel %vm395, %v438, 0
        %454 = vmatpush.xpose.msra.mxu0 0.0
        %455 = vmatpush.xpose.msra.mxu0 0.0
        %456 = vmatpush.xpose.msra.mxu0 0.0
        %457 = vmatpush.xpose.msra.mxu0 0.0
        %458 = vmatpush.xpose.msra.mxu0 0.0
        %459 = vmatpush.xpose.msra.mxu0 0.0
        %460 = vmatpush.xpose.msra.mxu0 0.0
        %461 = vmatpush.xpose.msra.mxu0 0.0
        %462 = vmatpush.xpose.msra.mxu0 0.0
        %463 = vmatpush.xpose.msra.mxu0 0.0
        %464 = vmatpush.xpose.msra.mxu0 0.0
        %465 = vmatpush.xpose.msra.mxu0 0.0
        %466 = vmatpush.xpose.msra.mxu0 %v452
        %467 = vmatpush.xpose.msra.mxu0 %v449
        %468 = vmatpush.xpose.msra.mxu0 %v446
        %469 = vmatpush.xpose.msra.mxu0 %v443
        %470 = vmatmul.f32.gmra.mxu0 %v440
        %v471 = vpop.f32.mrf.mxu0
        %v472 = vadd.f32 0.0, %v471
        %473 = vdwg.mxu0
        %v474 = vld [vmem:[#allocation8] sm:$0xff]
        %v475 = vld [vmem:[#allocation8 + $0x8] sm:$0xff]
        %v476 = vld [vmem:[#allocation8 + $0x10] sm:$0xff]
        %v477 = vld [vmem:[#allocation8 + $0x18] sm:$0xff]
        %v479 = vsel %vm395, %v474, 0
        %v482 = vsel %vm395, %v475, 0
        %v485 = vsel %vm395, %v476, 0
        %v488 = vsel %vm395, %v477, 0
        %490 = vmatpush.xpose.msra.mxu0 0.0
        %491 = vmatpush.xpose.msra.mxu0 0.0
        %492 = vmatpush.xpose.msra.mxu0 0.0
        %493 = vmatpush.xpose.msra.mxu0 0.0
        %494 = vmatpush.xpose.msra.mxu0 0.0
        %495 = vmatpush.xpose.msra.mxu0 0.0
        %496 = vmatpush.xpose.msra.mxu0 0.0
        %497 = vmatpush.xpose.msra.mxu0 0.0
        %498 = vmatpush.xpose.msra.mxu0 0.0
        %499 = vmatpush.xpose.msra.mxu0 0.0
        %500 = vmatpush.xpose.msra.mxu0 0.0
        %501 = vmatpush.xpose.msra.mxu0 0.0
        %502 = vmatpush.xpose.msra.mxu0 %v488
        %503 = vmatpush.xpose.msra.mxu0 %v485
        %504 = vmatpush.xpose.msra.mxu0 %v482
        %505 = vmatpush.xpose.msra.mxu0 %v479
        %506 = vmatmul.f32.gmra.mxu0 %v440
        %v507 = vpop.f32.mrf.mxu0
        %v508 = vadd.f32 0.0, %v507
        %509 = vdwg.mxu0
        %v510 = vld [vmem:[#allocation10] sm:$0xff]
        %v511 = vld [vmem:[#allocation10 + $0x8] sm:$0xff]
        %v512 = vld [vmem:[#allocation10 + $0x10] sm:$0xff]
        %v513 = vld [vmem:[#allocation10 + $0x18] sm:$0xff]
        %v515 = vsel %vm395, %v510, 0
        %v518 = vsel %vm395, %v511, 0
        %v521 = vsel %vm395, %v512, 0
        %v524 = vsel %vm395, %v513, 0
        %526 = vmatpush.xpose.msra.mxu0 0.0
        %527 = vmatpush.xpose.msra.mxu0 0.0
        %528 = vmatpush.xpose.msra.mxu0 0.0
        %529 = vmatpush.xpose.msra.mxu0 0.0
        %530 = vmatpush.xpose.msra.mxu0 0.0
        %531 = vmatpush.xpose.msra.mxu0 0.0
        %532 = vmatpush.xpose.msra.mxu0 0.0
        %533 = vmatpush.xpose.msra.mxu0 0.0
        %534 = vmatpush.xpose.msra.mxu0 0.0
        %535 = vmatpush.xpose.msra.mxu0 0.0
        %536 = vmatpush.xpose.msra.mxu0 0.0
        %537 = vmatpush.xpose.msra.mxu0 0.0
        %538 = vmatpush.xpose.msra.mxu0 %v524
        %539 = vmatpush.xpose.msra.mxu0 %v521
        %540 = vmatpush.xpose.msra.mxu0 %v518
        %541 = vmatpush.xpose.msra.mxu0 %v515
        %542 = vmatmul.f32.gmra.mxu0 %v440
        %v543 = vpop.f32.mrf.mxu0
        %v544 = vadd.f32 0.0, %v543
        %545 = vdwg.mxu0
        %547 = vrot.lane.b32.xlu0 %v472, 120
        %v548 = vpop.permute.xlu0 %547
        %550 = vrot.lane.b32.xlu0 %v472, 112
        %v551 = vpop.permute.xlu0 %550
        %553 = vrot.lane.b32.xlu0 %v472, 104
        %v554 = vpop.permute.xlu0 %553
        %v556 = vrot.slane %v551, 4
        %vm557 = vcmask 1047556
        %v558 = vsel %vm557, %v556, %v472
        %v559 = vrot.slane %v472, 4
        %v560 = vsel %vm557, %v551, %v559
        %v562 = vunpack.c.l.s4 1983009808
        %v563 = vunpack.c.0.s8 %v562
        %v564 = vperm.slane %v558, %v563
        %v566 = vunpack.c.l.s4 1983009808
        %v567 = vunpack.c.0.s8 %v566
        %v568 = vperm.slane %v560, %v567
        %v569 = vrot.slane %v554, 4
        %v570 = vsel %vm557, %v569, %v548
        %v571 = vrot.slane %v548, 4
        %v572 = vsel %vm557, %v554, %v571
        %v574 = vunpack.c.l.s4 1983009808
        %v575 = vunpack.c.0.s8 %v574
        %v576 = vperm.slane %v570, %v575
        %v578 = vunpack.c.l.s4 1983009808
        %v579 = vunpack.c.0.s8 %v578
        %v580 = vperm.slane %v572, %v579
        %v581 = vrot.slane %v576, 4
        %v582 = vsel %vm557, %v581, %v564
        %v583 = vrot.slane %v564, 4
        %v584 = vsel %vm557, %v576, %v583
        %v586 = vunpack.c.l.s4 1934713408
        %v587 = vunpack.c.0.s8 %v586
        %v588 = vperm.slane %v582, %v587
        %v590 = vunpack.c.l.s4 1934713408
        %v591 = vunpack.c.0.s8 %v590
        %v592 = vperm.slane %v584, %v591
        %v593 = vrot.slane %v580, 4
        %v594 = vsel %vm557, %v593, %v568
        %v595 = vrot.slane %v568, 4
        %v596 = vsel %vm557, %v580, %v595
        %v598 = vunpack.c.l.s4 1934713408
        %v599 = vunpack.c.0.s8 %v598
        %v600 = vperm.slane %v594, %v599
        %v602 = vunpack.c.l.s4 1934713408
        %v603 = vunpack.c.0.s8 %v602
        %v604 = vperm.slane %v596, %v603
        %v605 = vrot.slane %v588, 4
        %v606 = vsel %vm557, 0.0, %v605
        %v607 = vrot.slane %v592, 4
        %v608 = vsel %vm557, 0.0, %v607
        %v609 = vrot.slane %v600, 4
        %v610 = vsel %vm557, 0.0, %v609
        %v611 = vrot.slane %v604, 4
        %v612 = vsel %vm557, 0.0, %v611
        %v613 = vsel %vm557, %v607, %v588
        %v615 = vunpack.c.l.s4 1983009808
        %v616 = vunpack.c.0.s8 %v615
        %v617 = vperm.slane %v613, %v616
        %v618 = vrot.slane %v608, 4
        %v619 = vsel %vm557, %v618, %v606
        %v621 = vunpack.c.l.s4 1983009808
        %v622 = vunpack.c.0.s8 %v621
        %v623 = vperm.slane %v619, %v622
        %v624 = vsel %vm557, %v611, %v600
        %v626 = vunpack.c.l.s4 1983009808
        %v627 = vunpack.c.0.s8 %v626
        %v628 = vperm.slane %v624, %v627
        %v629 = vrot.slane %v612, 4
        %v630 = vsel %vm557, %v629, %v610
        %v632 = vunpack.c.l.s4 1983009808
        %v633 = vunpack.c.0.s8 %v632
        %v634 = vperm.slane %v630, %v633
        %v635 = vrot.slane %v623, 4
        %v636 = vsel %vm557, %v635, %v617
        %v637 = vrot.slane %v617, 4
        %v638 = vsel %vm557, %v623, %v637
        %v640 = vunpack.c.l.s4 1934713408
        %v641 = vunpack.c.0.s8 %v640
        %v642 = vperm.slane %v636, %v641
        %v644 = vunpack.c.l.s4 1934713408
        %v645 = vunpack.c.0.s8 %v644
        %v646 = vperm.slane %v638, %v645
        %v647 = vrot.slane %v634, 4
        %v648 = vsel %vm557, %v647, %v628
        %v649 = vrot.slane %v628, 4
        %v650 = vsel %vm557, %v634, %v649
        %v652 = vunpack.c.l.s4 1934713408
        %v653 = vunpack.c.0.s8 %v652
        %v654 = vperm.slane %v648, %v653
        %v656 = vunpack.c.l.s4 1934713408
        %v657 = vunpack.c.0.s8 %v656
        %v658 = vperm.slane %v650, %v657
        %v659 = vrot.slane %v654, 4
        %v660 = vsel %vm557, %v659, %v642
        %v661 = vrot.slane %v642, 4
        %v662 = vsel %vm557, %v654, %v661
        %v663 = vrot.slane %v658, 4
        %v664 = vsel %vm557, %v663, %v646
        %v665 = vrot.slane %v646, 4
        %v666 = vsel %vm557, %v658, %v665
        %668 = vrot.lane.b32.xlu0 %v508, 120
        %v669 = vpop.permute.xlu0 %668
        %671 = vrot.lane.b32.xlu0 %v508, 112
        %v672 = vpop.permute.xlu0 %671
        %674 = vrot.lane.b32.xlu0 %v508, 104
        %v675 = vpop.permute.xlu0 %674
        %v677 = vrot.slane %v672, 4
        %v678 = vsel %vm557, %v677, %v508
        %v679 = vrot.slane %v508, 4
        %v680 = vsel %vm557, %v672, %v679
        %v682 = vunpack.c.l.s4 1983009808
        %v683 = vunpack.c.0.s8 %v682
        %v684 = vperm.slane %v678, %v683
        %v686 = vunpack.c.l.s4 1983009808
        %v687 = vunpack.c.0.s8 %v686
        %v688 = vperm.slane %v680, %v687
        %v689 = vrot.slane %v675, 4
        %v690 = vsel %vm557, %v689, %v669
        %v691 = vrot.slane %v669, 4
        %v692 = vsel %vm557, %v675, %v691
        %v694 = vunpack.c.l.s4 1983009808
        %v695 = vunpack.c.0.s8 %v694
        %v696 = vperm.slane %v690, %v695
        %v698 = vunpack.c.l.s4 1983009808
        %v699 = vunpack.c.0.s8 %v698
        %v700 = vperm.slane %v692, %v699
        %v701 = vrot.slane %v696, 4
        %v702 = vsel %vm557, %v701, %v684
        %v703 = vrot.slane %v684, 4
        %v704 = vsel %vm557, %v696, %v703
        %v706 = vunpack.c.l.s4 1934713408
        %v707 = vunpack.c.0.s8 %v706
        %v708 = vperm.slane %v702, %v707
        %v710 = vunpack.c.l.s4 1934713408
        %v711 = vunpack.c.0.s8 %v710
        %v712 = vperm.slane %v704, %v711
        %v713 = vrot.slane %v700, 4
        %v714 = vsel %vm557, %v713, %v688
        %v715 = vrot.slane %v688, 4
        %v716 = vsel %vm557, %v700, %v715
        %v718 = vunpack.c.l.s4 1934713408
        %v719 = vunpack.c.0.s8 %v718
        %v720 = vperm.slane %v714, %v719
        %v722 = vunpack.c.l.s4 1934713408
        %v723 = vunpack.c.0.s8 %v722
        %v724 = vperm.slane %v716, %v723
        %v725 = vrot.slane %v708, 4
        %v726 = vsel %vm557, 0.0, %v725
        %v727 = vrot.slane %v712, 4
        %v728 = vsel %vm557, 0.0, %v727
        %v729 = vrot.slane %v720, 4
        %v730 = vsel %vm557, 0.0, %v729
        %v731 = vrot.slane %v724, 4
        %v732 = vsel %vm557, 0.0, %v731
        %v733 = vsel %vm557, %v727, %v708
        %v735 = vunpack.c.l.s4 1983009808
        %v736 = vunpack.c.0.s8 %v735
        %v737 = vperm.slane %v733, %v736
        %v738 = vrot.slane %v728, 4
        %v739 = vsel %vm557, %v738, %v726
        %v741 = vunpack.c.l.s4 1983009808
        %v742 = vunpack.c.0.s8 %v741
        %v743 = vperm.slane %v739, %v742
        %v744 = vsel %vm557, %v731, %v720
        %v746 = vunpack.c.l.s4 1983009808
        %v747 = vunpack.c.0.s8 %v746
        %v748 = vperm.slane %v744, %v747
        %v749 = vrot.slane %v732, 4
        %v750 = vsel %vm557, %v749, %v730
        %v752 = vunpack.c.l.s4 1983009808
        %v753 = vunpack.c.0.s8 %v752
        %v754 = vperm.slane %v750, %v753
        %v755 = vrot.slane %v743, 4
        %v756 = vsel %vm557, %v755, %v737
        %v757 = vrot.slane %v737, 4
        %v758 = vsel %vm557, %v743, %v757
        %v760 = vunpack.c.l.s4 1934713408
        %v761 = vunpack.c.0.s8 %v760
        %v762 = vperm.slane %v756, %v761
        %v764 = vunpack.c.l.s4 1934713408
        %v765 = vunpack.c.0.s8 %v764
        %v766 = vperm.slane %v758, %v765
        %v767 = vrot.slane %v754, 4
        %v768 = vsel %vm557, %v767, %v748
        %v769 = vrot.slane %v748, 4
        %v770 = vsel %vm557, %v754, %v769
        %v772 = vunpack.c.l.s4 1934713408
        %v773 = vunpack.c.0.s8 %v772
        %v774 = vperm.slane %v768, %v773
        %v776 = vunpack.c.l.s4 1934713408
        %v777 = vunpack.c.0.s8 %v776
        %v778 = vperm.slane %v770, %v777
        %v779 = vrot.slane %v774, 4
        %v780 = vsel %vm557, %v779, %v762
        %v781 = vrot.slane %v762, 4
        %v782 = vsel %vm557, %v774, %v781
        %v783 = vrot.slane %v778, 4
        %v784 = vsel %vm557, %v783, %v766
        %v785 = vrot.slane %v766, 4
        %v786 = vsel %vm557, %v778, %v785
        %788 = vrot.lane.b32.xlu0 %v544, 120
        %v789 = vpop.permute.xlu0 %788
        %791 = vrot.lane.b32.xlu0 %v544, 112
        %v792 = vpop.permute.xlu0 %791
        %794 = vrot.lane.b32.xlu0 %v544, 104
        %v795 = vpop.permute.xlu0 %794
        %v797 = vrot.slane %v792, 4
        %v798 = vsel %vm557, %v797, %v544
        %v799 = vrot.slane %v544, 4
        %v800 = vsel %vm557, %v792, %v799
        %v802 = vunpack.c.l.s4 1983009808
        %v803 = vunpack.c.0.s8 %v802
        %v804 = vperm.slane %v798, %v803
        %v806 = vunpack.c.l.s4 1983009808
        %v807 = vunpack.c.0.s8 %v806
        %v808 = vperm.slane %v800, %v807
        %v809 = vrot.slane %v795, 4
        %v810 = vsel %vm557, %v809, %v789
        %v811 = vrot.slane %v789, 4
        %v812 = vsel %vm557, %v795, %v811
        %v814 = vunpack.c.l.s4 1983009808
        %v815 = vunpack.c.0.s8 %v814
        %v816 = vperm.slane %v810, %v815
        %v818 = vunpack.c.l.s4 1983009808
        %v819 = vunpack.c.0.s8 %v818
        %v820 = vperm.slane %v812, %v819
        %v821 = vrot.slane %v816, 4
        %v822 = vsel %vm557, %v821, %v804
        %v823 = vrot.slane %v804, 4
        %v824 = vsel %vm557, %v816, %v823
        %v826 = vunpack.c.l.s4 1934713408
        %v827 = vunpack.c.0.s8 %v826
        %v828 = vperm.slane %v822, %v827
        %v830 = vunpack.c.l.s4 1934713408
        %v831 = vunpack.c.0.s8 %v830
        %v832 = vperm.slane %v824, %v831
        %v833 = vrot.slane %v820, 4
        %v834 = vsel %vm557, %v833, %v808
        %v835 = vrot.slane %v808, 4
        %v836 = vsel %vm557, %v820, %v835
        %v838 = vunpack.c.l.s4 1934713408
        %v839 = vunpack.c.0.s8 %v838
        %v840 = vperm.slane %v834, %v839
        %v842 = vunpack.c.l.s4 1934713408
        %v843 = vunpack.c.0.s8 %v842
        %v844 = vperm.slane %v836, %v843
        %v845 = vrot.slane %v828, 4
        %v846 = vsel %vm557, 0.0, %v845
        %v847 = vrot.slane %v832, 4
        %v848 = vsel %vm557, 0.0, %v847
        %v849 = vrot.slane %v840, 4
        %v850 = vsel %vm557, 0.0, %v849
        %v851 = vrot.slane %v844, 4
        %v852 = vsel %vm557, 0.0, %v851
        %v853 = vsel %vm557, %v847, %v828
        %v855 = vunpack.c.l.s4 1983009808
        %v856 = vunpack.c.0.s8 %v855
        %v857 = vperm.slane %v853, %v856
        %v858 = vrot.slane %v848, 4
        %v859 = vsel %vm557, %v858, %v846
        %v861 = vunpack.c.l.s4 1983009808
        %v862 = vunpack.c.0.s8 %v861
        %v863 = vperm.slane %v859, %v862
        %v864 = vsel %vm557, %v851, %v840
        %v866 = vunpack.c.l.s4 1983009808
        %v867 = vunpack.c.0.s8 %v866
        %v868 = vperm.slane %v864, %v867
        %v869 = vrot.slane %v852, 4
        %v870 = vsel %vm557, %v869, %v850
        %v872 = vunpack.c.l.s4 1983009808
        %v873 = vunpack.c.0.s8 %v872
        %v874 = vperm.slane %v870, %v873
        %v875 = vrot.slane %v863, 4
        %v876 = vsel %vm557, %v875, %v857
        %v877 = vrot.slane %v857, 4
        %v878 = vsel %vm557, %v863, %v877
        %v880 = vunpack.c.l.s4 1934713408
        %v881 = vunpack.c.0.s8 %v880
        %v882 = vperm.slane %v876, %v881
        %v884 = vunpack.c.l.s4 1934713408
        %v885 = vunpack.c.0.s8 %v884
        %v886 = vperm.slane %v878, %v885
        %v887 = vrot.slane %v874, 4
        %v888 = vsel %vm557, %v887, %v868
        %v889 = vrot.slane %v868, 4
        %v890 = vsel %vm557, %v874, %v889
        %v892 = vunpack.c.l.s4 1934713408
        %v893 = vunpack.c.0.s8 %v892
        %v894 = vperm.slane %v888, %v893
        %v896 = vunpack.c.l.s4 1934713408
        %v897 = vunpack.c.0.s8 %v896
        %v898 = vperm.slane %v890, %v897
        %v899 = vrot.slane %v894, 4
        %v900 = vsel %vm557, %v899, %v882
        %v901 = vrot.slane %v882, 4
        %v902 = vsel %vm557, %v894, %v901
        %v903 = vrot.slane %v898, 4
        %v904 = vsel %vm557, %v903, %v886
        %v905 = vrot.slane %v886, 4
        %v906 = vsel %vm557, %v898, %v905
        %vm907 = vcmask 64512
        %v909 = vsel %vm907, %v660, 0
        %v912 = vsel %vm907, %v780, 0
        %914 = vmatpush.xpose.msra.mxu0 0.0
        %915 = vmatpush.xpose.msra.mxu0 0.0
        %916 = vmatpush.xpose.msra.mxu0 0.0
        %917 = vmatpush.xpose.msra.mxu0 0.0
        %918 = vmatpush.xpose.msra.mxu0 0.0
        %919 = vmatpush.xpose.msra.mxu0 0.0
        %920 = vmatpush.xpose.msra.mxu0 0.0
        %921 = vmatpush.xpose.msra.mxu0 0.0
        %922 = vmatpush.xpose.msra.mxu0 0.0
        %923 = vmatpush.xpose.msra.mxu0 0.0
        %924 = vmatpush.xpose.msra.mxu0 0.0
        %925 = vmatpush.xpose.msra.mxu0 0.0
        %926 = vmatpush.xpose.msra.mxu0 0.0
        %927 = vmatpush.xpose.msra.mxu0 0.0
        %928 = vmatpush.xpose.msra.mxu0 0.0
        %929 = vmatpush.xpose.msra.mxu0 %v912
        %930 = vmatmul.f32.gmra.mxu0 %v909
        %v931 = vpop.f32.mrf.mxu0
        %v932 = vadd.f32 0.0, %v931
        %933 = vdwg.mxu0
        %v935 = vsel %vm907, %v662, 0
        %v938 = vsel %vm907, %v782, 0
        %940 = vmatpush.xpose.msra.mxu0 0.0
        %941 = vmatpush.xpose.msra.mxu0 0.0
        %942 = vmatpush.xpose.msra.mxu0 0.0
        %943 = vmatpush.xpose.msra.mxu0 0.0
        %944 = vmatpush.xpose.msra.mxu0 0.0
        %945 = vmatpush.xpose.msra.mxu0 0.0
        %946 = vmatpush.xpose.msra.mxu0 0.0
        %947 = vmatpush.xpose.msra.mxu0 0.0
        %948 = vmatpush.xpose.msra.mxu0 0.0
        %949 = vmatpush.xpose.msra.mxu0 0.0
        %950 = vmatpush.xpose.msra.mxu0 0.0
        %951 = vmatpush.xpose.msra.mxu0 0.0
        %952 = vmatpush.xpose.msra.mxu0 0.0
        %953 = vmatpush.xpose.msra.mxu0 0.0
        %954 = vmatpush.xpose.msra.mxu0 0.0
        %955 = vmatpush.xpose.msra.mxu0 %v938
        %956 = vmatmul.f32.gmra.mxu0 %v935
        %v957 = vpop.f32.mrf.mxu0
        %v958 = vadd.f32 0.0, %v957
        %959 = vdwg.mxu0
        %v961 = vsel %vm907, %v664, 0
        %v964 = vsel %vm907, %v784, 0
        %966 = vmatpush.xpose.msra.mxu0 0.0
        %967 = vmatpush.xpose.msra.mxu0 0.0
        %968 = vmatpush.xpose.msra.mxu0 0.0
        %969 = vmatpush.xpose.msra.mxu0 0.0
        %970 = vmatpush.xpose.msra.mxu0 0.0
        %971 = vmatpush.xpose.msra.mxu0 0.0
        %972 = vmatpush.xpose.msra.mxu0 0.0
        %973 = vmatpush.xpose.msra.mxu0 0.0
        %974 = vmatpush.xpose.msra.mxu0 0.0
        %975 = vmatpush.xpose.msra.mxu0 0.0
        %976 = vmatpush.xpose.msra.mxu0 0.0
        %977 = vmatpush.xpose.msra.mxu0 0.0
        %978 = vmatpush.xpose.msra.mxu0 0.0
        %979 = vmatpush.xpose.msra.mxu0 0.0
        %980 = vmatpush.xpose.msra.mxu0 0.0
        %981 = vmatpush.xpose.msra.mxu0 %v964
        %982 = vmatmul.f32.gmra.mxu0 %v961
        %v983 = vpop.f32.mrf.mxu0
        %v984 = vadd.f32 0.0, %v983
        %985 = vdwg.mxu0
        %v987 = vsel %vm907, %v666, 0
        %v990 = vsel %vm907, %v786, 0
        %992 = vmatpush.xpose.msra.mxu0 0.0
        %993 = vmatpush.xpose.msra.mxu0 0.0
        %994 = vmatpush.xpose.msra.mxu0 0.0
        %995 = vmatpush.xpose.msra.mxu0 0.0
        %996 = vmatpush.xpose.msra.mxu0 0.0
        %997 = vmatpush.xpose.msra.mxu0 0.0
        %998 = vmatpush.xpose.msra.mxu0 0.0
        %999 = vmatpush.xpose.msra.mxu0 0.0
        %1000 = vmatpush.xpose.msra.mxu0 0.0
        %1001 = vmatpush.xpose.msra.mxu0 0.0
        %1002 = vmatpush.xpose.msra.mxu0 0.0
        %1003 = vmatpush.xpose.msra.mxu0 0.0
        %1004 = vmatpush.xpose.msra.mxu0 0.0
        %1005 = vmatpush.xpose.msra.mxu0 0.0
        %1006 = vmatpush.xpose.msra.mxu0 0.0
        %1007 = vmatpush.xpose.msra.mxu0 %v990
        %1008 = vmatmul.f32.gmra.mxu0 %v987
        %v1009 = vpop.f32.mrf.mxu0
        %v1010 = vadd.f32 0.0, %v1009
        %1011 = vdwg.mxu0
        %v1012 = vmul.f32 %v932, 0.35355338
        %v1013 = vmul.f32 %v958, 0.35355338
        %v1014 = vmul.f32 %v984, 0.35355338
        %v1015 = vmul.f32 %v1010, 0.35355338
        %s1016 = smul.u32 %s32, 8
        %v1017 = vlaneseq
        %v1018 = vshrl.u32 %v1017, 7
        %v1019 = vstv %s1016
        %v1020 = vadd.s32 %v1019, %v1018
        %v1021 = vlaneseq
        %v1022 = vand.u32 %v1021, 127
        %vm1023 = vcmp.ge.s32.totalorder %v1020, %v1022
        %v1024 = vsel %vm1023, 0.0, -1e+30
        %v1025 = vadd.f32 %v1012, %v1024
        %v1026 = vadd.f32 %v1013, %v1024
        %v1027 = vadd.f32 %v1014, %v1024
        %v1028 = vadd.f32 %v1015, %v1024
        %v1029 = vsel %vm907, %v1025, -inf
        %1030 = vmax.xlane.f32.xlu0 %v1029
        %v1031 = vpop.xlane.xlu0 %1030
        %v1032 = vsel %vm907, %v1026, -inf
        %1033 = vmax.xlane.f32.xlu0 %v1032
        %v1034 = vpop.xlane.xlu0 %1033
        %v1035 = vsel %vm907, %v1027, -inf
        %1036 = vmax.xlane.f32.xlu0 %v1035
        %v1037 = vpop.xlane.xlu0 %1036
        %v1038 = vsel %vm907, %v1028, -inf
        %1039 = vmax.xlane.f32.xlu0 %v1038
        %v1040 = vpop.xlane.xlu0 %1039
        %v1041 = vsub.f32 %v1025, %v1031
        %v1042 = vsub.f32 %v1026, %v1034
        %v1043 = vsub.f32 %v1027, %v1037
        %v1044 = vsub.f32 %v1028, %v1040
        %v1045 = vmul.f32 %v1041, 1.442695
        %v1046 = vpow.pop %v1045
        %v1047 = vmul.f32 %v1042, 1.442695
        %v1048 = vpow.pop %v1047
        %v1049 = vmul.f32 %v1043, 1.442695
        %v1050 = vpow.pop %v1049
        %v1051 = vmul.f32 %v1044, 1.442695
        %v1052 = vpow.pop %v1051
        %v1053 = vsel %vm907, %v1046, 0.0
        %1054 = vadd.xlane.f32.xlu0 %v1053
        %v1055 = vpop.xlane.xlu0 %1054
        %v1056 = vsel %vm907, %v1048, 0.0
        %1057 = vadd.xlane.f32.xlu0 %v1056
        %v1058 = vpop.xlane.xlu0 %1057
        %v1059 = vsel %vm907, %v1050, 0.0
        %1060 = vadd.xlane.f32.xlu0 %v1059
        %v1061 = vpop.xlane.xlu0 %1060
        %v1062 = vsel %vm907, %v1052, 0.0
        %1063 = vadd.xlane.f32.xlu0 %v1062
        %v1064 = vpop.xlane.xlu0 %1063
        %v1065 = vrcp.pop %v1055
        %v1066 = vmul.f32 %v1055, %v1065
        %v1067 = vsub.f32 1.0, %v1066
        %v1068 = vmul.f32 %v1065, %v1067
        %v1069 = vadd.f32 %v1065, %v1068
        %vm1070 = vweird.f32 %v1055
        %vm1071 = vweird.f32 %v1065
        %vm1072 = vmor %vm1070, %vm1071
        %v1073 = vsel %vm1072, %v1065, %v1069
        %v1074 = vand.u32 2147483647, %v1055
        %vm1075 = vcmp.eq.f32.partialorder %v1074, 8.507059e+37
        %v1076 = vand.u32 %v1055, 2147483648
        %v1077 = vor.u32 1.1754944e-38, %v1076
        %v1078 = vsel %vm1075, %v1077, %v1073
        %v1079 = vrcp.pop %v1058
        %v1080 = vmul.f32 %v1058, %v1079
        %v1081 = vsub.f32 1.0, %v1080
        %v1082 = vmul.f32 %v1079, %v1081
        %v1083 = vadd.f32 %v1079, %v1082
        %vm1084 = vweird.f32 %v1058
        %vm1085 = vweird.f32 %v1079
        %vm1086 = vmor %vm1084, %vm1085
        %v1087 = vsel %vm1086, %v1079, %v1083
        %v1088 = vand.u32 2147483647, %v1058
        %vm1089 = vcmp.eq.f32.partialorder %v1088, 8.507059e+37
        %v1090 = vand.u32 %v1058, 2147483648
        %v1091 = vor.u32 1.1754944e-38, %v1090
        %v1092 = vsel %vm1089, %v1091, %v1087
        %v1093 = vrcp.pop %v1061
        %v1094 = vmul.f32 %v1061, %v1093
        %v1095 = vsub.f32 1.0, %v1094
        %v1096 = vmul.f32 %v1093, %v1095
        %v1097 = vadd.f32 %v1093, %v1096
        %vm1098 = vweird.f32 %v1061
        %vm1099 = vweird.f32 %v1093
        %vm1100 = vmor %vm1098, %vm1099
        %v1101 = vsel %vm1100, %v1093, %v1097
        %v1102 = vand.u32 2147483647, %v1061
        %vm1103 = vcmp.eq.f32.partialorder %v1102, 8.507059e+37
        %v1104 = vand.u32 %v1061, 2147483648
        %v1105 = vor.u32 1.1754944e-38, %v1104
        %v1106 = vsel %vm1103, %v1105, %v1101
        %v1107 = vrcp.pop %v1064
        %v1108 = vmul.f32 %v1064, %v1107
        %v1109 = vsub.f32 1.0, %v1108
        %v1110 = vmul.f32 %v1107, %v1109
        %v1111 = vadd.f32 %v1107, %v1110
        %vm1112 = vweird.f32 %v1064
        %vm1113 = vweird.f32 %v1107
        %vm1114 = vmor %vm1112, %vm1113
        %v1115 = vsel %vm1114, %v1107, %v1111
        %v1116 = vand.u32 2147483647, %v1064
        %vm1117 = vcmp.eq.f32.partialorder %v1116, 8.507059e+37
        %v1118 = vand.u32 %v1064, 2147483648
        %v1119 = vor.u32 1.1754944e-38, %v1118
        %v1120 = vsel %vm1117, %v1119, %v1115
        %v1121 = vmul.f32 %v1046, %v1078
        %v1122 = vmul.f32 %v1048, %v1092
        %v1123 = vmul.f32 %v1050, %v1106
        %v1124 = vmul.f32 %v1052, %v1120
        %v1126 = vsel %vm907, %v1121, 0
        %1128 = vmatpush.msra.mxu0 0.0
        %1129 = vmatpush.msra.mxu0 0.0
        %1130 = vmatpush.msra.mxu0 0.0
        %1131 = vmatpush.msra.mxu0 0.0
        %1132 = vmatpush.msra.mxu0 0.0
        %1133 = vmatpush.msra.mxu0 0.0
        %1134 = vmatpush.msra.mxu0 0.0
        %1135 = vmatpush.msra.mxu0 0.0
        %1136 = vmatpush.msra.mxu0 0.0
        %1137 = vmatpush.msra.mxu0 0.0
        %1138 = vmatpush.msra.mxu0 0.0
        %1139 = vmatpush.msra.mxu0 0.0
        %1140 = vmatpush.msra.mxu0 0.0
        %1141 = vmatpush.msra.mxu0 0.0
        %1142 = vmatpush.msra.mxu0 0.0
        %1143 = vmatpush.msra.mxu0 %v900
        %1144 = vmatmul.f32.gmra.mxu0 %v1126
        %v1145 = vpop.f32.mrf.mxu0
        %v1146 = vadd.f32 0.0, %v1145
        %1147 = vdwg.mxu0
        %v1149 = vsel %vm907, %v1122, 0
        %1151 = vmatpush.msra.mxu0 0.0
        %1152 = vmatpush.msra.mxu0 0.0
        %1153 = vmatpush.msra.mxu0 0.0
        %1154 = vmatpush.msra.mxu0 0.0
        %1155 = vmatpush.msra.mxu0 0.0
        %1156 = vmatpush.msra.mxu0 0.0
        %1157 = vmatpush.msra.mxu0 0.0
        %1158 = vmatpush.msra.mxu0 0.0
        %1159 = vmatpush.msra.mxu0 0.0
        %1160 = vmatpush.msra.mxu0 0.0
        %1161 = vmatpush.msra.mxu0 0.0
        %1162 = vmatpush.msra.mxu0 0.0
        %1163 = vmatpush.msra.mxu0 0.0
        %1164 = vmatpush.msra.mxu0 0.0
        %1165 = vmatpush.msra.mxu0 0.0
        %1166 = vmatpush.msra.mxu0 %v902
        %1167 = vmatmul.f32.gmra.mxu0 %v1149
        %v1168 = vpop.f32.mrf.mxu0
        %v1169 = vadd.f32 0.0, %v1168
        %1170 = vdwg.mxu0
        %v1172 = vsel %vm907, %v1123, 0
        %1174 = vmatpush.msra.mxu0 0.0
        %1175 = vmatpush.msra.mxu0 0.0
        %1176 = vmatpush.msra.mxu0 0.0
        %1177 = vmatpush.msra.mxu0 0.0
        %1178 = vmatpush.msra.mxu0 0.0
        %1179 = vmatpush.msra.mxu0 0.0
        %1180 = vmatpush.msra.mxu0 0.0
        %1181 = vmatpush.msra.mxu0 0.0
        %1182 = vmatpush.msra.mxu0 0.0
        %1183 = vmatpush.msra.mxu0 0.0
        %1184 = vmatpush.msra.mxu0 0.0
        %1185 = vmatpush.msra.mxu0 0.0
        %1186 = vmatpush.msra.mxu0 0.0
        %1187 = vmatpush.msra.mxu0 0.0
        %1188 = vmatpush.msra.mxu0 0.0
        %1189 = vmatpush.msra.mxu0 %v904
        %1190 = vmatmul.f32.gmra.mxu0 %v1172
        %v1191 = vpop.f32.mrf.mxu0
        %v1192 = vadd.f32 0.0, %v1191
        %1193 = vdwg.mxu0
        %v1195 = vsel %vm907, %v1124, 0
        %1197 = vmatpush.msra.mxu0 0.0
        %1198 = vmatpush.msra.mxu0 0.0
        %1199 = vmatpush.msra.mxu0 0.0
        %1200 = vmatpush.msra.mxu0 0.0
        %1201 = vmatpush.msra.mxu0 0.0
        %1202 = vmatpush.msra.mxu0 0.0
        %1203 = vmatpush.msra.mxu0 0.0
        %1204 = vmatpush.msra.mxu0 0.0
        %1205 = vmatpush.msra.mxu0 0.0
        %1206 = vmatpush.msra.mxu0 0.0
        %1207 = vmatpush.msra.mxu0 0.0
        %1208 = vmatpush.msra.mxu0 0.0
        %1209 = vmatpush.msra.mxu0 0.0
        %1210 = vmatpush.msra.mxu0 0.0
        %1211 = vmatpush.msra.mxu0 0.0
        %1212 = vmatpush.msra.mxu0 %v906
        %1213 = vmatmul.f32.gmra.mxu0 %v1195
        %v1214 = vpop.f32.mrf.mxu0
        %v1215 = vadd.f32 0.0, %v1214
        %1216 = vdwg.mxu0
        %v1217 = vrot.slane %v1192, 4
        %v1218 = vsel %vm557, %v1217, %v1146
        %v1219 = vrot.slane %v1146, 4
        %v1220 = vsel %vm557, %v1192, %v1219
        %v1222 = vunpack.c.l.s4 1983009808
        %v1223 = vunpack.c.0.s8 %v1222
        %v1224 = vperm.slane %v1218, %v1223
        %v1226 = vunpack.c.l.s4 1983009808
        %v1227 = vunpack.c.0.s8 %v1226
        %v1228 = vperm.slane %v1220, %v1227
        %v1229 = vrot.slane %v1215, 4
        %v1230 = vsel %vm557, %v1229, %v1169
        %v1231 = vrot.slane %v1169, 4
        %v1232 = vsel %vm557, %v1215, %v1231
        %v1234 = vunpack.c.l.s4 1983009808
        %v1235 = vunpack.c.0.s8 %v1234
        %v1236 = vperm.slane %v1230, %v1235
        %v1238 = vunpack.c.l.s4 1983009808
        %v1239 = vunpack.c.0.s8 %v1238
        %v1240 = vperm.slane %v1232, %v1239
        %v1241 = vrot.slane %v1236, 4
        %v1242 = vsel %vm557, %v1241, %v1224
        %v1243 = vrot.slane %v1224, 4
        %v1244 = vsel %vm557, %v1236, %v1243
        %v1246 = vunpack.c.l.s4 1934713408
        %v1247 = vunpack.c.0.s8 %v1246
        %v1248 = vperm.slane %v1242, %v1247
        %v1250 = vunpack.c.l.s4 1934713408
        %v1251 = vunpack.c.0.s8 %v1250
        %v1252 = vperm.slane %v1244, %v1251
        %v1253 = vrot.slane %v1240, 4
        %v1254 = vsel %vm557, %v1253, %v1228
        %v1255 = vrot.slane %v1228, 4
        %v1256 = vsel %vm557, %v1240, %v1255
        %v1258 = vunpack.c.l.s4 1934713408
        %v1259 = vunpack.c.0.s8 %v1258
        %v1260 = vperm.slane %v1254, %v1259
        %v1262 = vunpack.c.l.s4 1934713408
        %v1263 = vunpack.c.0.s8 %v1262
        %v1264 = vperm.slane %v1256, %v1263
        %v1265 = vrot.slane %v1248, 4
        %v1266 = vsel %vm557, 0.0, %v1265
        %v1267 = vrot.slane %v1252, 4
        %v1268 = vsel %vm557, 0.0, %v1267
        %v1269 = vrot.slane %v1260, 4
        %v1270 = vsel %vm557, 0.0, %v1269
        %v1271 = vrot.slane %v1264, 4
        %v1272 = vsel %vm557, 0.0, %v1271
        %v1273 = vsel %vm557, %v1267, %v1248
        %v1275 = vunpack.c.l.s4 1983009808
        %v1276 = vunpack.c.0.s8 %v1275
        %v1277 = vperm.slane %v1273, %v1276
        %v1278 = vrot.slane %v1268, 4
        %v1279 = vsel %vm557, %v1278, %v1266
        %v1281 = vunpack.c.l.s4 1983009808
        %v1282 = vunpack.c.0.s8 %v1281
        %v1283 = vperm.slane %v1279, %v1282
        %v1284 = vsel %vm557, %v1271, %v1260
        %v1286 = vunpack.c.l.s4 1983009808
        %v1287 = vunpack.c.0.s8 %v1286
        %v1288 = vperm.slane %v1284, %v1287
        %v1289 = vrot.slane %v1272, 4
        %v1290 = vsel %vm557, %v1289, %v1270
        %v1292 = vunpack.c.l.s4 1983009808
        %v1293 = vunpack.c.0.s8 %v1292
        %v1294 = vperm.slane %v1290, %v1293
        %v1295 = vrot.slane %v1283, 4
        %v1296 = vsel %vm557, %v1295, %v1277
        %v1297 = vrot.slane %v1277, 4
        %v1298 = vsel %vm557, %v1283, %v1297
        %v1300 = vunpack.c.l.s4 1934713408
        %v1301 = vunpack.c.0.s8 %v1300
        %v1302 = vperm.slane %v1296, %v1301
        %v1304 = vunpack.c.l.s4 1934713408
        %v1305 = vunpack.c.0.s8 %v1304
        %v1306 = vperm.slane %v1298, %v1305
        %v1307 = vrot.slane %v1294, 4
        %v1308 = vsel %vm557, %v1307, %v1288
        %v1309 = vrot.slane %v1288, 4
        %v1310 = vsel %vm557, %v1294, %v1309
        %v1312 = vunpack.c.l.s4 1934713408
        %v1313 = vunpack.c.0.s8 %v1312
        %v1314 = vperm.slane %v1308, %v1313
        %v1316 = vunpack.c.l.s4 1934713408
        %v1317 = vunpack.c.0.s8 %v1316
        %v1318 = vperm.slane %v1310, %v1317
        %v1319 = vrot.slane %v1314, 4
        %v1320 = vsel %vm557, %v1319, %v1302
        %v1321 = vrot.slane %v1302, 4
        %v1322 = vsel %vm557, %v1314, %v1321
        %v1323 = vrot.slane %v1318, 4
        %v1324 = vsel %vm557, %v1323, %v1306
        %v1325 = vrot.slane %v1306, 4
        %v1326 = vsel %vm557, %v1318, %v1325
        %1328 = vrot.lane.b32.xlu0 %v1322, 8
        %v1329 = vpop.permute.xlu0 %1328
        %1332 = vrot.lane.b32.xlu0 %v1324, 16
        %v1333 = vpop.permute.xlu0 %1332
        %1336 = vrot.lane.b32.xlu0 %v1326, 24
        %v1337 = vpop.permute.xlu0 %1336
        %v1339 = vsel %vm907, %v1320, %v1329
        %vm1340 = vcmask 130048
        %v1341 = vsel %vm1340, %v1339, %v1333
        %vm1342 = vcmask 195584
        %v1343 = vsel %vm1342, %v1341, %v1337
        %v1344 = vld [vmem:[#allocation11] sm:$0xff]
        %v1345 = vld [vmem:[#allocation11 + $0x8] sm:$0xff]
        %v1346 = vld [vmem:[#allocation11 + $0x10] sm:$0xff]
        %v1347 = vld [vmem:[#allocation11 + $0x18] sm:$0xff]
        %v1349 = vsel %vm395, %v1343, 0
        %v1352 = vsel %vm395, %v1344, 0
        %v1355 = vsel %vm395, %v1345, 0
        %v1358 = vsel %vm395, %v1346, 0
        %v1361 = vsel %vm395, %v1347, 0
        %1363 = vmatpush.xpose.msra.mxu0 0.0
        %1364 = vmatpush.xpose.msra.mxu0 0.0
        %1365 = vmatpush.xpose.msra.mxu0 0.0
        %1366 = vmatpush.xpose.msra.mxu0 0.0
        %1367 = vmatpush.xpose.msra.mxu0 0.0
        %1368 = vmatpush.xpose.msra.mxu0 0.0
        %1369 = vmatpush.xpose.msra.mxu0 0.0
        %1370 = vmatpush.xpose.msra.mxu0 0.0
        %1371 = vmatpush.xpose.msra.mxu0 0.0
        %1372 = vmatpush.xpose.msra.mxu0 0.0
        %1373 = vmatpush.xpose.msra.mxu0 0.0
        %1374 = vmatpush.xpose.msra.mxu0 0.0
        %1375 = vmatpush.xpose.msra.mxu0 %v1361
        %1376 = vmatpush.xpose.msra.mxu0 %v1358
        %1377 = vmatpush.xpose.msra.mxu0 %v1355
        %1378 = vmatpush.xpose.msra.mxu0 %v1352
        %1379 = vmatmul.f32.gmra.mxu0 %v1349
        %v1380 = vpop.f32.mrf.mxu0
        %v1381 = vadd.f32 0.0, %v1380
        %1382 = vdwg.mxu0
        %v1383 = vadd.f32 %v394, %v1381
        %1384 = vst.msk [vmem:[%s393] sm:$0xff] %vm395, %v1383
        %s1385 = sand.u32 %s203, 1
        %s1386 = scalar_lea.sflag [#allocation4], %s1385
        %s1387 = sand.u32 %s203, 1
        %s1388 = smul.addr %s1387, 8
        %s1389 = scalar_lea.vmem [#allocation13], %s1388
        // Predicated region
        $region73: #{tpu_custom_call.1} parent=47 // pred_check
          %p1390 = pneg %p213
        $region74: #{tpu_custom_call.1} parent=47 // pred_check_branch
          %1392 = sbr.rel (%p1390) target = $region76
        $region75: #{tpu_custom_call.1} parent=47 // pred_region
          %1394 = vsyncadd %s1386, 0
          %s1395 = sadd.s32 %s32, %s31
          %s1396 = smul.addr %s1395, 8
          %s1397 = scalar_lea.hbm %s7, %s1396
          %s1399 = sshll.u32 %s1389, 4
          %s1400 = int_to_ptr.vmem [resolvable:$true] %s1399
          %s1401 = sshll.u32 %s1397, 4
          %s1402 = int_to_ptr.hbm [resolvable:$true] %s1401
          %1404 = dma.vmem_to_hbm [thread:$0]  %s1400, 128, %s1402, %s1386
        $region76: #{tpu_custom_call.1} parent=47 // pred_fallthru
          _
      $region48: #{tpu_custom_call.1} parent=5 // pred_fallthru
        _
      %p1405 = scmp.le.s32.totalorder 2, %s22
      // Predicated region
      $region77: #{tpu_custom_call.1} parent=5 // pred_check
        %p1406 = pneg %p1405
      $region78: #{tpu_custom_call.1} parent=5 // pred_check_branch
        %1408 = sbr.rel (%p1406) target = $region80
      $region79: #{tpu_custom_call.1} parent=5 // pred_region
        %s1409 = ssub.s32 %s22, 2
        // Predicated region
        $region81: #{tpu_custom_call.1} parent=79 // pred_check
          %p1410 = pneg %p219
        $region82: #{tpu_custom_call.1} parent=79 // pred_check_branch
          %1412 = sbr.rel (%p1410) target = $region84
        $region83: #{tpu_custom_call.1} parent=79 // pred_region
          %s1413 = sand.u32 %s204, 1
          %s1414 = scalar_lea.sflag [#allocation4], %s1413
          %s1415 = sand.u32 %s204, 1
          %s1416 = smul.addr %s1415, 8
          %s1417 = scalar_lea.vmem [#allocation13], %s1416
          %1419 = dma.done %s1414, 128
        $region84: #{tpu_custom_call.1} parent=79 // pred_fallthru
          _
      $region80: #{tpu_custom_call.1} parent=5 // pred_fallthru
        _
    $region6: #{tpu_custom_call.1} parent=1 // loop_footer
      %s26 = sadd.s32 1, %s22
    $region7: #{tpu_custom_call.1} parent=1 // loop_footer_branch
      %21 = sbr.rel target = $region3
    $region8: #{tpu_custom_call.1} parent=1 // loop_exit
      _
    %1420 = vsyncpa [#allocation3], 1
    %s1421 = scalar_lea.sflag [#allocation3], 1
    %1422 = vsyncpa %s1421, 1
    %1423 = vsyncpa [#allocation6], 1
    %1424 = vsyncpa [#allocation9], 1
    %1425 = vsyncpa [#allocation12], 1
    %1426 = vsyncpa [#allocation4], 1
    %s1427 = scalar_lea.sflag [#allocation4], 1
    %1428 = vsyncpa %s1427, 1

</llo_original>
